<compile_context>
chip_gen: v7x
topology: tpu7x:2x2x1
jax: 0.10.0
libtpu: 0.0.40
codegen_flags: <defaults>
</compile_context>

<pallas_src>
import jax
import jax.numpy as jnp
from jax.experimental import pallas as pl
from jax.experimental.pallas import tpu as pltpu

LENGTH = 16      # fixed sequence length, same as the PyTorch module
OUT_PAD = 128    # lane-dense padded width for the 2-class output


def rnn_kernel(x_ref, uw_ref, bias_ref, vw_ref, ww_ref, wb_ref, o_ref):
    """x_ref: (TB, L, D) batch-major tile; uw/vw: (D, D) pre-transposed to (in, out);
    bias: (1, D) = U_b + V_b; ww: (D, OUT_PAD) zero-padded; wb: (1, OUT_PAD);
    o: (TB, OUT_PAD)."""
    TB, L, D = x_ref.shape

    uw = uw_ref[...]
    vw = vw_ref[...]
    bias = bias_ref[...]

    # --- Hoisted input projection, chunked along time so later chunks' matmuls
    #     can fill the MXU bubbles left by the serial recurrence.
    CT = 4 if L % 4 == 0 else 1          # timesteps per chunk
    n_chunks = L // CT
    u_chunks = []
    for c in range(n_chunks):
        # Time-major stacking of this chunk's timesteps.  Each x_ref[:, t, :]
        # is a cheap in-VMEM strided load; no HBM transpose anywhere.
        xc = jnp.concatenate(
            [x_ref[:, t, :] for t in range(c * CT, (c + 1) * CT)], axis=0
        ).astype(jnp.float32)                                     # (CT*TB, D)
        u_chunks.append(
            jnp.dot(xc, uw, preferred_element_type=jnp.float32) + bias
        )

    # --- Recurrence: statically unrolled, split into independent batch
    #     sub-chains so the scheduler can overlap matmul and tanh latencies.
    n_sub = 2 if (TB >= 16 and TB % 16 == 0) else 1
    HB = TB // n_sub
    hs = [jnp.zeros((HB, D), dtype=jnp.float32) for _ in range(n_sub)]

    for t in range(L):
        c, r = divmod(t, CT)
        u_t = u_chunks[c][r * TB:(r + 1) * TB, :]                 # (TB, D), contiguous
        for s in range(n_sub):
            hs[s] = jnp.tanh(
                u_t[s * HB:(s + 1) * HB, :]
                + jnp.dot(hs[s], vw, preferred_element_type=jnp.float32)
            )

    h = hs[0] if n_sub == 1 else jnp.concatenate(hs, axis=0)      # (TB, D)

    # Lane-dense final projection (padded to 128 output columns).
    logits = jnp.dot(h, ww_ref[...], preferred_element_type=jnp.float32) + wb_ref[...]
    o_ref[...] = logits.astype(o_ref.dtype)


def rnn_forward(x, U_w, U_b, V_w, V_b, W_w, W_b, *, block_b=None):
    """x: (B, L, D).  PyTorch-convention weights: U_w/V_w (D, D) = (out, in), W_w (2, D)."""
    B, L, D = x.shape
    assert L == LENGTH
    n_classes = W_w.shape[0]

    # Batch tile: largest divisor of B that is a multiple of 8, capped at 512,
    # preferring >=2 tiles so ("parallel",) can shard across v7x's 2 TensorCores.
    if block_b is None:
        best = None
        for cand in range(min(B // 2, 512), 7, -1):
            if B % cand == 0 and cand % 8 == 0:
                best = cand
                break
        block_b = best if best is not None else B
    assert B % block_b == 0

    x = x.astype(jnp.float32)                                      # (B, L, D), no transpose

    # Pre-transpose weights to (in, out) so the kernel computes x @ W (== x @ W_torch.T).
    uw_t = U_w.T.astype(jnp.float32)                               # (D, D)
    vw_t = V_w.T.astype(jnp.float32)                               # (D, D)
    bias_uv = (U_b + V_b).reshape(1, D).astype(jnp.float32)        # folded biases

    # Zero-pad the tiny 2-column head to a lane-dense 128-column slab.
    ww_pad = jnp.zeros((D, OUT_PAD), jnp.float32).at[:, :n_classes].set(
        W_w.T.astype(jnp.float32))
    wb_pad = jnp.zeros((1, OUT_PAD), jnp.float32).at[:, :n_classes].set(
        W_b.reshape(1, -1).astype(jnp.float32))

    grid = (B // block_b,)
    out_pad = pl.pallas_call(
        rnn_kernel,
        out_shape=jax.ShapeDtypeStruct((B, OUT_PAD), jnp.float32),
        grid_spec=pltpu.PrefetchScalarGridSpec(
            num_scalar_prefetch=0,
            grid=grid,
            in_specs=[
                pl.BlockSpec((block_b, L, D), lambda i: (i, 0, 0)),   # x, batch-tiled
                pl.BlockSpec((D, D), lambda i: (0, 0)),               # U weight (resident)
                pl.BlockSpec((1, D), lambda i: (0, 0)),               # folded bias
                pl.BlockSpec((D, D), lambda i: (0, 0)),               # V weight (resident)
                pl.BlockSpec((D, OUT_PAD), lambda i: (0, 0)),         # W weight (padded)
                pl.BlockSpec((1, OUT_PAD), lambda i: (0, 0)),         # W bias (padded)
            ],
            out_specs=pl.BlockSpec((block_b, OUT_PAD), lambda i: (i, 0)),
        ),
        compiler_params=pltpu.CompilerParams(
            dimension_semantics=("parallel",),  # batch tiles shard across v7x's 2 TCs
        ),
    )(x, uw_t, bias_uv, vw_t, ww_pad, wb_pad)

    return out_pad[:, :n_classes]


def rnn_forward_ref(x, U_w, U_b, V_w, V_b, W_w, W_b):
    """Pure-JAX reference mirroring the PyTorch forward."""
    B, L, D = x.shape
    h = jnp.zeros((B, D), dtype=jnp.float32)
    for t in range(LENGTH):
        xt = x[:, t, :]
        h = jnp.tanh(xt @ U_w.T + U_b + h @ V_w.T + V_b)
    return h @ W_w.T + W_b


if __name__ == "__main__":
    # Small shapes consistent with the module's forward: (batch, length=16, hidden).
    # B=32 exercises both the 2-tile grid and the 2-sub-chain recurrence path.
    B, D = 32, 32
    key = jax.random.PRNGKey(0)
    kx, ku, kub, kv, kvb, kw, kwb = jax.random.split(key, 7)

    # Deterministic parameter init (PyTorch nn.Linear-style uniform bounds).
    bound_d = 1.0 / jnp.sqrt(jnp.float32(D))
    x = jax.random.normal(kx, (B, LENGTH, D), dtype=jnp.float32)
    U_w = jax.random.uniform(ku, (D, D), jnp.float32, -bound_d, bound_d)
    U_b = jax.random.uniform(kub, (D,), jnp.float32, -bound_d, bound_d)
    V_w = jax.random.uniform(kv, (D, D), jnp.float32, -bound_d, bound_d)
    V_b = jax.random.uniform(kvb, (D,), jnp.float32, -bound_d, bound_d)
    W_w = jax.random.uniform(kw, (2, D), jnp.float32, -bound_d, bound_d)
    W_b = jax.random.uniform(kwb, (2,), jnp.float32, -bound_d, bound_d)

    out = rnn_forward(x, U_w, U_b, V_w, V_b, W_w, W_b)
    out = jax.block_until_ready(out)

    ref = rnn_forward_ref(x, U_w, U_b, V_w, V_b, W_w, W_b)
    assert out.shape == (B, 2)
    assert jnp.allclose(out, ref, atol=1e-5, rtol=1e-5)

    print("KERNEL_OK")
</pallas_src>

<mosaic_0001>
module attributes {stable_mosaic.version = 11 : i64} {
  func.func @rnn_kernel(%arg0: i32, %arg1: memref<16x16x32xf32, #tpu.memory_space<vmem>>, %arg2: memref<32x32xf32, #tpu.memory_space<vmem>>, %arg3: memref<1x32xf32, #tpu.memory_space<vmem>>, %arg4: memref<32x32xf32, #tpu.memory_space<vmem>>, %arg5: memref<32x128xf32, #tpu.memory_space<vmem>>, %arg6: memref<1x128xf32, #tpu.memory_space<vmem>>, %arg7: memref<16x128xf32, #tpu.memory_space<vmem>>) attributes {dimension_semantics = [#tpu.dimension_semantics<parallel>], iteration_bounds = array<i64: 2>, scalar_prefetch = 0 : i64, scratch_operands = 0 : i64, tpu.core_type = #tpu.core_type<tc>, window_params = [{transform_indices = @transform_0, window_bounds = array<i64: 16, 16, 32>}, {pipeline_mode = #tpu.pipeline_mode<synchronous>, transform_indices = @transform_1, window_bounds = array<i64: 32, 32>}, {pipeline_mode = #tpu.pipeline_mode<synchronous>, transform_indices = @transform_2, window_bounds = array<i64: 1, 32>}, {pipeline_mode = #tpu.pipeline_mode<synchronous>, transform_indices = @transform_3, window_bounds = array<i64: 32, 32>}, {pipeline_mode = #tpu.pipeline_mode<synchronous>, transform_indices = @transform_4, window_bounds = array<i64: 32, 128>}, {pipeline_mode = #tpu.pipeline_mode<synchronous>, transform_indices = @transform_5, window_bounds = array<i64: 1, 128>}, {transform_indices = @transform_6, window_bounds = array<i64: 16, 128>}]} {
    %c0 = arith.constant 0 : index
    %c0_0 = arith.constant 0 : index
    %0 = vector.load %arg2[%c0, %c0_0] : memref<32x32xf32, #tpu.memory_space<vmem>>, vector<32x32xf32>
    %c0_1 = arith.constant 0 : index
    %c0_2 = arith.constant 0 : index
    %1 = vector.load %arg4[%c0_1, %c0_2] : memref<32x32xf32, #tpu.memory_space<vmem>>, vector<32x32xf32>
    %c0_3 = arith.constant 0 : index
    %c0_4 = arith.constant 0 : index
    %2 = vector.load %arg3[%c0_3, %c0_4] : memref<1x32xf32, #tpu.memory_space<vmem>>, vector<1x32xf32>
    %c0_5 = arith.constant 0 : index
    %c0_6 = arith.constant 0 : index
    %c0_7 = arith.constant 0 : index
    %3 = vector.load %arg1[%c0_5, %c0_6, %c0_7] : memref<16x16x32xf32, #tpu.memory_space<vmem>>, vector<16x1x32xf32>
    %4 = vector.shape_cast %3 : vector<16x1x32xf32> to vector<16x32xf32>
    %c0_8 = arith.constant 0 : index
    %c1 = arith.constant 1 : index
    %c0_9 = arith.constant 0 : index
    %5 = vector.load %arg1[%c0_8, %c1, %c0_9] : memref<16x16x32xf32, #tpu.memory_space<vmem>>, vector<16x1x32xf32>
    %6 = vector.shape_cast %5 : vector<16x1x32xf32> to vector<16x32xf32>
    %c0_10 = arith.constant 0 : index
    %c2 = arith.constant 2 : index
    %c0_11 = arith.constant 0 : index
    %7 = vector.load %arg1[%c0_10, %c2, %c0_11] : memref<16x16x32xf32, #tpu.memory_space<vmem>>, vector<16x1x32xf32>
    %8 = vector.shape_cast %7 : vector<16x1x32xf32> to vector<16x32xf32>
    %c0_12 = arith.constant 0 : index
    %c3 = arith.constant 3 : index
    %c0_13 = arith.constant 0 : index
    %9 = vector.load %arg1[%c0_12, %c3, %c0_13] : memref<16x16x32xf32, #tpu.memory_space<vmem>>, vector<16x1x32xf32>
    %10 = vector.shape_cast %9 : vector<16x1x32xf32> to vector<16x32xf32>
    %11 = tpu.concatenate %4, %6, %8, %10 in 0 : vector<16x32xf32>, vector<16x32xf32>, vector<16x32xf32>, vector<16x32xf32> -> vector<64x32xf32>
    %cst = arith.constant dense<0.000000e+00> : vector<64x32xf32>
    %12 = tpu.matmul %11, %0, %cst {dimension_numbers = #tpu.dot_dimension_numbers<[1], [0], [0], [1], [0, 0, 1, 1], [], []>} : vector<64x32xf32>, vector<32x32xf32>, vector<64x32xf32> -> vector<64x32xf32>
    %13 = vector.broadcast %2 : vector<1x32xf32> to vector<64x32xf32>
    %14 = arith.addf %12, %13 : vector<64x32xf32>
    %c0_14 = arith.constant 0 : index
    %c4 = arith.constant 4 : index
    %c0_15 = arith.constant 0 : index
    %15 = vector.load %arg1[%c0_14, %c4, %c0_15] : memref<16x16x32xf32, #tpu.memory_space<vmem>>, vector<16x1x32xf32>
    %16 = vector.shape_cast %15 : vector<16x1x32xf32> to vector<16x32xf32>
    %c0_16 = arith.constant 0 : index
    %c5 = arith.constant 5 : index
    %c0_17 = arith.constant 0 : index
    %17 = vector.load %arg1[%c0_16, %c5, %c0_17] : memref<16x16x32xf32, #tpu.memory_space<vmem>>, vector<16x1x32xf32>
    %18 = vector.shape_cast %17 : vector<16x1x32xf32> to vector<16x32xf32>
    %c0_18 = arith.constant 0 : index
    %c6 = arith.constant 6 : index
    %c0_19 = arith.constant 0 : index
    %19 = vector.load %arg1[%c0_18, %c6, %c0_19] : memref<16x16x32xf32, #tpu.memory_space<vmem>>, vector<16x1x32xf32>
    %20 = vector.shape_cast %19 : vector<16x1x32xf32> to vector<16x32xf32>
    %c0_20 = arith.constant 0 : index
    %c7 = arith.constant 7 : index
    %c0_21 = arith.constant 0 : index
    %21 = vector.load %arg1[%c0_20, %c7, %c0_21] : memref<16x16x32xf32, #tpu.memory_space<vmem>>, vector<16x1x32xf32>
    %22 = vector.shape_cast %21 : vector<16x1x32xf32> to vector<16x32xf32>
    %23 = tpu.concatenate %16, %18, %20, %22 in 0 : vector<16x32xf32>, vector<16x32xf32>, vector<16x32xf32>, vector<16x32xf32> -> vector<64x32xf32>
    %cst_22 = arith.constant dense<0.000000e+00> : vector<64x32xf32>
    %24 = tpu.matmul %23, %0, %cst_22 {dimension_numbers = #tpu.dot_dimension_numbers<[1], [0], [0], [1], [0, 0, 1, 1], [], []>} : vector<64x32xf32>, vector<32x32xf32>, vector<64x32xf32> -> vector<64x32xf32>
    %25 = vector.broadcast %2 : vector<1x32xf32> to vector<64x32xf32>
    %26 = arith.addf %24, %25 : vector<64x32xf32>
    %c0_23 = arith.constant 0 : index
    %c8 = arith.constant 8 : index
    %c0_24 = arith.constant 0 : index
    %27 = vector.load %arg1[%c0_23, %c8, %c0_24] : memref<16x16x32xf32, #tpu.memory_space<vmem>>, vector<16x1x32xf32>
    %28 = vector.shape_cast %27 : vector<16x1x32xf32> to vector<16x32xf32>
    %c0_25 = arith.constant 0 : index
    %c9 = arith.constant 9 : index
    %c0_26 = arith.constant 0 : index
    %29 = vector.load %arg1[%c0_25, %c9, %c0_26] : memref<16x16x32xf32, #tpu.memory_space<vmem>>, vector<16x1x32xf32>
    %30 = vector.shape_cast %29 : vector<16x1x32xf32> to vector<16x32xf32>
    %c0_27 = arith.constant 0 : index
    %c10 = arith.constant 10 : index
    %c0_28 = arith.constant 0 : index
    %31 = vector.load %arg1[%c0_27, %c10, %c0_28] : memref<16x16x32xf32, #tpu.memory_space<vmem>>, vector<16x1x32xf32>
    %32 = vector.shape_cast %31 : vector<16x1x32xf32> to vector<16x32xf32>
    %c0_29 = arith.constant 0 : index
    %c11 = arith.constant 11 : index
    %c0_30 = arith.constant 0 : index
    %33 = vector.load %arg1[%c0_29, %c11, %c0_30] : memref<16x16x32xf32, #tpu.memory_space<vmem>>, vector<16x1x32xf32>
    %34 = vector.shape_cast %33 : vector<16x1x32xf32> to vector<16x32xf32>
    %35 = tpu.concatenate %28, %30, %32, %34 in 0 : vector<16x32xf32>, vector<16x32xf32>, vector<16x32xf32>, vector<16x32xf32> -> vector<64x32xf32>
    %cst_31 = arith.constant dense<0.000000e+00> : vector<64x32xf32>
    %36 = tpu.matmul %35, %0, %cst_31 {dimension_numbers = #tpu.dot_dimension_numbers<[1], [0], [0], [1], [0, 0, 1, 1], [], []>} : vector<64x32xf32>, vector<32x32xf32>, vector<64x32xf32> -> vector<64x32xf32>
    %37 = vector.broadcast %2 : vector<1x32xf32> to vector<64x32xf32>
    %38 = arith.addf %36, %37 : vector<64x32xf32>
    %c0_32 = arith.constant 0 : index
    %c12 = arith.constant 12 : index
    %c0_33 = arith.constant 0 : index
    %39 = vector.load %arg1[%c0_32, %c12, %c0_33] : memref<16x16x32xf32, #tpu.memory_space<vmem>>, vector<16x1x32xf32>
    %40 = vector.shape_cast %39 : vector<16x1x32xf32> to vector<16x32xf32>
    %c0_34 = arith.constant 0 : index
    %c13 = arith.constant 13 : index
    %c0_35 = arith.constant 0 : index
    %41 = vector.load %arg1[%c0_34, %c13, %c0_35] : memref<16x16x32xf32, #tpu.memory_space<vmem>>, vector<16x1x32xf32>
    %42 = vector.shape_cast %41 : vector<16x1x32xf32> to vector<16x32xf32>
    %c0_36 = arith.constant 0 : index
    %c14 = arith.constant 14 : index
    %c0_37 = arith.constant 0 : index
    %43 = vector.load %arg1[%c0_36, %c14, %c0_37] : memref<16x16x32xf32, #tpu.memory_space<vmem>>, vector<16x1x32xf32>
    %44 = vector.shape_cast %43 : vector<16x1x32xf32> to vector<16x32xf32>
    %c0_38 = arith.constant 0 : index
    %c15 = arith.constant 15 : index
    %c0_39 = arith.constant 0 : index
    %45 = vector.load %arg1[%c0_38, %c15, %c0_39] : memref<16x16x32xf32, #tpu.memory_space<vmem>>, vector<16x1x32xf32>
    %46 = vector.shape_cast %45 : vector<16x1x32xf32> to vector<16x32xf32>
    %47 = tpu.concatenate %40, %42, %44, %46 in 0 : vector<16x32xf32>, vector<16x32xf32>, vector<16x32xf32>, vector<16x32xf32> -> vector<64x32xf32>
    %cst_40 = arith.constant dense<0.000000e+00> : vector<64x32xf32>
    %48 = tpu.matmul %47, %0, %cst_40 {dimension_numbers = #tpu.dot_dimension_numbers<[1], [0], [0], [1], [0, 0, 1, 1], [], []>} : vector<64x32xf32>, vector<32x32xf32>, vector<64x32xf32> -> vector<64x32xf32>
    %49 = vector.broadcast %2 : vector<1x32xf32> to vector<64x32xf32>
    %50 = arith.addf %48, %49 : vector<64x32xf32>
    %cst_41 = arith.constant 0.000000e+00 : f32
    %51 = vector.broadcast %cst_41 : f32 to vector<8x32xf32>
    %cst_42 = arith.constant 0.000000e+00 : f32
    %52 = vector.broadcast %cst_42 : f32 to vector<8x32xf32>
    %53 = vector.extract_strided_slice %14 {offsets = [0, 0], sizes = [16, 32], strides = [1, 1]} : vector<64x32xf32> to vector<16x32xf32>
    %54 = vector.extract_strided_slice %53 {offsets = [0, 0], sizes = [8, 32], strides = [1, 1]} : vector<16x32xf32> to vector<8x32xf32>
    %cst_43 = arith.constant dense<0.000000e+00> : vector<8x32xf32>
    %55 = tpu.matmul %51, %1, %cst_43 {dimension_numbers = #tpu.dot_dimension_numbers<[1], [0], [0], [1], [0, 0, 1, 1], [], []>} : vector<8x32xf32>, vector<32x32xf32>, vector<8x32xf32> -> vector<8x32xf32>
    %56 = arith.addf %54, %55 : vector<8x32xf32>
    %57 = math.tanh %56 : vector<8x32xf32>
    %58 = vector.extract_strided_slice %53 {offsets = [8, 0], sizes = [8, 32], strides = [1, 1]} : vector<16x32xf32> to vector<8x32xf32>
    %cst_44 = arith.constant dense<0.000000e+00> : vector<8x32xf32>
    %59 = tpu.matmul %52, %1, %cst_44 {dimension_numbers = #tpu.dot_dimension_numbers<[1], [0], [0], [1], [0, 0, 1, 1], [], []>} : vector<8x32xf32>, vector<32x32xf32>, vector<8x32xf32> -> vector<8x32xf32>
    %60 = arith.addf %58, %59 : vector<8x32xf32>
    %61 = math.tanh %60 : vector<8x32xf32>
    %62 = vector.extract_strided_slice %14 {offsets = [16, 0], sizes = [16, 32], strides = [1, 1]} : vector<64x32xf32> to vector<16x32xf32>
    %63 = vector.extract_strided_slice %62 {offsets = [0, 0], sizes = [8, 32], strides = [1, 1]} : vector<16x32xf32> to vector<8x32xf32>
    %cst_45 = arith.constant dense<0.000000e+00> : vector<8x32xf32>
    %64 = tpu.matmul %57, %1, %cst_45 {dimension_numbers = #tpu.dot_dimension_numbers<[1], [0], [0], [1], [0, 0, 1, 1], [], []>} : vector<8x32xf32>, vector<32x32xf32>, vector<8x32xf32> -> vector<8x32xf32>
    %65 = arith.addf %63, %64 : vector<8x32xf32>
    %66 = math.tanh %65 : vector<8x32xf32>
    %67 = vector.extract_strided_slice %62 {offsets = [8, 0], sizes = [8, 32], strides = [1, 1]} : vector<16x32xf32> to vector<8x32xf32>
    %cst_46 = arith.constant dense<0.000000e+00> : vector<8x32xf32>
    %68 = tpu.matmul %61, %1, %cst_46 {dimension_numbers = #tpu.dot_dimension_numbers<[1], [0], [0], [1], [0, 0, 1, 1], [], []>} : vector<8x32xf32>, vector<32x32xf32>, vector<8x32xf32> -> vector<8x32xf32>
    %69 = arith.addf %67, %68 : vector<8x32xf32>
    %70 = math.tanh %69 : vector<8x32xf32>
    %71 = vector.extract_strided_slice %14 {offsets = [32, 0], sizes = [16, 32], strides = [1, 1]} : vector<64x32xf32> to vector<16x32xf32>
    %72 = vector.extract_strided_slice %71 {offsets = [0, 0], sizes = [8, 32], strides = [1, 1]} : vector<16x32xf32> to vector<8x32xf32>
    %cst_47 = arith.constant dense<0.000000e+00> : vector<8x32xf32>
    %73 = tpu.matmul %66, %1, %cst_47 {dimension_numbers = #tpu.dot_dimension_numbers<[1], [0], [0], [1], [0, 0, 1, 1], [], []>} : vector<8x32xf32>, vector<32x32xf32>, vector<8x32xf32> -> vector<8x32xf32>
    %74 = arith.addf %72, %73 : vector<8x32xf32>
    %75 = math.tanh %74 : vector<8x32xf32>
    %76 = vector.extract_strided_slice %71 {offsets = [8, 0], sizes = [8, 32], strides = [1, 1]} : vector<16x32xf32> to vector<8x32xf32>
    %cst_48 = arith.constant dense<0.000000e+00> : vector<8x32xf32>
    %77 = tpu.matmul %70, %1, %cst_48 {dimension_numbers = #tpu.dot_dimension_numbers<[1], [0], [0], [1], [0, 0, 1, 1], [], []>} : vector<8x32xf32>, vector<32x32xf32>, vector<8x32xf32> -> vector<8x32xf32>
    %78 = arith.addf %76, %77 : vector<8x32xf32>
    %79 = math.tanh %78 : vector<8x32xf32>
    %80 = vector.extract_strided_slice %14 {offsets = [48, 0], sizes = [16, 32], strides = [1, 1]} : vector<64x32xf32> to vector<16x32xf32>
    %81 = vector.extract_strided_slice %80 {offsets = [0, 0], sizes = [8, 32], strides = [1, 1]} : vector<16x32xf32> to vector<8x32xf32>
    %cst_49 = arith.constant dense<0.000000e+00> : vector<8x32xf32>
    %82 = tpu.matmul %75, %1, %cst_49 {dimension_numbers = #tpu.dot_dimension_numbers<[1], [0], [0], [1], [0, 0, 1, 1], [], []>} : vector<8x32xf32>, vector<32x32xf32>, vector<8x32xf32> -> vector<8x32xf32>
    %83 = arith.addf %81, %82 : vector<8x32xf32>
    %84 = math.tanh %83 : vector<8x32xf32>
    %85 = vector.extract_strided_slice %80 {offsets = [8, 0], sizes = [8, 32], strides = [1, 1]} : vector<16x32xf32> to vector<8x32xf32>
    %cst_50 = arith.constant dense<0.000000e+00> : vector<8x32xf32>
    %86 = tpu.matmul %79, %1, %cst_50 {dimension_numbers = #tpu.dot_dimension_numbers<[1], [0], [0], [1], [0, 0, 1, 1], [], []>} : vector<8x32xf32>, vector<32x32xf32>, vector<8x32xf32> -> vector<8x32xf32>
    %87 = arith.addf %85, %86 : vector<8x32xf32>
    %88 = math.tanh %87 : vector<8x32xf32>
    %89 = vector.extract_strided_slice %26 {offsets = [0, 0], sizes = [16, 32], strides = [1, 1]} : vector<64x32xf32> to vector<16x32xf32>
    %90 = vector.extract_strided_slice %89 {offsets = [0, 0], sizes = [8, 32], strides = [1, 1]} : vector<16x32xf32> to vector<8x32xf32>
    %cst_51 = arith.constant dense<0.000000e+00> : vector<8x32xf32>
    %91 = tpu.matmul %84, %1, %cst_51 {dimension_numbers = #tpu.dot_dimension_numbers<[1], [0], [0], [1], [0, 0, 1, 1], [], []>} : vector<8x32xf32>, vector<32x32xf32>, vector<8x32xf32> -> vector<8x32xf32>
    %92 = arith.addf %90, %91 : vector<8x32xf32>
    %93 = math.tanh %92 : vector<8x32xf32>
    %94 = vector.extract_strided_slice %89 {offsets = [8, 0], sizes = [8, 32], strides = [1, 1]} : vector<16x32xf32> to vector<8x32xf32>
    %cst_52 = arith.constant dense<0.000000e+00> : vector<8x32xf32>
    %95 = tpu.matmul %88, %1, %cst_52 {dimension_numbers = #tpu.dot_dimension_numbers<[1], [0], [0], [1], [0, 0, 1, 1], [], []>} : vector<8x32xf32>, vector<32x32xf32>, vector<8x32xf32> -> vector<8x32xf32>
    %96 = arith.addf %94, %95 : vector<8x32xf32>
    %97 = math.tanh %96 : vector<8x32xf32>
    %98 = vector.extract_strided_slice %26 {offsets = [16, 0], sizes = [16, 32], strides = [1, 1]} : vector<64x32xf32> to vector<16x32xf32>
    %99 = vector.extract_strided_slice %98 {offsets = [0, 0], sizes = [8, 32], strides = [1, 1]} : vector<16x32xf32> to vector<8x32xf32>
    %cst_53 = arith.constant dense<0.000000e+00> : vector<8x32xf32>
    %100 = tpu.matmul %93, %1, %cst_53 {dimension_numbers = #tpu.dot_dimension_numbers<[1], [0], [0], [1], [0, 0, 1, 1], [], []>} : vector<8x32xf32>, vector<32x32xf32>, vector<8x32xf32> -> vector<8x32xf32>
    %101 = arith.addf %99, %100 : vector<8x32xf32>
    %102 = math.tanh %101 : vector<8x32xf32>
    %103 = vector.extract_strided_slice %98 {offsets = [8, 0], sizes = [8, 32], strides = [1, 1]} : vector<16x32xf32> to vector<8x32xf32>
    %cst_54 = arith.constant dense<0.000000e+00> : vector<8x32xf32>
    %104 = tpu.matmul %97, %1, %cst_54 {dimension_numbers = #tpu.dot_dimension_numbers<[1], [0], [0], [1], [0, 0, 1, 1], [], []>} : vector<8x32xf32>, vector<32x32xf32>, vector<8x32xf32> -> vector<8x32xf32>
    %105 = arith.addf %103, %104 : vector<8x32xf32>
    %106 = math.tanh %105 : vector<8x32xf32>
    %107 = vector.extract_strided_slice %26 {offsets = [32, 0], sizes = [16, 32], strides = [1, 1]} : vector<64x32xf32> to vector<16x32xf32>
    %108 = vector.extract_strided_slice %107 {offsets = [0, 0], sizes = [8, 32], strides = [1, 1]} : vector<16x32xf32> to vector<8x32xf32>
    %cst_55 = arith.constant dense<0.000000e+00> : vector<8x32xf32>
    %109 = tpu.matmul %102, %1, %cst_55 {dimension_numbers = #tpu.dot_dimension_numbers<[1], [0], [0], [1], [0, 0, 1, 1], [], []>} : vector<8x32xf32>, vector<32x32xf32>, vector<8x32xf32> -> vector<8x32xf32>
    %110 = arith.addf %108, %109 : vector<8x32xf32>
    %111 = math.tanh %110 : vector<8x32xf32>
    %112 = vector.extract_strided_slice %107 {offsets = [8, 0], sizes = [8, 32], strides = [1, 1]} : vector<16x32xf32> to vector<8x32xf32>
    %cst_56 = arith.constant dense<0.000000e+00> : vector<8x32xf32>
    %113 = tpu.matmul %106, %1, %cst_56 {dimension_numbers = #tpu.dot_dimension_numbers<[1], [0], [0], [1], [0, 0, 1, 1], [], []>} : vector<8x32xf32>, vector<32x32xf32>, vector<8x32xf32> -> vector<8x32xf32>
    %114 = arith.addf %112, %113 : vector<8x32xf32>
    %115 = math.tanh %114 : vector<8x32xf32>
    %116 = vector.extract_strided_slice %26 {offsets = [48, 0], sizes = [16, 32], strides = [1, 1]} : vector<64x32xf32> to vector<16x32xf32>
    %117 = vector.extract_strided_slice %116 {offsets = [0, 0], sizes = [8, 32], strides = [1, 1]} : vector<16x32xf32> to vector<8x32xf32>
    %cst_57 = arith.constant dense<0.000000e+00> : vector<8x32xf32>
    %118 = tpu.matmul %111, %1, %cst_57 {dimension_numbers = #tpu.dot_dimension_numbers<[1], [0], [0], [1], [0, 0, 1, 1], [], []>} : vector<8x32xf32>, vector<32x32xf32>, vector<8x32xf32> -> vector<8x32xf32>
    %119 = arith.addf %117, %118 : vector<8x32xf32>
    %120 = math.tanh %119 : vector<8x32xf32>
    %121 = vector.extract_strided_slice %116 {offsets = [8, 0], sizes = [8, 32], strides = [1, 1]} : vector<16x32xf32> to vector<8x32xf32>
    %cst_58 = arith.constant dense<0.000000e+00> : vector<8x32xf32>
    %122 = tpu.matmul %115, %1, %cst_58 {dimension_numbers = #tpu.dot_dimension_numbers<[1], [0], [0], [1], [0, 0, 1, 1], [], []>} : vector<8x32xf32>, vector<32x32xf32>, vector<8x32xf32> -> vector<8x32xf32>
    %123 = arith.addf %121, %122 : vector<8x32xf32>
    %124 = math.tanh %123 : vector<8x32xf32>
    %125 = vector.extract_strided_slice %38 {offsets = [0, 0], sizes = [16, 32], strides = [1, 1]} : vector<64x32xf32> to vector<16x32xf32>
    %126 = vector.extract_strided_slice %125 {offsets = [0, 0], sizes = [8, 32], strides = [1, 1]} : vector<16x32xf32> to vector<8x32xf32>
    %cst_59 = arith.constant dense<0.000000e+00> : vector<8x32xf32>
    %127 = tpu.matmul %120, %1, %cst_59 {dimension_numbers = #tpu.dot_dimension_numbers<[1], [0], [0], [1], [0, 0, 1, 1], [], []>} : vector<8x32xf32>, vector<32x32xf32>, vector<8x32xf32> -> vector<8x32xf32>
    %128 = arith.addf %126, %127 : vector<8x32xf32>
    %129 = math.tanh %128 : vector<8x32xf32>
    %130 = vector.extract_strided_slice %125 {offsets = [8, 0], sizes = [8, 32], strides = [1, 1]} : vector<16x32xf32> to vector<8x32xf32>
    %cst_60 = arith.constant dense<0.000000e+00> : vector<8x32xf32>
    %131 = tpu.matmul %124, %1, %cst_60 {dimension_numbers = #tpu.dot_dimension_numbers<[1], [0], [0], [1], [0, 0, 1, 1], [], []>} : vector<8x32xf32>, vector<32x32xf32>, vector<8x32xf32> -> vector<8x32xf32>
    %132 = arith.addf %130, %131 : vector<8x32xf32>
    %133 = math.tanh %132 : vector<8x32xf32>
    %134 = vector.extract_strided_slice %38 {offsets = [16, 0], sizes = [16, 32], strides = [1, 1]} : vector<64x32xf32> to vector<16x32xf32>
    %135 = vector.extract_strided_slice %134 {offsets = [0, 0], sizes = [8, 32], strides = [1, 1]} : vector<16x32xf32> to vector<8x32xf32>
    %cst_61 = arith.constant dense<0.000000e+00> : vector<8x32xf32>
    %136 = tpu.matmul %129, %1, %cst_61 {dimension_numbers = #tpu.dot_dimension_numbers<[1], [0], [0], [1], [0, 0, 1, 1], [], []>} : vector<8x32xf32>, vector<32x32xf32>, vector<8x32xf32> -> vector<8x32xf32>
    %137 = arith.addf %135, %136 : vector<8x32xf32>
    %138 = math.tanh %137 : vector<8x32xf32>
    %139 = vector.extract_strided_slice %134 {offsets = [8, 0], sizes = [8, 32], strides = [1, 1]} : vector<16x32xf32> to vector<8x32xf32>
    %cst_62 = arith.constant dense<0.000000e+00> : vector<8x32xf32>
    %140 = tpu.matmul %133, %1, %cst_62 {dimension_numbers = #tpu.dot_dimension_numbers<[1], [0], [0], [1], [0, 0, 1, 1], [], []>} : vector<8x32xf32>, vector<32x32xf32>, vector<8x32xf32> -> vector<8x32xf32>
    %141 = arith.addf %139, %140 : vector<8x32xf32>
    %142 = math.tanh %141 : vector<8x32xf32>
    %143 = vector.extract_strided_slice %38 {offsets = [32, 0], sizes = [16, 32], strides = [1, 1]} : vector<64x32xf32> to vector<16x32xf32>
    %144 = vector.extract_strided_slice %143 {offsets = [0, 0], sizes = [8, 32], strides = [1, 1]} : vector<16x32xf32> to vector<8x32xf32>
    %cst_63 = arith.constant dense<0.000000e+00> : vector<8x32xf32>
    %145 = tpu.matmul %138, %1, %cst_63 {dimension_numbers = #tpu.dot_dimension_numbers<[1], [0], [0], [1], [0, 0, 1, 1], [], []>} : vector<8x32xf32>, vector<32x32xf32>, vector<8x32xf32> -> vector<8x32xf32>
    %146 = arith.addf %144, %145 : vector<8x32xf32>
    %147 = math.tanh %146 : vector<8x32xf32>
    %148 = vector.extract_strided_slice %143 {offsets = [8, 0], sizes = [8, 32], strides = [1, 1]} : vector<16x32xf32> to vector<8x32xf32>
    %cst_64 = arith.constant dense<0.000000e+00> : vector<8x32xf32>
    %149 = tpu.matmul %142, %1, %cst_64 {dimension_numbers = #tpu.dot_dimension_numbers<[1], [0], [0], [1], [0, 0, 1, 1], [], []>} : vector<8x32xf32>, vector<32x32xf32>, vector<8x32xf32> -> vector<8x32xf32>
    %150 = arith.addf %148, %149 : vector<8x32xf32>
    %151 = math.tanh %150 : vector<8x32xf32>
    %152 = vector.extract_strided_slice %38 {offsets = [48, 0], sizes = [16, 32], strides = [1, 1]} : vector<64x32xf32> to vector<16x32xf32>
    %153 = vector.extract_strided_slice %152 {offsets = [0, 0], sizes = [8, 32], strides = [1, 1]} : vector<16x32xf32> to vector<8x32xf32>
    %cst_65 = arith.constant dense<0.000000e+00> : vector<8x32xf32>
    %154 = tpu.matmul %147, %1, %cst_65 {dimension_numbers = #tpu.dot_dimension_numbers<[1], [0], [0], [1], [0, 0, 1, 1], [], []>} : vector<8x32xf32>, vector<32x32xf32>, vector<8x32xf32> -> vector<8x32xf32>
    %155 = arith.addf %153, %154 : vector<8x32xf32>
    %156 = math.tanh %155 : vector<8x32xf32>
    %157 = vector.extract_strided_slice %152 {offsets = [8, 0], sizes = [8, 32], strides = [1, 1]} : vector<16x32xf32> to vector<8x32xf32>
    %cst_66 = arith.constant dense<0.000000e+00> : vector<8x32xf32>
    %158 = tpu.matmul %151, %1, %cst_66 {dimension_numbers = #tpu.dot_dimension_numbers<[1], [0], [0], [1], [0, 0, 1, 1], [], []>} : vector<8x32xf32>, vector<32x32xf32>, vector<8x32xf32> -> vector<8x32xf32>
    %159 = arith.addf %157, %158 : vector<8x32xf32>
    %160 = math.tanh %159 : vector<8x32xf32>
    %161 = vector.extract_strided_slice %50 {offsets = [0, 0], sizes = [16, 32], strides = [1, 1]} : vector<64x32xf32> to vector<16x32xf32>
    %162 = vector.extract_strided_slice %161 {offsets = [0, 0], sizes = [8, 32], strides = [1, 1]} : vector<16x32xf32> to vector<8x32xf32>
    %cst_67 = arith.constant dense<0.000000e+00> : vector<8x32xf32>
    %163 = tpu.matmul %156, %1, %cst_67 {dimension_numbers = #tpu.dot_dimension_numbers<[1], [0], [0], [1], [0, 0, 1, 1], [], []>} : vector<8x32xf32>, vector<32x32xf32>, vector<8x32xf32> -> vector<8x32xf32>
    %164 = arith.addf %162, %163 : vector<8x32xf32>
    %165 = math.tanh %164 : vector<8x32xf32>
    %166 = vector.extract_strided_slice %161 {offsets = [8, 0], sizes = [8, 32], strides = [1, 1]} : vector<16x32xf32> to vector<8x32xf32>
    %cst_68 = arith.constant dense<0.000000e+00> : vector<8x32xf32>
    %167 = tpu.matmul %160, %1, %cst_68 {dimension_numbers = #tpu.dot_dimension_numbers<[1], [0], [0], [1], [0, 0, 1, 1], [], []>} : vector<8x32xf32>, vector<32x32xf32>, vector<8x32xf32> -> vector<8x32xf32>
    %168 = arith.addf %166, %167 : vector<8x32xf32>
    %169 = math.tanh %168 : vector<8x32xf32>
    %170 = vector.extract_strided_slice %50 {offsets = [16, 0], sizes = [16, 32], strides = [1, 1]} : vector<64x32xf32> to vector<16x32xf32>
    %171 = vector.extract_strided_slice %170 {offsets = [0, 0], sizes = [8, 32], strides = [1, 1]} : vector<16x32xf32> to vector<8x32xf32>
    %cst_69 = arith.constant dense<0.000000e+00> : vector<8x32xf32>
    %172 = tpu.matmul %165, %1, %cst_69 {dimension_numbers = #tpu.dot_dimension_numbers<[1], [0], [0], [1], [0, 0, 1, 1], [], []>} : vector<8x32xf32>, vector<32x32xf32>, vector<8x32xf32> -> vector<8x32xf32>
    %173 = arith.addf %171, %172 : vector<8x32xf32>
    %174 = math.tanh %173 : vector<8x32xf32>
    %175 = vector.extract_strided_slice %170 {offsets = [8, 0], sizes = [8, 32], strides = [1, 1]} : vector<16x32xf32> to vector<8x32xf32>
    %cst_70 = arith.constant dense<0.000000e+00> : vector<8x32xf32>
    %176 = tpu.matmul %169, %1, %cst_70 {dimension_numbers = #tpu.dot_dimension_numbers<[1], [0], [0], [1], [0, 0, 1, 1], [], []>} : vector<8x32xf32>, vector<32x32xf32>, vector<8x32xf32> -> vector<8x32xf32>
    %177 = arith.addf %175, %176 : vector<8x32xf32>
    %178 = math.tanh %177 : vector<8x32xf32>
    %179 = vector.extract_strided_slice %50 {offsets = [32, 0], sizes = [16, 32], strides = [1, 1]} : vector<64x32xf32> to vector<16x32xf32>
    %180 = vector.extract_strided_slice %179 {offsets = [0, 0], sizes = [8, 32], strides = [1, 1]} : vector<16x32xf32> to vector<8x32xf32>
    %cst_71 = arith.constant dense<0.000000e+00> : vector<8x32xf32>
    %181 = tpu.matmul %174, %1, %cst_71 {dimension_numbers = #tpu.dot_dimension_numbers<[1], [0], [0], [1], [0, 0, 1, 1], [], []>} : vector<8x32xf32>, vector<32x32xf32>, vector<8x32xf32> -> vector<8x32xf32>
    %182 = arith.addf %180, %181 : vector<8x32xf32>
    %183 = math.tanh %182 : vector<8x32xf32>
    %184 = vector.extract_strided_slice %179 {offsets = [8, 0], sizes = [8, 32], strides = [1, 1]} : vector<16x32xf32> to vector<8x32xf32>
    %cst_72 = arith.constant dense<0.000000e+00> : vector<8x32xf32>
    %185 = tpu.matmul %178, %1, %cst_72 {dimension_numbers = #tpu.dot_dimension_numbers<[1], [0], [0], [1], [0, 0, 1, 1], [], []>} : vector<8x32xf32>, vector<32x32xf32>, vector<8x32xf32> -> vector<8x32xf32>
    %186 = arith.addf %184, %185 : vector<8x32xf32>
    %187 = math.tanh %186 : vector<8x32xf32>
    %188 = vector.extract_strided_slice %50 {offsets = [48, 0], sizes = [16, 32], strides = [1, 1]} : vector<64x32xf32> to vector<16x32xf32>
    %189 = vector.extract_strided_slice %188 {offsets = [0, 0], sizes = [8, 32], strides = [1, 1]} : vector<16x32xf32> to vector<8x32xf32>
    %cst_73 = arith.constant dense<0.000000e+00> : vector<8x32xf32>
    %190 = tpu.matmul %183, %1, %cst_73 {dimension_numbers = #tpu.dot_dimension_numbers<[1], [0], [0], [1], [0, 0, 1, 1], [], []>} : vector<8x32xf32>, vector<32x32xf32>, vector<8x32xf32> -> vector<8x32xf32>
    %191 = arith.addf %189, %190 : vector<8x32xf32>
    %192 = math.tanh %191 : vector<8x32xf32>
    %193 = vector.extract_strided_slice %188 {offsets = [8, 0], sizes = [8, 32], strides = [1, 1]} : vector<16x32xf32> to vector<8x32xf32>
    %cst_74 = arith.constant dense<0.000000e+00> : vector<8x32xf32>
    %194 = tpu.matmul %187, %1, %cst_74 {dimension_numbers = #tpu.dot_dimension_numbers<[1], [0], [0], [1], [0, 0, 1, 1], [], []>} : vector<8x32xf32>, vector<32x32xf32>, vector<8x32xf32> -> vector<8x32xf32>
    %195 = arith.addf %193, %194 : vector<8x32xf32>
    %196 = math.tanh %195 : vector<8x32xf32>
    %197 = tpu.concatenate %192, %196 in 0 : vector<8x32xf32>, vector<8x32xf32> -> vector<16x32xf32>
    %c0_75 = arith.constant 0 : index
    %c0_76 = arith.constant 0 : index
    %198 = vector.load %arg5[%c0_75, %c0_76] : memref<32x128xf32, #tpu.memory_space<vmem>>, vector<32x128xf32>
    %cst_77 = arith.constant dense<0.000000e+00> : vector<16x128xf32>
    %199 = tpu.matmul %197, %198, %cst_77 {dimension_numbers = #tpu.dot_dimension_numbers<[1], [0], [0], [1], [0, 0, 1, 1], [], []>} : vector<16x32xf32>, vector<32x128xf32>, vector<16x128xf32> -> vector<16x128xf32>
    %c0_78 = arith.constant 0 : index
    %c0_79 = arith.constant 0 : index
    %200 = vector.load %arg6[%c0_78, %c0_79] : memref<1x128xf32, #tpu.memory_space<vmem>>, vector<1x128xf32>
    %201 = vector.broadcast %200 : vector<1x128xf32> to vector<16x128xf32>
    %202 = arith.addf %199, %201 : vector<16x128xf32>
    %c0_80 = arith.constant 0 : index
    %c0_81 = arith.constant 0 : index
    %203 = vector.load %arg7[%c0_80, %c0_81] : memref<16x128xf32, #tpu.memory_space<vmem>>, vector<16x128xf32>
    tpu.vector_store %arg7[%c0_80, %c0_81], %202 {strides = array<i32>} : memref<16x128xf32, #tpu.memory_space<vmem>>, vector<16x128xf32>,
    return
  }
  func.func @transform_0(%arg0: i32) -> (i32, i32, i32) {
    %c0_i32 = arith.constant 0 : i32
    %c0_i32_0 = arith.constant 0 : i32
    %c0_i32_1 = arith.constant 0 : i32
    return %arg0, %c0_i32, %c0_i32_0 : i32, i32, i32
  }
  func.func @transform_1(%arg0: i32) -> (i32, i32) {
    %c0_i32 = arith.constant 0 : i32
    %c0_i32_0 = arith.constant 0 : i32
    %c0_i32_1 = arith.constant 0 : i32
    return %c0_i32, %c0_i32_0 : i32, i32
  }
  func.func @transform_2(%arg0: i32) -> (i32, i32) {
    %c0_i32 = arith.constant 0 : i32
    %c0_i32_0 = arith.constant 0 : i32
    %c0_i32_1 = arith.constant 0 : i32
    return %c0_i32, %c0_i32_0 : i32, i32
  }
  func.func @transform_3(%arg0: i32) -> (i32, i32) {
    %c0_i32 = arith.constant 0 : i32
    %c0_i32_0 = arith.constant 0 : i32
    %c0_i32_1 = arith.constant 0 : i32
    return %c0_i32, %c0_i32_0 : i32, i32
  }
  func.func @transform_4(%arg0: i32) -> (i32, i32) {
    %c0_i32 = arith.constant 0 : i32
    %c0_i32_0 = arith.constant 0 : i32
    %c0_i32_1 = arith.constant 0 : i32
    return %c0_i32, %c0_i32_0 : i32, i32
  }
  func.func @transform_5(%arg0: i32) -> (i32, i32) {
    %c0_i32 = arith.constant 0 : i32
    %c0_i32_0 = arith.constant 0 : i32
    %c0_i32_1 = arith.constant 0 : i32
    return %c0_i32, %c0_i32_0 : i32, i32
  }
  func.func @transform_6(%arg0: i32) -> (i32, i32) {
    %c0_i32 = arith.constant 0 : i32
    %c0_i32_0 = arith.constant 0 : i32
    return %arg0, %c0_i32 : i32, i32
  }
}

</mosaic_0001>

<llo_original>
// kernel: tpu_custom_call.1
$region0: #{tpu_custom_call.1}
  #allocation0 [shape = 'u32[]', space=smem, size = 0x4, offset = 0x4, fixed_abs, tag = 'smem constant byte address 0x4 - core index']
  #allocation1 [shape = 'u32[144,128]{1,0:T(1,128)}', space=vmem, size = 0x12000, scoped, tag = 'internal scratch']
  %s0 = inlined_call_operand.hbm [shape: f32[32,16,32], index: 0, kind: input, shape index: {}]
  %s1 = inlined_call_operand.hbm [shape: f32[32,32], index: 1, kind: input, shape index: {}]
  %s2 = inlined_call_operand.vmem [shape: f32[1,32], index: 2, kind: input, shape index: {}]
  %s3 = inlined_call_operand.hbm [shape: f32[32,32], index: 3, kind: input, shape index: {}]
  %s4 = inlined_call_operand.hbm [shape: f32[32,128], index: 4, kind: input, shape index: {}]
  %s5 = inlined_call_operand.vmem [shape: f32[1,128], index: 5, kind: input, shape index: {}]
  %s6 = inlined_call_operand.hbm [shape: f32[32,128], index: 6, kind: output, shape index: {}]
  %s7 = sld [smem:[#allocation0]]
  $region73: #{tpu_custom_call.1} parent=0
    _
  %s9 = ssub.s32 1, %s7
  %s10 = scalar_select 0, %s9, %s7
  $region1: #{tpu_custom_call.1} parent=0
    #allocation2 [shape = 'u8[262144]{0}', space=vmem, size = 0x40000, scoped, tag = 'input window, operand 0']
    #allocation3 [shape = 's32[2]{0}', space=sflag, size = 0x8, scoped, tag = 'scoped memory for tpu_custom_call.1']
    #allocation4 [shape = 's32[2]{0}', space=sflag, size = 0x8, scoped, tag = 'scoped memory for tpu_custom_call.1']
    #allocation5 [shape = 'u8[16384]{0}', space=vmem, size = 0x4000, scoped, tag = 'input window, operand 1, single buffered']
    #allocation6 [shape = 's32[1]{0}', space=sflag, size = 0x4, scoped, tag = 'scoped memory for tpu_custom_call.1']
    #allocation7 [shape = 'u8[16384]{0}', space=vmem, size = 0x4000, scoped, tag = 'input window, operand 3, single buffered']
    #allocation8 [shape = 'u8[16384]{0}', space=vmem, size = 0x4000, scoped, tag = 'input window, operand 4, single buffered']
    #allocation9 [shape = 's32[1]{0}', space=sflag, size = 0x4, scoped, tag = 'scoped memory for tpu_custom_call.1']
    #allocation10 [shape = 'u8[16384]{0}', space=vmem, size = 0x4000, scoped, tag = 'output window, operand 0']
    %11 = vsyncpa [#allocation3], 0
    %s12 = scalar_lea.sflag [#allocation3], 1
    %13 = vsyncpa %s12, 0
    %14 = vsyncpa [#allocation6], 0
    %15 = vsyncpa [#allocation9], 0
    %16 = vsyncpa [#allocation4], 0
    %s17 = scalar_lea.sflag [#allocation4], 1
    %18 = vsyncpa %s17, 0
    loop: start=0, step=1, limit=4
    $region2: #{tpu_custom_call.1} parent=1 // loop_pre_header
      _
    $region3: #{tpu_custom_call.1} parent=1 // loop_header
      %s20 = sphi 0, %s24
      %p21 = scmp.ge.s32.totalorder %s20, 4
      %s30 = sphi 0, %s32
      %s33 = sphi 0, %s30
      %s34 = sphi 0, %s33
      %s50 = sphi 0, %s34
      %s54 = sphi 0, %s54
      %s56 = sphi 0, %s54
      %s57 = sphi 0, %s56
      %s71 = sphi 0, %s57
      %s75 = sphi 0, %s75
      %s77 = sphi 0, %s75
      %s78 = sphi 0, %s77
      %s92 = sphi 0, %s78
      %s96 = sphi 0, %s96
      %s98 = sphi 0, %s96
      %s99 = sphi 0, %s98
      %s113 = sphi 0, %s99
      %s117 = sphi 0, %s117
      %s119 = sphi 0, %s117
      %s120 = sphi 0, %s119
      %s134 = sphi 0, %s120
      %s138 = sphi 0, %s138
      %s140 = sphi 0, %s138
      %s141 = sphi 0, %s140
      %s155 = sphi 0, %s141
      %s161 = sphi 0, %s163
      %s164 = sphi 0, %s161
      %s165 = sphi 0, %s164
      %s181 = sphi 0, %s165
    $region4: #{tpu_custom_call.1} parent=1 // loop_header_branch
      %23 = sbr.rel (%p21) target = $region8
    $region5: #{tpu_custom_call.1} parent=1 // loop_body
      %s25 = ssub.s32 %s20, 1
      %s26 = ssub.s32 %s20, 2
      %s27 = sadd.s32 %s20, 1
      %s28 = ssub.s32 %s20, %s27
      %p29 = scmp.eq.s32.totalorder %s28, 0
      %s31 = sadd.s32 %s30, 1
      %s32 = scalar_select %p29, %s30, %s31
      %p35 = pneg %p29
      %p36 = scmp.eq.s32.totalorder %s20, 1
      %p37 = por %p35, %p36
      %p38 = scmp.ne.s32.totalorder %s30, %s33
      %p39 = scmp.eq.s32.totalorder %s20, 0
      %p40 = por %p38, %p39
      %p41 = scmp.ne.s32.totalorder %s30, %s33
      %p42 = scmp.eq.s32.totalorder %s25, 1
      %p43 = por %p41, %p42
      %p44 = scmp.ne.s32.totalorder %s33, %s34
      %p45 = scmp.eq.s32.totalorder %s25, 0
      %p46 = por %p44, %p45
      %p47 = scmp.ne.s32.totalorder %s33, %s34
      %p48 = scmp.eq.s32.totalorder %s26, 1
      %p49 = por %p47, %p48
      %p51 = scmp.ne.s32.totalorder %s34, %s50
      %p52 = scmp.eq.s32.totalorder %s26, 0
      %p53 = por %p51, %p52
      %s55 = sadd.s32 %s54, 1
      %p58 = scmp.eq.s32.totalorder %s20, 1
      %p59 = scmp.ne.s32.totalorder %s54, %s56
      %p60 = scmp.eq.s32.totalorder %s20, 0
      %p61 = por %p59, %p60
      %p62 = scmp.ne.s32.totalorder %s54, %s56
      %p63 = scmp.eq.s32.totalorder %s25, 1
      %p64 = por %p62, %p63
      %p65 = scmp.ne.s32.totalorder %s56, %s57
      %p66 = scmp.eq.s32.totalorder %s25, 0
      %p67 = por %p65, %p66
      %p68 = scmp.ne.s32.totalorder %s56, %s57
      %p69 = scmp.eq.s32.totalorder %s26, 1
      %p70 = por %p68, %p69
      %p72 = scmp.ne.s32.totalorder %s57, %s71
      %p73 = scmp.eq.s32.totalorder %s26, 0
      %p74 = por %p72, %p73
      %s76 = sadd.s32 %s75, 1
      %p79 = scmp.eq.s32.totalorder %s20, 1
      %p80 = scmp.ne.s32.totalorder %s75, %s77
      %p81 = scmp.eq.s32.totalorder %s20, 0
      %p82 = por %p80, %p81
      %p83 = scmp.ne.s32.totalorder %s75, %s77
      %p84 = scmp.eq.s32.totalorder %s25, 1
      %p85 = por %p83, %p84
      %p86 = scmp.ne.s32.totalorder %s77, %s78
      %p87 = scmp.eq.s32.totalorder %s25, 0
      %p88 = por %p86, %p87
      %p89 = scmp.ne.s32.totalorder %s77, %s78
      %p90 = scmp.eq.s32.totalorder %s26, 1
      %p91 = por %p89, %p90
      %p93 = scmp.ne.s32.totalorder %s78, %s92
      %p94 = scmp.eq.s32.totalorder %s26, 0
      %p95 = por %p93, %p94
      %s97 = sadd.s32 %s96, 1
      %p100 = scmp.eq.s32.totalorder %s20, 1
      %p101 = scmp.ne.s32.totalorder %s96, %s98
      %p102 = scmp.eq.s32.totalorder %s20, 0
      %p103 = por %p101, %p102
      %p104 = scmp.ne.s32.totalorder %s96, %s98
      %p105 = scmp.eq.s32.totalorder %s25, 1
      %p106 = por %p104, %p105
      %p107 = scmp.ne.s32.totalorder %s98, %s99
      %p108 = scmp.eq.s32.totalorder %s25, 0
      %p109 = por %p107, %p108
      %p110 = scmp.ne.s32.totalorder %s98, %s99
      %p111 = scmp.eq.s32.totalorder %s26, 1
      %p112 = por %p110, %p111
      %p114 = scmp.ne.s32.totalorder %s99, %s113
      %p115 = scmp.eq.s32.totalorder %s26, 0
      %p116 = por %p114, %p115
      %s118 = sadd.s32 %s117, 1
      %p121 = scmp.eq.s32.totalorder %s20, 1
      %p122 = scmp.ne.s32.totalorder %s117, %s119
      %p123 = scmp.eq.s32.totalorder %s20, 0
      %p124 = por %p122, %p123
      %p125 = scmp.ne.s32.totalorder %s117, %s119
      %p126 = scmp.eq.s32.totalorder %s25, 1
      %p127 = por %p125, %p126
      %p128 = scmp.ne.s32.totalorder %s119, %s120
      %p129 = scmp.eq.s32.totalorder %s25, 0
      %p130 = por %p128, %p129
      %p131 = scmp.ne.s32.totalorder %s119, %s120
      %p132 = scmp.eq.s32.totalorder %s26, 1
      %p133 = por %p131, %p132
      %p135 = scmp.ne.s32.totalorder %s120, %s134
      %p136 = scmp.eq.s32.totalorder %s26, 0
      %p137 = por %p135, %p136
      %s139 = sadd.s32 %s138, 1
      %p142 = scmp.eq.s32.totalorder %s20, 1
      %p143 = scmp.ne.s32.totalorder %s138, %s140
      %p144 = scmp.eq.s32.totalorder %s20, 0
      %p145 = por %p143, %p144
      %p146 = scmp.ne.s32.totalorder %s138, %s140
      %p147 = scmp.eq.s32.totalorder %s25, 1
      %p148 = por %p146, %p147
      %p149 = scmp.ne.s32.totalorder %s140, %s141
      %p150 = scmp.eq.s32.totalorder %s25, 0
      %p151 = por %p149, %p150
      %p152 = scmp.ne.s32.totalorder %s140, %s141
      %p153 = scmp.eq.s32.totalorder %s26, 1
      %p154 = por %p152, %p153
      %p156 = scmp.ne.s32.totalorder %s141, %s155
      %p157 = scmp.eq.s32.totalorder %s26, 0
      %p158 = por %p156, %p157
      %s159 = ssub.s32 %s20, %s27
      %p160 = scmp.eq.s32.totalorder %s159, 0
      %s162 = sadd.s32 %s161, 1
      %s163 = scalar_select %p160, %s161, %s162
      %p166 = pneg %p160
      %p167 = scmp.eq.s32.totalorder %s20, 1
      %p168 = por %p166, %p167
      %p169 = scmp.ne.s32.totalorder %s161, %s164
      %p170 = scmp.eq.s32.totalorder %s20, 0
      %p171 = por %p169, %p170
      %p172 = scmp.ne.s32.totalorder %s161, %s164
      %p173 = scmp.eq.s32.totalorder %s25, 1
      %p174 = por %p172, %p173
      %p175 = scmp.ne.s32.totalorder %s164, %s165
      %p176 = scmp.eq.s32.totalorder %s25, 0
      %p177 = por %p175, %p176
      %p178 = scmp.ne.s32.totalorder %s164, %s165
      %p179 = scmp.eq.s32.totalorder %s26, 1
      %p180 = por %p178, %p179
      %p182 = scmp.ne.s32.totalorder %s165, %s181
      %p183 = scmp.eq.s32.totalorder %s26, 0
      %p184 = por %p182, %p183
      %p185 = scmp.le.s32.totalorder 1, %s20
      %p186 = scmp.lt.s32.totalorder %s20, 3
      %p187 = pnand %p185, %p186
      %p188 = pneg %p187
      // Predicated region
      $region9: #{tpu_custom_call.1} parent=5 // pred_check
        _
      $region10: #{tpu_custom_call.1} parent=5 // pred_check_branch
        %190 = sbr.rel (%p187) target = $region12
      $region11: #{tpu_custom_call.1} parent=5 // pred_region
        %s191 = ssub.s32 %s20, 1
        // Predicated region
        $region13: #{tpu_custom_call.1} parent=11 // pred_check
          %p192 = pneg %p67
        $region14: #{tpu_custom_call.1} parent=11 // pred_check_branch
          %194 = sbr.rel (%p192) target = $region16
        $region15: #{tpu_custom_call.1} parent=11 // pred_region
          %s196 = ssub.s32 512, 512
          %197 = vsyncadd [#allocation6], %s196
          %s198 = sshll.u32 [#allocation5], 4
          %s199 = int_to_ptr.vmem [resolvable:$true] %s198
          %204 = dma.hbm_to_vmem [thread:$0]  %s1, 512, %s199, [#allocation6], 128, 128, 8
        $region16: #{tpu_custom_call.1} parent=11 // pred_fallthru
          _
        // Predicated region
        $region17: #{tpu_custom_call.1} parent=11 // pred_check
          %p205 = pneg %p88
        $region18: #{tpu_custom_call.1} parent=11 // pred_check_branch
          %207 = sbr.rel (%p205) target = $region20
        $region19: #{tpu_custom_call.1} parent=11 // pred_region
          _
        $region20: #{tpu_custom_call.1} parent=11 // pred_fallthru
          _
        // Predicated region
        $region21: #{tpu_custom_call.1} parent=11 // pred_check
          %p208 = pneg %p109
        $region22: #{tpu_custom_call.1} parent=11 // pred_check_branch
          %210 = sbr.rel (%p208) target = $region24
        $region23: #{tpu_custom_call.1} parent=11 // pred_region
          %s212 = ssub.s32 512, 512
          %213 = vsyncadd [#allocation6], %s212
          %s214 = sshll.u32 [#allocation7], 4
          %s215 = int_to_ptr.vmem [resolvable:$true] %s214
          %220 = dma.hbm_to_vmem [thread:$0]  %s3, 512, %s215, [#allocation6], 128, 128, 8
        $region24: #{tpu_custom_call.1} parent=11 // pred_fallthru
          _
        // Predicated region
        $region25: #{tpu_custom_call.1} parent=11 // pred_check
          %p221 = pneg %p130
        $region26: #{tpu_custom_call.1} parent=11 // pred_check_branch
          %223 = sbr.rel (%p221) target = $region28
        $region27: #{tpu_custom_call.1} parent=11 // pred_region
          %s225 = ssub.s32 512, 512
          %226 = vsyncadd [#allocation9], %s225
          %s227 = sshll.u32 [#allocation8], 4
          %s228 = int_to_ptr.vmem [resolvable:$true] %s227
          %233 = dma.hbm_to_vmem [thread:$0]  %s4, 512, %s228, [#allocation9], 128, 128, 8
        $region28: #{tpu_custom_call.1} parent=11 // pred_fallthru
          _
        // Predicated region
        $region29: #{tpu_custom_call.1} parent=11 // pred_check
          %p234 = pneg %p151
        $region30: #{tpu_custom_call.1} parent=11 // pred_check_branch
          %236 = sbr.rel (%p234) target = $region32
        $region31: #{tpu_custom_call.1} parent=11 // pred_region
          _
        $region32: #{tpu_custom_call.1} parent=11 // pred_fallthru
          _
      $region12: #{tpu_custom_call.1} parent=5 // pred_fallthru
        _
      %p237 = scmp.lt.s32.totalorder %s20, 2
      // Predicated region
      $region33: #{tpu_custom_call.1} parent=5 // pred_check
        %p238 = pneg %p237
      $region34: #{tpu_custom_call.1} parent=5 // pred_check_branch
        %240 = sbr.rel (%p238) target = $region36
      $region35: #{tpu_custom_call.1} parent=5 // pred_region
        // Predicated region
        $region37: #{tpu_custom_call.1} parent=35 // pred_check
          %p241 = pneg %p40
        $region38: #{tpu_custom_call.1} parent=35 // pred_check_branch
          %243 = sbr.rel (%p241) target = $region40
        $region39: #{tpu_custom_call.1} parent=35 // pred_region
          %s244 = sand.u32 %s30, 1
          %s245 = scalar_lea.sflag [#allocation3], %s244
          %s246 = sand.u32 %s30, 1
          %s247 = smul.addr %s246, 256
          %s248 = scalar_lea.vmem [#allocation2], %s247
          %s249 = smul.u32 16, %s20
          %s251 = ssub.s32 4096, 4096
          %252 = vsyncadd %s245, %s251
          %s253 = smul.addr %s249, 2
          %s254 = smul.addr %s253, 128
          %s255 = scalar_lea.hbm %s0, %s254
          %s256 = sshll.u32 %s248, 4
          %s257 = int_to_ptr.vmem [resolvable:$true] %s256
          %262 = dma.hbm_to_vmem [thread:$0]  %s255, 4096, %s257, %s245, 128, 128, 8
        $region40: #{tpu_custom_call.1} parent=35 // pred_fallthru
          _
      $region36: #{tpu_custom_call.1} parent=5 // pred_fallthru
        _
      %p263 = scmp.le.s32.totalorder 1, %s20
      %p264 = scmp.lt.s32.totalorder %s20, 3
      %p265 = pnand %p263, %p264
      %p266 = pneg %p265
      // Predicated region
      $region41: #{tpu_custom_call.1} parent=5 // pred_check
        _
      $region42: #{tpu_custom_call.1} parent=5 // pred_check_branch
        %268 = sbr.rel (%p265) target = $region44
      $region43: #{tpu_custom_call.1} parent=5 // pred_region
        %s269 = ssub.s32 %s20, 1
        %s270 = sand.u32 %s33, 1
        %s271 = scalar_lea.sflag [#allocation3], %s270
        %s272 = sand.u32 %s33, 1
        %s273 = smul.addr %s272, 256
        %s274 = scalar_lea.vmem [#allocation2], %s273
        // Predicated region
        $region45: #{tpu_custom_call.1} parent=43 // pred_check
          %p275 = pneg %p46
        $region46: #{tpu_custom_call.1} parent=43 // pred_check_branch
          %277 = sbr.rel (%p275) target = $region48
        $region47: #{tpu_custom_call.1} parent=43 // pred_region
          %278 = dma.done %s271, 4096
        $region48: #{tpu_custom_call.1} parent=43 // pred_fallthru
          _
        // Predicated region
        $region49: #{tpu_custom_call.1} parent=43 // pred_check
          %p279 = pneg %p67
        $region50: #{tpu_custom_call.1} parent=43 // pred_check_branch
          %281 = sbr.rel (%p279) target = $region52
        $region51: #{tpu_custom_call.1} parent=43 // pred_region
          %282 = dma.done [#allocation6], 512
        $region52: #{tpu_custom_call.1} parent=43 // pred_fallthru
          _
        // Predicated region
        $region53: #{tpu_custom_call.1} parent=43 // pred_check
          %p283 = pneg %p109
        $region54: #{tpu_custom_call.1} parent=43 // pred_check_branch
          %285 = sbr.rel (%p283) target = $region56
        $region55: #{tpu_custom_call.1} parent=43 // pred_region
          %286 = dma.done [#allocation6], 512
        $region56: #{tpu_custom_call.1} parent=43 // pred_fallthru
          _
        // Predicated region
        $region57: #{tpu_custom_call.1} parent=43 // pred_check
          %p287 = pneg %p130
        $region58: #{tpu_custom_call.1} parent=43 // pred_check_branch
          %289 = sbr.rel (%p287) target = $region60
        $region59: #{tpu_custom_call.1} parent=43 // pred_region
          %290 = dma.done [#allocation9], 512
        $region60: #{tpu_custom_call.1} parent=43 // pred_fallthru
          _
        %s291 = sand.u32 %s33, 1
        %s292 = scalar_lea.sflag [#allocation3], %s291
        %s293 = sand.u32 %s33, 1
        %s294 = smul.addr %s293, 256
        %s295 = scalar_lea.vmem [#allocation2], %s294
        %p296 = pneg %p46
        %p297 = pneg %p43
        %p298 = pneg %p67
        %p299 = pneg %p64
        %p300 = pneg %p88
        %p301 = pneg %p85
        %p302 = pneg %p109
        %p303 = pneg %p106
        %p304 = pneg %p130
        %p305 = pneg %p127
        %p306 = pneg %p151
        %p307 = pneg %p148
        %p308 = pneg %p177
        %p309 = pneg %p174
        %s310 = sand.u32 %s164, 1
        %s311 = scalar_lea.sflag [#allocation4], %s310
        %s312 = sand.u32 %s164, 1
        %s313 = smul.addr %s312, 16
        %s314 = scalar_lea.vmem [#allocation10], %s313
        %s315 = smul.u32 16, %s25
        %s316 = smul.u32 2, %s25
        %v317 = vld [vmem:[#allocation5] sm:$0xff]
        %v318 = vld [vmem:[#allocation5 + $0x8] sm:$0xff]
        %v319 = vld [vmem:[#allocation5 + $0x10] sm:$0xff]
        %v320 = vld [vmem:[#allocation5 + $0x18] sm:$0xff]
        %v321 = vld [vmem:[#allocation7] sm:$0xff]
        %v322 = vld [vmem:[#allocation7 + $0x8] sm:$0xff]
        %v323 = vld [vmem:[#allocation7 + $0x10] sm:$0xff]
        %v324 = vld [vmem:[#allocation7 + $0x18] sm:$0xff]
        %v325 = vld [vmem:[%s2] sm:$0x1]
        %v326 = vld [vmem:[%s274] sm:$0x1]
        %v327 = vld [vmem:[%s274 + $0x10] sm:$0x1]
        %v328 = vld [vmem:[%s274 + $0x20] sm:$0x1]
        %v329 = vld [vmem:[%s274 + $0x30] sm:$0x1]
        %v330 = vld [vmem:[%s274 + $0x40] sm:$0x1]
        %v331 = vld [vmem:[%s274 + $0x50] sm:$0x1]
        %v332 = vld [vmem:[%s274 + $0x60] sm:$0x1]
        %v333 = vld [vmem:[%s274 + $0x70] sm:$0x1]
        %v334 = vld [vmem:[%s274 + $0x80] sm:$0x1]
        %v335 = vld [vmem:[%s274 + $0x90] sm:$0x1]
        %v336 = vld [vmem:[%s274 + $0xa0] sm:$0x1]
        %v337 = vld [vmem:[%s274 + $0xb0] sm:$0x1]
        %v338 = vld [vmem:[%s274 + $0xc0] sm:$0x1]
        %v339 = vld [vmem:[%s274 + $0xd0] sm:$0x1]
        %v340 = vld [vmem:[%s274 + $0xe0] sm:$0x1]
        %v341 = vld [vmem:[%s274 + $0xf0] sm:$0x1]
        %v342 = vld [vmem:[%s274 + $0x1] sm:$0x1]
        %v343 = vld [vmem:[%s274 + $0x11] sm:$0x1]
        %v344 = vld [vmem:[%s274 + $0x21] sm:$0x1]
        %v345 = vld [vmem:[%s274 + $0x31] sm:$0x1]
        %v346 = vld [vmem:[%s274 + $0x41] sm:$0x1]
        %v347 = vld [vmem:[%s274 + $0x51] sm:$0x1]
        %v348 = vld [vmem:[%s274 + $0x61] sm:$0x1]
        %v349 = vld [vmem:[%s274 + $0x71] sm:$0x1]
        %v350 = vld [vmem:[%s274 + $0x81] sm:$0x1]
        %v351 = vld [vmem:[%s274 + $0x91] sm:$0x1]
        %v352 = vld [vmem:[%s274 + $0xa1] sm:$0x1]
        %v353 = vld [vmem:[%s274 + $0xb1] sm:$0x1]
        %v354 = vld [vmem:[%s274 + $0xc1] sm:$0x1]
        %v355 = vld [vmem:[%s274 + $0xd1] sm:$0x1]
        %v356 = vld [vmem:[%s274 + $0xe1] sm:$0x1]
        %v357 = vld [vmem:[%s274 + $0xf1] sm:$0x1]
        %v358 = vld [vmem:[%s274 + $0x2] sm:$0x1]
        %v359 = vld [vmem:[%s274 + $0x12] sm:$0x1]
        %v360 = vld [vmem:[%s274 + $0x22] sm:$0x1]
        %v361 = vld [vmem:[%s274 + $0x32] sm:$0x1]
        %v362 = vld [vmem:[%s274 + $0x42] sm:$0x1]
        %v363 = vld [vmem:[%s274 + $0x52] sm:$0x1]
        %v364 = vld [vmem:[%s274 + $0x62] sm:$0x1]
        %v365 = vld [vmem:[%s274 + $0x72] sm:$0x1]
        %v366 = vld [vmem:[%s274 + $0x82] sm:$0x1]
        %v367 = vld [vmem:[%s274 + $0x92] sm:$0x1]
        %v368 = vld [vmem:[%s274 + $0xa2] sm:$0x1]
        %v369 = vld [vmem:[%s274 + $0xb2] sm:$0x1]
        %v370 = vld [vmem:[%s274 + $0xc2] sm:$0x1]
        %v371 = vld [vmem:[%s274 + $0xd2] sm:$0x1]
        %v372 = vld [vmem:[%s274 + $0xe2] sm:$0x1]
        %v373 = vld [vmem:[%s274 + $0xf2] sm:$0x1]
        %v374 = vld [vmem:[%s274 + $0x3] sm:$0x1]
        %v375 = vld [vmem:[%s274 + $0x13] sm:$0x1]
        %v376 = vld [vmem:[%s274 + $0x23] sm:$0x1]
        %v377 = vld [vmem:[%s274 + $0x33] sm:$0x1]
        %v378 = vld [vmem:[%s274 + $0x43] sm:$0x1]
        %v379 = vld [vmem:[%s274 + $0x53] sm:$0x1]
        %v380 = vld [vmem:[%s274 + $0x63] sm:$0x1]
        %v381 = vld [vmem:[%s274 + $0x73] sm:$0x1]
        %v382 = vld [vmem:[%s274 + $0x83] sm:$0x1]
        %v383 = vld [vmem:[%s274 + $0x93] sm:$0x1]
        %v384 = vld [vmem:[%s274 + $0xa3] sm:$0x1]
        %v385 = vld [vmem:[%s274 + $0xb3] sm:$0x1]
        %v386 = vld [vmem:[%s274 + $0xc3] sm:$0x1]
        %v387 = vld [vmem:[%s274 + $0xd3] sm:$0x1]
        %v388 = vld [vmem:[%s274 + $0xe3] sm:$0x1]
        %v389 = vld [vmem:[%s274 + $0xf3] sm:$0x1]
        %v406 = vrot.slane %v327, 7
        %vm407 = vcmask 1041409
        %v408 = vsel %vm407, %v406, %v326
        %v409 = vrot.slane %v328, 6
        %vm410 = vcmask 1042434
        %v411 = vsel %vm410, %v409, %v408
        %v412 = vrot.slane %v329, 5
        %vm413 = vcmask 1043459
        %v414 = vsel %vm413, %v412, %v411
        %v415 = vrot.slane %v330, 4
        %vm416 = vcmask 1044484
        %v417 = vsel %vm416, %v415, %v414
        %v418 = vrot.slane %v331, 3
        %vm419 = vcmask 1045509
        %v420 = vsel %vm419, %v418, %v417
        %v421 = vrot.slane %v332, 2
        %vm422 = vcmask 1046534
        %v423 = vsel %vm422, %v421, %v420
        %v424 = vrot.slane %v333, 1
        %vm425 = vcmask 1047559
        %v426 = vsel %vm425, %v424, %v423
        %v427 = vrot.slane %v335, 7
        %v428 = vsel %vm407, %v427, %v334
        %v429 = vrot.slane %v336, 6
        %v430 = vsel %vm410, %v429, %v428
        %v431 = vrot.slane %v337, 5
        %v432 = vsel %vm413, %v431, %v430
        %v433 = vrot.slane %v338, 4
        %v434 = vsel %vm416, %v433, %v432
        %v435 = vrot.slane %v339, 3
        %v436 = vsel %vm419, %v435, %v434
        %v437 = vrot.slane %v340, 2
        %v438 = vsel %vm422, %v437, %v436
        %v439 = vrot.slane %v341, 1
        %v440 = vsel %vm425, %v439, %v438
        %v457 = vrot.slane %v343, 7
        %v458 = vsel %vm407, %v457, %v342
        %v459 = vrot.slane %v344, 6
        %v460 = vsel %vm410, %v459, %v458
        %v461 = vrot.slane %v345, 5
        %v462 = vsel %vm413, %v461, %v460
        %v463 = vrot.slane %v346, 4
        %v464 = vsel %vm416, %v463, %v462
        %v465 = vrot.slane %v347, 3
        %v466 = vsel %vm419, %v465, %v464
        %v467 = vrot.slane %v348, 2
        %v468 = vsel %vm422, %v467, %v466
        %v469 = vrot.slane %v349, 1
        %v470 = vsel %vm425, %v469, %v468
        %v471 = vrot.slane %v351, 7
        %v472 = vsel %vm407, %v471, %v350
        %v473 = vrot.slane %v352, 6
        %v474 = vsel %vm410, %v473, %v472
        %v475 = vrot.slane %v353, 5
        %v476 = vsel %vm413, %v475, %v474
        %v477 = vrot.slane %v354, 4
        %v478 = vsel %vm416, %v477, %v476
        %v479 = vrot.slane %v355, 3
        %v480 = vsel %vm419, %v479, %v478
        %v481 = vrot.slane %v356, 2
        %v482 = vsel %vm422, %v481, %v480
        %v483 = vrot.slane %v357, 1
        %v484 = vsel %vm425, %v483, %v482
        %v501 = vrot.slane %v359, 7
        %v502 = vsel %vm407, %v501, %v358
        %v503 = vrot.slane %v360, 6
        %v504 = vsel %vm410, %v503, %v502
        %v505 = vrot.slane %v361, 5
        %v506 = vsel %vm413, %v505, %v504
        %v507 = vrot.slane %v362, 4
        %v508 = vsel %vm416, %v507, %v506
        %v509 = vrot.slane %v363, 3
        %v510 = vsel %vm419, %v509, %v508
        %v511 = vrot.slane %v364, 2
        %v512 = vsel %vm422, %v511, %v510
        %v513 = vrot.slane %v365, 1
        %v514 = vsel %vm425, %v513, %v512
        %v515 = vrot.slane %v367, 7
        %v516 = vsel %vm407, %v515, %v366
        %v517 = vrot.slane %v368, 6
        %v518 = vsel %vm410, %v517, %v516
        %v519 = vrot.slane %v369, 5
        %v520 = vsel %vm413, %v519, %v518
        %v521 = vrot.slane %v370, 4
        %v522 = vsel %vm416, %v521, %v520
        %v523 = vrot.slane %v371, 3
        %v524 = vsel %vm419, %v523, %v522
        %v525 = vrot.slane %v372, 2
        %v526 = vsel %vm422, %v525, %v524
        %v527 = vrot.slane %v373, 1
        %v528 = vsel %vm425, %v527, %v526
        %v545 = vrot.slane %v375, 7
        %v546 = vsel %vm407, %v545, %v374
        %v547 = vrot.slane %v376, 6
        %v548 = vsel %vm410, %v547, %v546
        %v549 = vrot.slane %v377, 5
        %v550 = vsel %vm413, %v549, %v548
        %v551 = vrot.slane %v378, 4
        %v552 = vsel %vm416, %v551, %v550
        %v553 = vrot.slane %v379, 3
        %v554 = vsel %vm419, %v553, %v552
        %v555 = vrot.slane %v380, 2
        %v556 = vsel %vm422, %v555, %v554
        %v557 = vrot.slane %v381, 1
        %v558 = vsel %vm425, %v557, %v556
        %v559 = vrot.slane %v383, 7
        %v560 = vsel %vm407, %v559, %v382
        %v561 = vrot.slane %v384, 6
        %v562 = vsel %vm410, %v561, %v560
        %v563 = vrot.slane %v385, 5
        %v564 = vsel %vm413, %v563, %v562
        %v565 = vrot.slane %v386, 4
        %v566 = vsel %vm416, %v565, %v564
        %v567 = vrot.slane %v387, 3
        %v568 = vsel %vm419, %v567, %v566
        %v569 = vrot.slane %v388, 2
        %v570 = vsel %vm422, %v569, %v568
        %v571 = vrot.slane %v389, 1
        %v572 = vsel %vm425, %v571, %v570
        %v574 = vlaneseq
        %v575 = vshrl.u32 %v574, 7
        %v576 = vsub.s32 0, %v575
        %v577 = vrot.slane %v325, %v576
        %vm579 = vcmask 261120
        %v580 = vsel %vm579, %v426, 0
        %v582 = vsel %vm579, %v440, 0
        %v584 = vsel %vm579, %v470, 0
        %v586 = vsel %vm579, %v484, 0
        %v588 = vsel %vm579, %v514, 0
        %v590 = vsel %vm579, %v528, 0
        %v592 = vsel %vm579, %v558, 0
        %v594 = vsel %vm579, %v572, 0
        %596 = vmatprep.subr.mxu0 0.0
        %597 = vmatpush1.msra.mxu0 %v317
        %598 = vmatprep.subr.mxu0 0.0
        %599 = vmatpush1.msra.mxu0 %v318
        %600 = vmatprep.subr.mxu0 0.0
        %601 = vmatpush1.msra.mxu0 %v319
        %602 = vmatprep.subr.mxu0 0.0
        %603 = vmatpush1.msra.mxu0 %v320
        %604 = vmatprep.subr.mxu0 0.0
        %605 = vmatpush1.msra.mxu0 0.0
        %606 = vmatprep.subr.mxu0 0.0
        %607 = vmatpush1.msra.mxu0 0.0
        %608 = vmatprep.subr.mxu0 0.0
        %609 = vmatpush1.msra.mxu0 0.0
        %610 = vmatprep.subr.mxu0 0.0
        %611 = vmatpush1.msra.mxu0 0.0
        %612 = vmatprep.subr.mxu0 0.0
        %613 = vmatpush1.msra.mxu0 0.0
        %614 = vmatprep.subr.mxu0 0.0
        %615 = vmatpush1.msra.mxu0 0.0
        %616 = vmatprep.subr.mxu0 0.0
        %617 = vmatpush1.msra.mxu0 0.0
        %618 = vmatprep.subr.mxu0 0.0
        %619 = vmatpush1.msra.mxu0 0.0
        %620 = vmatprep.subr.mxu0 0.0
        %621 = vmatpush1.msra.mxu0 0.0
        %622 = vmatprep.subr.mxu0 0.0
        %623 = vmatpush1.msra.mxu0 0.0
        %624 = vmatprep.subr.mxu0 0.0
        %625 = vmatpush1.msra.mxu0 0.0
        %626 = vmatprep.subr.mxu0 0.0
        %627 = vmatpush1.msra.mxu0 0.0
        %628 = vmatprep.subr.mxu0 0.0
        %629 = vmatpush1.msra.mxu0 0.0
        %630 = vmatprep.subr.mxu0 0.0
        %631 = vmatpush1.msra.mxu0 0.0
        %632 = vmatprep.subr.mxu0 0.0
        %633 = vmatpush1.msra.mxu0 0.0
        %634 = vmatprep.subr.mxu0 0.0
        %635 = vmatpush1.msra.mxu0 0.0
        %636 = vmatprep.subr.mxu0 0.0
        %637 = vmatpush1.msra.mxu0 0.0
        %638 = vmatprep.subr.mxu0 0.0
        %639 = vmatpush1.msra.mxu0 0.0
        %640 = vmatprep.subr.mxu0 0.0
        %641 = vmatpush1.msra.mxu0 0.0
        %642 = vmatprep.subr.mxu0 0.0
        %643 = vmatpush1.msra.mxu0 0.0
        %644 = vmatprep.subr.mxu0 0.0
        %645 = vmatpush1.msra.mxu0 0.0
        %646 = vmatprep.subr.mxu0 0.0
        %647 = vmatpush1.msra.mxu0 0.0
        %648 = vmatprep.subr.mxu0 0.0
        %649 = vmatpush1.msra.mxu0 0.0
        %650 = vmatprep.subr.mxu0 0.0
        %651 = vmatpush1.msra.mxu0 0.0
        %652 = vmatprep.subr.mxu0 0.0
        %653 = vmatpush1.msra.mxu0 0.0
        %654 = vmatprep.subr.mxu0 0.0
        %655 = vmatpush1.msra.mxu0 0.0
        %656 = vmatprep.subr.mxu0 0.0
        %657 = vmatpush1.msra.mxu0 0.0
        %658 = vmatprep.subr.mxu0 0.0
        %659 = vmatpush1.msra.mxu0 0.0
        %660 = vmatprep.mubr.f32.mxu0 0.0
        %661 = vmatmul.mubr.f32.gmra.mrb[0].mxu0 %v580
        %v662 = vpop.f32.mrb[0].mxu0
        %v663 = vadd.f32 %v577, %v662
        %v664 = vpop.f32.mrb[0].mxu0
        %665 = vmatprep.mubr.f32.mxu0 0.0
        %666 = vmatmul.mubr.f32.gmra.mrb[0].mxu0 %v582
        %v667 = vpop.f32.mrb[0].mxu0
        %v668 = vadd.f32 %v577, %v667
        %v669 = vpop.f32.mrb[0].mxu0
        %670 = vmatprep.mubr.f32.mxu0 0.0
        %671 = vmatmul.mubr.f32.gmra.mrb[0].mxu0 %v584
        %v672 = vpop.f32.mrb[0].mxu0
        %v673 = vadd.f32 %v577, %v672
        %v674 = vpop.f32.mrb[0].mxu0
        %675 = vmatprep.mubr.f32.mxu0 0.0
        %676 = vmatmul.mubr.f32.gmra.mrb[0].mxu0 %v586
        %v677 = vpop.f32.mrb[0].mxu0
        %v678 = vadd.f32 %v577, %v677
        %v679 = vpop.f32.mrb[0].mxu0
        %680 = vmatprep.mubr.f32.mxu0 0.0
        %681 = vmatmul.mubr.f32.gmra.mrb[0].mxu0 %v588
        %v682 = vpop.f32.mrb[0].mxu0
        %v683 = vadd.f32 %v577, %v682
        %v684 = vpop.f32.mrb[0].mxu0
        %685 = vmatprep.mubr.f32.mxu0 0.0
        %686 = vmatmul.mubr.f32.gmra.mrb[0].mxu0 %v590
        %v687 = vpop.f32.mrb[0].mxu0
        %v688 = vadd.f32 %v577, %v687
        %v689 = vpop.f32.mrb[0].mxu0
        %690 = vmatprep.mubr.f32.mxu0 0.0
        %691 = vmatmul.mubr.f32.gmra.mrb[0].mxu0 %v592
        %v692 = vpop.f32.mrb[0].mxu0
        %v693 = vadd.f32 %v577, %v692
        %v694 = vpop.f32.mrb[0].mxu0
        %695 = vmatprep.mubr.f32.mxu0 0.0
        %696 = vmatmul.mubr.f32.gmra.mrb[0].mxu0 %v594
        %v697 = vpop.f32.mrb[0].mxu0
        %v698 = vadd.f32 %v577, %v697
        %v699 = vpop.f32.mrb[0].mxu0
        %700 = vdwg.mxu0
        %v701 = vld [vmem:[%s274 + $0x4] sm:$0x1]
        %v702 = vld [vmem:[%s274 + $0x14] sm:$0x1]
        %v703 = vld [vmem:[%s274 + $0x24] sm:$0x1]
        %v704 = vld [vmem:[%s274 + $0x34] sm:$0x1]
        %v705 = vld [vmem:[%s274 + $0x44] sm:$0x1]
        %v706 = vld [vmem:[%s274 + $0x54] sm:$0x1]
        %v707 = vld [vmem:[%s274 + $0x64] sm:$0x1]
        %v708 = vld [vmem:[%s274 + $0x74] sm:$0x1]
        %v709 = vld [vmem:[%s274 + $0x84] sm:$0x1]
        %v710 = vld [vmem:[%s274 + $0x94] sm:$0x1]
        %v711 = vld [vmem:[%s274 + $0xa4] sm:$0x1]
        %v712 = vld [vmem:[%s274 + $0xb4] sm:$0x1]
        %v713 = vld [vmem:[%s274 + $0xc4] sm:$0x1]
        %v714 = vld [vmem:[%s274 + $0xd4] sm:$0x1]
        %v715 = vld [vmem:[%s274 + $0xe4] sm:$0x1]
        %v716 = vld [vmem:[%s274 + $0xf4] sm:$0x1]
        %v717 = vld [vmem:[%s274 + $0x5] sm:$0x1]
        %v718 = vld [vmem:[%s274 + $0x15] sm:$0x1]
        %v719 = vld [vmem:[%s274 + $0x25] sm:$0x1]
        %v720 = vld [vmem:[%s274 + $0x35] sm:$0x1]
        %v721 = vld [vmem:[%s274 + $0x45] sm:$0x1]
        %v722 = vld [vmem:[%s274 + $0x55] sm:$0x1]
        %v723 = vld [vmem:[%s274 + $0x65] sm:$0x1]
        %v724 = vld [vmem:[%s274 + $0x75] sm:$0x1]
        %v725 = vld [vmem:[%s274 + $0x85] sm:$0x1]
        %v726 = vld [vmem:[%s274 + $0x95] sm:$0x1]
        %v727 = vld [vmem:[%s274 + $0xa5] sm:$0x1]
        %v728 = vld [vmem:[%s274 + $0xb5] sm:$0x1]
        %v729 = vld [vmem:[%s274 + $0xc5] sm:$0x1]
        %v730 = vld [vmem:[%s274 + $0xd5] sm:$0x1]
        %v731 = vld [vmem:[%s274 + $0xe5] sm:$0x1]
        %v732 = vld [vmem:[%s274 + $0xf5] sm:$0x1]
        %v733 = vld [vmem:[%s274 + $0x6] sm:$0x1]
        %v734 = vld [vmem:[%s274 + $0x16] sm:$0x1]
        %v735 = vld [vmem:[%s274 + $0x26] sm:$0x1]
        %v736 = vld [vmem:[%s274 + $0x36] sm:$0x1]
        %v737 = vld [vmem:[%s274 + $0x46] sm:$0x1]
        %v738 = vld [vmem:[%s274 + $0x56] sm:$0x1]
        %v739 = vld [vmem:[%s274 + $0x66] sm:$0x1]
        %v740 = vld [vmem:[%s274 + $0x76] sm:$0x1]
        %v741 = vld [vmem:[%s274 + $0x86] sm:$0x1]
        %v742 = vld [vmem:[%s274 + $0x96] sm:$0x1]
        %v743 = vld [vmem:[%s274 + $0xa6] sm:$0x1]
        %v744 = vld [vmem:[%s274 + $0xb6] sm:$0x1]
        %v745 = vld [vmem:[%s274 + $0xc6] sm:$0x1]
        %v746 = vld [vmem:[%s274 + $0xd6] sm:$0x1]
        %v747 = vld [vmem:[%s274 + $0xe6] sm:$0x1]
        %v748 = vld [vmem:[%s274 + $0xf6] sm:$0x1]
        %v749 = vld [vmem:[%s274 + $0x7] sm:$0x1]
        %v750 = vld [vmem:[%s274 + $0x17] sm:$0x1]
        %v751 = vld [vmem:[%s274 + $0x27] sm:$0x1]
        %v752 = vld [vmem:[%s274 + $0x37] sm:$0x1]
        %v753 = vld [vmem:[%s274 + $0x47] sm:$0x1]
        %v754 = vld [vmem:[%s274 + $0x57] sm:$0x1]
        %v755 = vld [vmem:[%s274 + $0x67] sm:$0x1]
        %v756 = vld [vmem:[%s274 + $0x77] sm:$0x1]
        %v757 = vld [vmem:[%s274 + $0x87] sm:$0x1]
        %v758 = vld [vmem:[%s274 + $0x97] sm:$0x1]
        %v759 = vld [vmem:[%s274 + $0xa7] sm:$0x1]
        %v760 = vld [vmem:[%s274 + $0xb7] sm:$0x1]
        %v761 = vld [vmem:[%s274 + $0xc7] sm:$0x1]
        %v762 = vld [vmem:[%s274 + $0xd7] sm:$0x1]
        %v763 = vld [vmem:[%s274 + $0xe7] sm:$0x1]
        %v764 = vld [vmem:[%s274 + $0xf7] sm:$0x1]
        %v781 = vrot.slane %v702, 7
        %v782 = vsel %vm407, %v781, %v701
        %v783 = vrot.slane %v703, 6
        %v784 = vsel %vm410, %v783, %v782
        %v785 = vrot.slane %v704, 5
        %v786 = vsel %vm413, %v785, %v784
        %v787 = vrot.slane %v705, 4
        %v788 = vsel %vm416, %v787, %v786
        %v789 = vrot.slane %v706, 3
        %v790 = vsel %vm419, %v789, %v788
        %v791 = vrot.slane %v707, 2
        %v792 = vsel %vm422, %v791, %v790
        %v793 = vrot.slane %v708, 1
        %v794 = vsel %vm425, %v793, %v792
        %v795 = vrot.slane %v710, 7
        %v796 = vsel %vm407, %v795, %v709
        %v797 = vrot.slane %v711, 6
        %v798 = vsel %vm410, %v797, %v796
        %v799 = vrot.slane %v712, 5
        %v800 = vsel %vm413, %v799, %v798
        %v801 = vrot.slane %v713, 4
        %v802 = vsel %vm416, %v801, %v800
        %v803 = vrot.slane %v714, 3
        %v804 = vsel %vm419, %v803, %v802
        %v805 = vrot.slane %v715, 2
        %v806 = vsel %vm422, %v805, %v804
        %v807 = vrot.slane %v716, 1
        %v808 = vsel %vm425, %v807, %v806
        %v825 = vrot.slane %v718, 7
        %v826 = vsel %vm407, %v825, %v717
        %v827 = vrot.slane %v719, 6
        %v828 = vsel %vm410, %v827, %v826
        %v829 = vrot.slane %v720, 5
        %v830 = vsel %vm413, %v829, %v828
        %v831 = vrot.slane %v721, 4
        %v832 = vsel %vm416, %v831, %v830
        %v833 = vrot.slane %v722, 3
        %v834 = vsel %vm419, %v833, %v832
        %v835 = vrot.slane %v723, 2
        %v836 = vsel %vm422, %v835, %v834
        %v837 = vrot.slane %v724, 1
        %v838 = vsel %vm425, %v837, %v836
        %v839 = vrot.slane %v726, 7
        %v840 = vsel %vm407, %v839, %v725
        %v841 = vrot.slane %v727, 6
        %v842 = vsel %vm410, %v841, %v840
        %v843 = vrot.slane %v728, 5
        %v844 = vsel %vm413, %v843, %v842
        %v845 = vrot.slane %v729, 4
        %v846 = vsel %vm416, %v845, %v844
        %v847 = vrot.slane %v730, 3
        %v848 = vsel %vm419, %v847, %v846
        %v849 = vrot.slane %v731, 2
        %v850 = vsel %vm422, %v849, %v848
        %v851 = vrot.slane %v732, 1
        %v852 = vsel %vm425, %v851, %v850
        %v869 = vrot.slane %v734, 7
        %v870 = vsel %vm407, %v869, %v733
        %v871 = vrot.slane %v735, 6
        %v872 = vsel %vm410, %v871, %v870
        %v873 = vrot.slane %v736, 5
        %v874 = vsel %vm413, %v873, %v872
        %v875 = vrot.slane %v737, 4
        %v876 = vsel %vm416, %v875, %v874
        %v877 = vrot.slane %v738, 3
        %v878 = vsel %vm419, %v877, %v876
        %v879 = vrot.slane %v739, 2
        %v880 = vsel %vm422, %v879, %v878
        %v881 = vrot.slane %v740, 1
        %v882 = vsel %vm425, %v881, %v880
        %v883 = vrot.slane %v742, 7
        %v884 = vsel %vm407, %v883, %v741
        %v885 = vrot.slane %v743, 6
        %v886 = vsel %vm410, %v885, %v884
        %v887 = vrot.slane %v744, 5
        %v888 = vsel %vm413, %v887, %v886
        %v889 = vrot.slane %v745, 4
        %v890 = vsel %vm416, %v889, %v888
        %v891 = vrot.slane %v746, 3
        %v892 = vsel %vm419, %v891, %v890
        %v893 = vrot.slane %v747, 2
        %v894 = vsel %vm422, %v893, %v892
        %v895 = vrot.slane %v748, 1
        %v896 = vsel %vm425, %v895, %v894
        %v913 = vrot.slane %v750, 7
        %v914 = vsel %vm407, %v913, %v749
        %v915 = vrot.slane %v751, 6
        %v916 = vsel %vm410, %v915, %v914
        %v917 = vrot.slane %v752, 5
        %v918 = vsel %vm413, %v917, %v916
        %v919 = vrot.slane %v753, 4
        %v920 = vsel %vm416, %v919, %v918
        %v921 = vrot.slane %v754, 3
        %v922 = vsel %vm419, %v921, %v920
        %v923 = vrot.slane %v755, 2
        %v924 = vsel %vm422, %v923, %v922
        %v925 = vrot.slane %v756, 1
        %v926 = vsel %vm425, %v925, %v924
        %v927 = vrot.slane %v758, 7
        %v928 = vsel %vm407, %v927, %v757
        %v929 = vrot.slane %v759, 6
        %v930 = vsel %vm410, %v929, %v928
        %v931 = vrot.slane %v760, 5
        %v932 = vsel %vm413, %v931, %v930
        %v933 = vrot.slane %v761, 4
        %v934 = vsel %vm416, %v933, %v932
        %v935 = vrot.slane %v762, 3
        %v936 = vsel %vm419, %v935, %v934
        %v937 = vrot.slane %v763, 2
        %v938 = vsel %vm422, %v937, %v936
        %v939 = vrot.slane %v764, 1
        %v940 = vsel %vm425, %v939, %v938
        %v941 = vsel %vm579, %v794, 0
        %v943 = vsel %vm579, %v808, 0
        %v945 = vsel %vm579, %v838, 0
        %v947 = vsel %vm579, %v852, 0
        %v949 = vsel %vm579, %v882, 0
        %v951 = vsel %vm579, %v896, 0
        %v953 = vsel %vm579, %v926, 0
        %v955 = vsel %vm579, %v940, 0
        %957 = vmatprep.subr.mxu0 0.0
        %958 = vmatpush1.msra.mxu0 %v317
        %959 = vmatprep.subr.mxu0 0.0
        %960 = vmatpush1.msra.mxu0 %v318
        %961 = vmatprep.subr.mxu0 0.0
        %962 = vmatpush1.msra.mxu0 %v319
        %963 = vmatprep.subr.mxu0 0.0
        %964 = vmatpush1.msra.mxu0 %v320
        %965 = vmatprep.subr.mxu0 0.0
        %966 = vmatpush1.msra.mxu0 0.0
        %967 = vmatprep.subr.mxu0 0.0
        %968 = vmatpush1.msra.mxu0 0.0
        %969 = vmatprep.subr.mxu0 0.0
        %970 = vmatpush1.msra.mxu0 0.0
        %971 = vmatprep.subr.mxu0 0.0
        %972 = vmatpush1.msra.mxu0 0.0
        %973 = vmatprep.subr.mxu0 0.0
        %974 = vmatpush1.msra.mxu0 0.0
        %975 = vmatprep.subr.mxu0 0.0
        %976 = vmatpush1.msra.mxu0 0.0
        %977 = vmatprep.subr.mxu0 0.0
        %978 = vmatpush1.msra.mxu0 0.0
        %979 = vmatprep.subr.mxu0 0.0
        %980 = vmatpush1.msra.mxu0 0.0
        %981 = vmatprep.subr.mxu0 0.0
        %982 = vmatpush1.msra.mxu0 0.0
        %983 = vmatprep.subr.mxu0 0.0
        %984 = vmatpush1.msra.mxu0 0.0
        %985 = vmatprep.subr.mxu0 0.0
        %986 = vmatpush1.msra.mxu0 0.0
        %987 = vmatprep.subr.mxu0 0.0
        %988 = vmatpush1.msra.mxu0 0.0
        %989 = vmatprep.subr.mxu0 0.0
        %990 = vmatpush1.msra.mxu0 0.0
        %991 = vmatprep.subr.mxu0 0.0
        %992 = vmatpush1.msra.mxu0 0.0
        %993 = vmatprep.subr.mxu0 0.0
        %994 = vmatpush1.msra.mxu0 0.0
        %995 = vmatprep.subr.mxu0 0.0
        %996 = vmatpush1.msra.mxu0 0.0
        %997 = vmatprep.subr.mxu0 0.0
        %998 = vmatpush1.msra.mxu0 0.0
        %999 = vmatprep.subr.mxu0 0.0
        %1000 = vmatpush1.msra.mxu0 0.0
        %1001 = vmatprep.subr.mxu0 0.0
        %1002 = vmatpush1.msra.mxu0 0.0
        %1003 = vmatprep.subr.mxu0 0.0
        %1004 = vmatpush1.msra.mxu0 0.0
        %1005 = vmatprep.subr.mxu0 0.0
        %1006 = vmatpush1.msra.mxu0 0.0
        %1007 = vmatprep.subr.mxu0 0.0
        %1008 = vmatpush1.msra.mxu0 0.0
        %1009 = vmatprep.subr.mxu0 0.0
        %1010 = vmatpush1.msra.mxu0 0.0
        %1011 = vmatprep.subr.mxu0 0.0
        %1012 = vmatpush1.msra.mxu0 0.0
        %1013 = vmatprep.subr.mxu0 0.0
        %1014 = vmatpush1.msra.mxu0 0.0
        %1015 = vmatprep.subr.mxu0 0.0
        %1016 = vmatpush1.msra.mxu0 0.0
        %1017 = vmatprep.subr.mxu0 0.0
        %1018 = vmatpush1.msra.mxu0 0.0
        %1019 = vmatprep.subr.mxu0 0.0
        %1020 = vmatpush1.msra.mxu0 0.0
        %1021 = vmatprep.mubr.f32.mxu0 0.0
        %1022 = vmatmul.mubr.f32.gmra.mrb[0].mxu0 %v941
        %v1023 = vpop.f32.mrb[0].mxu0
        %v1024 = vadd.f32 %v577, %v1023
        %v1025 = vpop.f32.mrb[0].mxu0
        %1026 = vmatprep.mubr.f32.mxu0 0.0
        %1027 = vmatmul.mubr.f32.gmra.mrb[0].mxu0 %v943
        %v1028 = vpop.f32.mrb[0].mxu0
        %v1029 = vadd.f32 %v577, %v1028
        %v1030 = vpop.f32.mrb[0].mxu0
        %1031 = vmatprep.mubr.f32.mxu0 0.0
        %1032 = vmatmul.mubr.f32.gmra.mrb[0].mxu0 %v945
        %v1033 = vpop.f32.mrb[0].mxu0
        %v1034 = vadd.f32 %v577, %v1033
        %v1035 = vpop.f32.mrb[0].mxu0
        %1036 = vmatprep.mubr.f32.mxu0 0.0
        %1037 = vmatmul.mubr.f32.gmra.mrb[0].mxu0 %v947
        %v1038 = vpop.f32.mrb[0].mxu0
        %v1039 = vadd.f32 %v577, %v1038
        %v1040 = vpop.f32.mrb[0].mxu0
        %1041 = vmatprep.mubr.f32.mxu0 0.0
        %1042 = vmatmul.mubr.f32.gmra.mrb[0].mxu0 %v949
        %v1043 = vpop.f32.mrb[0].mxu0
        %v1044 = vadd.f32 %v577, %v1043
        %v1045 = vpop.f32.mrb[0].mxu0
        %1046 = vmatprep.mubr.f32.mxu0 0.0
        %1047 = vmatmul.mubr.f32.gmra.mrb[0].mxu0 %v951
        %v1048 = vpop.f32.mrb[0].mxu0
        %v1049 = vadd.f32 %v577, %v1048
        %v1050 = vpop.f32.mrb[0].mxu0
        %1051 = vmatprep.mubr.f32.mxu0 0.0
        %1052 = vmatmul.mubr.f32.gmra.mrb[0].mxu0 %v953
        %v1053 = vpop.f32.mrb[0].mxu0
        %v1054 = vadd.f32 %v577, %v1053
        %v1055 = vpop.f32.mrb[0].mxu0
        %1056 = vmatprep.mubr.f32.mxu0 0.0
        %1057 = vmatmul.mubr.f32.gmra.mrb[0].mxu0 %v955
        %v1058 = vpop.f32.mrb[0].mxu0
        %v1059 = vadd.f32 %v577, %v1058
        %v1060 = vpop.f32.mrb[0].mxu0
        %1061 = vdwg.mxu0
        %v1062 = vld [vmem:[%s274 + $0x8] sm:$0x1]
        %v1063 = vld [vmem:[%s274 + $0x18] sm:$0x1]
        %v1064 = vld [vmem:[%s274 + $0x28] sm:$0x1]
        %v1065 = vld [vmem:[%s274 + $0x38] sm:$0x1]
        %v1066 = vld [vmem:[%s274 + $0x48] sm:$0x1]
        %v1067 = vld [vmem:[%s274 + $0x58] sm:$0x1]
        %v1068 = vld [vmem:[%s274 + $0x68] sm:$0x1]
        %v1069 = vld [vmem:[%s274 + $0x78] sm:$0x1]
        %v1070 = vld [vmem:[%s274 + $0x88] sm:$0x1]
        %v1071 = vld [vmem:[%s274 + $0x98] sm:$0x1]
        %v1072 = vld [vmem:[%s274 + $0xa8] sm:$0x1]
        %v1073 = vld [vmem:[%s274 + $0xb8] sm:$0x1]
        %v1074 = vld [vmem:[%s274 + $0xc8] sm:$0x1]
        %v1075 = vld [vmem:[%s274 + $0xd8] sm:$0x1]
        %v1076 = vld [vmem:[%s274 + $0xe8] sm:$0x1]
        %v1077 = vld [vmem:[%s274 + $0xf8] sm:$0x1]
        %v1078 = vld [vmem:[%s274 + $0x9] sm:$0x1]
        %v1079 = vld [vmem:[%s274 + $0x19] sm:$0x1]
        %v1080 = vld [vmem:[%s274 + $0x29] sm:$0x1]
        %v1081 = vld [vmem:[%s274 + $0x39] sm:$0x1]
        %v1082 = vld [vmem:[%s274 + $0x49] sm:$0x1]
        %v1083 = vld [vmem:[%s274 + $0x59] sm:$0x1]
        %v1084 = vld [vmem:[%s274 + $0x69] sm:$0x1]
        %v1085 = vld [vmem:[%s274 + $0x79] sm:$0x1]
        %v1086 = vld [vmem:[%s274 + $0x89] sm:$0x1]
        %v1087 = vld [vmem:[%s274 + $0x99] sm:$0x1]
        %v1088 = vld [vmem:[%s274 + $0xa9] sm:$0x1]
        %v1089 = vld [vmem:[%s274 + $0xb9] sm:$0x1]
        %v1090 = vld [vmem:[%s274 + $0xc9] sm:$0x1]
        %v1091 = vld [vmem:[%s274 + $0xd9] sm:$0x1]
        %v1092 = vld [vmem:[%s274 + $0xe9] sm:$0x1]
        %v1093 = vld [vmem:[%s274 + $0xf9] sm:$0x1]
        %v1094 = vld [vmem:[%s274 + $0xa] sm:$0x1]
        %v1095 = vld [vmem:[%s274 + $0x1a] sm:$0x1]
        %v1096 = vld [vmem:[%s274 + $0x2a] sm:$0x1]
        %v1097 = vld [vmem:[%s274 + $0x3a] sm:$0x1]
        %v1098 = vld [vmem:[%s274 + $0x4a] sm:$0x1]
        %v1099 = vld [vmem:[%s274 + $0x5a] sm:$0x1]
        %v1100 = vld [vmem:[%s274 + $0x6a] sm:$0x1]
        %v1101 = vld [vmem:[%s274 + $0x7a] sm:$0x1]
        %v1102 = vld [vmem:[%s274 + $0x8a] sm:$0x1]
        %v1103 = vld [vmem:[%s274 + $0x9a] sm:$0x1]
        %v1104 = vld [vmem:[%s274 + $0xaa] sm:$0x1]
        %v1105 = vld [vmem:[%s274 + $0xba] sm:$0x1]
        %v1106 = vld [vmem:[%s274 + $0xca] sm:$0x1]
        %v1107 = vld [vmem:[%s274 + $0xda] sm:$0x1]
        %v1108 = vld [vmem:[%s274 + $0xea] sm:$0x1]
        %v1109 = vld [vmem:[%s274 + $0xfa] sm:$0x1]
        %v1110 = vld [vmem:[%s274 + $0xb] sm:$0x1]
        %v1111 = vld [vmem:[%s274 + $0x1b] sm:$0x1]
        %v1112 = vld [vmem:[%s274 + $0x2b] sm:$0x1]
        %v1113 = vld [vmem:[%s274 + $0x3b] sm:$0x1]
        %v1114 = vld [vmem:[%s274 + $0x4b] sm:$0x1]
        %v1115 = vld [vmem:[%s274 + $0x5b] sm:$0x1]
        %v1116 = vld [vmem:[%s274 + $0x6b] sm:$0x1]
        %v1117 = vld [vmem:[%s274 + $0x7b] sm:$0x1]
        %v1118 = vld [vmem:[%s274 + $0x8b] sm:$0x1]
        %v1119 = vld [vmem:[%s274 + $0x9b] sm:$0x1]
        %v1120 = vld [vmem:[%s274 + $0xab] sm:$0x1]
        %v1121 = vld [vmem:[%s274 + $0xbb] sm:$0x1]
        %v1122 = vld [vmem:[%s274 + $0xcb] sm:$0x1]
        %v1123 = vld [vmem:[%s274 + $0xdb] sm:$0x1]
        %v1124 = vld [vmem:[%s274 + $0xeb] sm:$0x1]
        %v1125 = vld [vmem:[%s274 + $0xfb] sm:$0x1]
        %v1142 = vrot.slane %v1063, 7
        %v1143 = vsel %vm407, %v1142, %v1062
        %v1144 = vrot.slane %v1064, 6
        %v1145 = vsel %vm410, %v1144, %v1143
        %v1146 = vrot.slane %v1065, 5
        %v1147 = vsel %vm413, %v1146, %v1145
        %v1148 = vrot.slane %v1066, 4
        %v1149 = vsel %vm416, %v1148, %v1147
        %v1150 = vrot.slane %v1067, 3
        %v1151 = vsel %vm419, %v1150, %v1149
        %v1152 = vrot.slane %v1068, 2
        %v1153 = vsel %vm422, %v1152, %v1151
        %v1154 = vrot.slane %v1069, 1
        %v1155 = vsel %vm425, %v1154, %v1153
        %v1156 = vrot.slane %v1071, 7
        %v1157 = vsel %vm407, %v1156, %v1070
        %v1158 = vrot.slane %v1072, 6
        %v1159 = vsel %vm410, %v1158, %v1157
        %v1160 = vrot.slane %v1073, 5
        %v1161 = vsel %vm413, %v1160, %v1159
        %v1162 = vrot.slane %v1074, 4
        %v1163 = vsel %vm416, %v1162, %v1161
        %v1164 = vrot.slane %v1075, 3
        %v1165 = vsel %vm419, %v1164, %v1163
        %v1166 = vrot.slane %v1076, 2
        %v1167 = vsel %vm422, %v1166, %v1165
        %v1168 = vrot.slane %v1077, 1
        %v1169 = vsel %vm425, %v1168, %v1167
        %v1186 = vrot.slane %v1079, 7
        %v1187 = vsel %vm407, %v1186, %v1078
        %v1188 = vrot.slane %v1080, 6
        %v1189 = vsel %vm410, %v1188, %v1187
        %v1190 = vrot.slane %v1081, 5
        %v1191 = vsel %vm413, %v1190, %v1189
        %v1192 = vrot.slane %v1082, 4
        %v1193 = vsel %vm416, %v1192, %v1191
        %v1194 = vrot.slane %v1083, 3
        %v1195 = vsel %vm419, %v1194, %v1193
        %v1196 = vrot.slane %v1084, 2
        %v1197 = vsel %vm422, %v1196, %v1195
        %v1198 = vrot.slane %v1085, 1
        %v1199 = vsel %vm425, %v1198, %v1197
        %v1200 = vrot.slane %v1087, 7
        %v1201 = vsel %vm407, %v1200, %v1086
        %v1202 = vrot.slane %v1088, 6
        %v1203 = vsel %vm410, %v1202, %v1201
        %v1204 = vrot.slane %v1089, 5
        %v1205 = vsel %vm413, %v1204, %v1203
        %v1206 = vrot.slane %v1090, 4
        %v1207 = vsel %vm416, %v1206, %v1205
        %v1208 = vrot.slane %v1091, 3
        %v1209 = vsel %vm419, %v1208, %v1207
        %v1210 = vrot.slane %v1092, 2
        %v1211 = vsel %vm422, %v1210, %v1209
        %v1212 = vrot.slane %v1093, 1
        %v1213 = vsel %vm425, %v1212, %v1211
        %v1230 = vrot.slane %v1095, 7
        %v1231 = vsel %vm407, %v1230, %v1094
        %v1232 = vrot.slane %v1096, 6
        %v1233 = vsel %vm410, %v1232, %v1231
        %v1234 = vrot.slane %v1097, 5
        %v1235 = vsel %vm413, %v1234, %v1233
        %v1236 = vrot.slane %v1098, 4
        %v1237 = vsel %vm416, %v1236, %v1235
        %v1238 = vrot.slane %v1099, 3
        %v1239 = vsel %vm419, %v1238, %v1237
        %v1240 = vrot.slane %v1100, 2
        %v1241 = vsel %vm422, %v1240, %v1239
        %v1242 = vrot.slane %v1101, 1
        %v1243 = vsel %vm425, %v1242, %v1241
        %v1244 = vrot.slane %v1103, 7
        %v1245 = vsel %vm407, %v1244, %v1102
        %v1246 = vrot.slane %v1104, 6
        %v1247 = vsel %vm410, %v1246, %v1245
        %v1248 = vrot.slane %v1105, 5
        %v1249 = vsel %vm413, %v1248, %v1247
        %v1250 = vrot.slane %v1106, 4
        %v1251 = vsel %vm416, %v1250, %v1249
        %v1252 = vrot.slane %v1107, 3
        %v1253 = vsel %vm419, %v1252, %v1251
        %v1254 = vrot.slane %v1108, 2
        %v1255 = vsel %vm422, %v1254, %v1253
        %v1256 = vrot.slane %v1109, 1
        %v1257 = vsel %vm425, %v1256, %v1255
        %v1274 = vrot.slane %v1111, 7
        %v1275 = vsel %vm407, %v1274, %v1110
        %v1276 = vrot.slane %v1112, 6
        %v1277 = vsel %vm410, %v1276, %v1275
        %v1278 = vrot.slane %v1113, 5
        %v1279 = vsel %vm413, %v1278, %v1277
        %v1280 = vrot.slane %v1114, 4
        %v1281 = vsel %vm416, %v1280, %v1279
        %v1282 = vrot.slane %v1115, 3
        %v1283 = vsel %vm419, %v1282, %v1281
        %v1284 = vrot.slane %v1116, 2
        %v1285 = vsel %vm422, %v1284, %v1283
        %v1286 = vrot.slane %v1117, 1
        %v1287 = vsel %vm425, %v1286, %v1285
        %v1288 = vrot.slane %v1119, 7
        %v1289 = vsel %vm407, %v1288, %v1118
        %v1290 = vrot.slane %v1120, 6
        %v1291 = vsel %vm410, %v1290, %v1289
        %v1292 = vrot.slane %v1121, 5
        %v1293 = vsel %vm413, %v1292, %v1291
        %v1294 = vrot.slane %v1122, 4
        %v1295 = vsel %vm416, %v1294, %v1293
        %v1296 = vrot.slane %v1123, 3
        %v1297 = vsel %vm419, %v1296, %v1295
        %v1298 = vrot.slane %v1124, 2
        %v1299 = vsel %vm422, %v1298, %v1297
        %v1300 = vrot.slane %v1125, 1
        %v1301 = vsel %vm425, %v1300, %v1299
        %v1302 = vsel %vm579, %v1155, 0
        %v1304 = vsel %vm579, %v1169, 0
        %v1306 = vsel %vm579, %v1199, 0
        %v1308 = vsel %vm579, %v1213, 0
        %v1310 = vsel %vm579, %v1243, 0
        %v1312 = vsel %vm579, %v1257, 0
        %v1314 = vsel %vm579, %v1287, 0
        %v1316 = vsel %vm579, %v1301, 0
        %1318 = vmatprep.subr.mxu0 0.0
        %1319 = vmatpush1.msra.mxu0 %v317
        %1320 = vmatprep.subr.mxu0 0.0
        %1321 = vmatpush1.msra.mxu0 %v318
        %1322 = vmatprep.subr.mxu0 0.0
        %1323 = vmatpush1.msra.mxu0 %v319
        %1324 = vmatprep.subr.mxu0 0.0
        %1325 = vmatpush1.msra.mxu0 %v320
        %1326 = vmatprep.subr.mxu0 0.0
        %1327 = vmatpush1.msra.mxu0 0.0
        %1328 = vmatprep.subr.mxu0 0.0
        %1329 = vmatpush1.msra.mxu0 0.0
        %1330 = vmatprep.subr.mxu0 0.0
        %1331 = vmatpush1.msra.mxu0 0.0
        %1332 = vmatprep.subr.mxu0 0.0
        %1333 = vmatpush1.msra.mxu0 0.0
        %1334 = vmatprep.subr.mxu0 0.0
        %1335 = vmatpush1.msra.mxu0 0.0
        %1336 = vmatprep.subr.mxu0 0.0
        %1337 = vmatpush1.msra.mxu0 0.0
        %1338 = vmatprep.subr.mxu0 0.0
        %1339 = vmatpush1.msra.mxu0 0.0
        %1340 = vmatprep.subr.mxu0 0.0
        %1341 = vmatpush1.msra.mxu0 0.0
        %1342 = vmatprep.subr.mxu0 0.0
        %1343 = vmatpush1.msra.mxu0 0.0
        %1344 = vmatprep.subr.mxu0 0.0
        %1345 = vmatpush1.msra.mxu0 0.0
        %1346 = vmatprep.subr.mxu0 0.0
        %1347 = vmatpush1.msra.mxu0 0.0
        %1348 = vmatprep.subr.mxu0 0.0
        %1349 = vmatpush1.msra.mxu0 0.0
        %1350 = vmatprep.subr.mxu0 0.0
        %1351 = vmatpush1.msra.mxu0 0.0
        %1352 = vmatprep.subr.mxu0 0.0
        %1353 = vmatpush1.msra.mxu0 0.0
        %1354 = vmatprep.subr.mxu0 0.0
        %1355 = vmatpush1.msra.mxu0 0.0
        %1356 = vmatprep.subr.mxu0 0.0
        %1357 = vmatpush1.msra.mxu0 0.0
        %1358 = vmatprep.subr.mxu0 0.0
        %1359 = vmatpush1.msra.mxu0 0.0
        %1360 = vmatprep.subr.mxu0 0.0
        %1361 = vmatpush1.msra.mxu0 0.0
        %1362 = vmatprep.subr.mxu0 0.0
        %1363 = vmatpush1.msra.mxu0 0.0
        %1364 = vmatprep.subr.mxu0 0.0
        %1365 = vmatpush1.msra.mxu0 0.0
        %1366 = vmatprep.subr.mxu0 0.0
        %1367 = vmatpush1.msra.mxu0 0.0
        %1368 = vmatprep.subr.mxu0 0.0
        %1369 = vmatpush1.msra.mxu0 0.0
        %1370 = vmatprep.subr.mxu0 0.0
        %1371 = vmatpush1.msra.mxu0 0.0
        %1372 = vmatprep.subr.mxu0 0.0
        %1373 = vmatpush1.msra.mxu0 0.0
        %1374 = vmatprep.subr.mxu0 0.0
        %1375 = vmatpush1.msra.mxu0 0.0
        %1376 = vmatprep.subr.mxu0 0.0
        %1377 = vmatpush1.msra.mxu0 0.0
        %1378 = vmatprep.subr.mxu0 0.0
        %1379 = vmatpush1.msra.mxu0 0.0
        %1380 = vmatprep.subr.mxu0 0.0
        %1381 = vmatpush1.msra.mxu0 0.0
        %1382 = vmatprep.mubr.f32.mxu0 0.0
        %1383 = vmatmul.mubr.f32.gmra.mrb[0].mxu0 %v1302
        %v1384 = vpop.f32.mrb[0].mxu0
        %v1385 = vadd.f32 %v577, %v1384
        %v1386 = vpop.f32.mrb[0].mxu0
        %1387 = vmatprep.mubr.f32.mxu0 0.0
        %1388 = vmatmul.mubr.f32.gmra.mrb[0].mxu0 %v1304
        %v1389 = vpop.f32.mrb[0].mxu0
        %v1390 = vadd.f32 %v577, %v1389
        %v1391 = vpop.f32.mrb[0].mxu0
        %1392 = vmatprep.mubr.f32.mxu0 0.0
        %1393 = vmatmul.mubr.f32.gmra.mrb[0].mxu0 %v1306
        %v1394 = vpop.f32.mrb[0].mxu0
        %v1395 = vadd.f32 %v577, %v1394
        %v1396 = vpop.f32.mrb[0].mxu0
        %1397 = vmatprep.mubr.f32.mxu0 0.0
        %1398 = vmatmul.mubr.f32.gmra.mrb[0].mxu0 %v1308
        %v1399 = vpop.f32.mrb[0].mxu0
        %v1400 = vadd.f32 %v577, %v1399
        %v1401 = vpop.f32.mrb[0].mxu0
        %1402 = vmatprep.mubr.f32.mxu0 0.0
        %1403 = vmatmul.mubr.f32.gmra.mrb[0].mxu0 %v1310
        %v1404 = vpop.f32.mrb[0].mxu0
        %v1405 = vadd.f32 %v577, %v1404
        %v1406 = vpop.f32.mrb[0].mxu0
        %1407 = vmatprep.mubr.f32.mxu0 0.0
        %1408 = vmatmul.mubr.f32.gmra.mrb[0].mxu0 %v1312
        %v1409 = vpop.f32.mrb[0].mxu0
        %v1410 = vadd.f32 %v577, %v1409
        %v1411 = vpop.f32.mrb[0].mxu0
        %1412 = vmatprep.mubr.f32.mxu0 0.0
        %1413 = vmatmul.mubr.f32.gmra.mrb[0].mxu0 %v1314
        %v1414 = vpop.f32.mrb[0].mxu0
        %v1415 = vadd.f32 %v577, %v1414
        %v1416 = vpop.f32.mrb[0].mxu0
        %1417 = vmatprep.mubr.f32.mxu0 0.0
        %1418 = vmatmul.mubr.f32.gmra.mrb[0].mxu0 %v1316
        %v1419 = vpop.f32.mrb[0].mxu0
        %v1420 = vadd.f32 %v577, %v1419
        %v1421 = vpop.f32.mrb[0].mxu0
        %1422 = vdwg.mxu0
        %v1423 = vld [vmem:[%s274 + $0xc] sm:$0x1]
        %v1424 = vld [vmem:[%s274 + $0x1c] sm:$0x1]
        %v1425 = vld [vmem:[%s274 + $0x2c] sm:$0x1]
        %v1426 = vld [vmem:[%s274 + $0x3c] sm:$0x1]
        %v1427 = vld [vmem:[%s274 + $0x4c] sm:$0x1]
        %v1428 = vld [vmem:[%s274 + $0x5c] sm:$0x1]
        %v1429 = vld [vmem:[%s274 + $0x6c] sm:$0x1]
        %v1430 = vld [vmem:[%s274 + $0x7c] sm:$0x1]
        %v1431 = vld [vmem:[%s274 + $0x8c] sm:$0x1]
        %v1432 = vld [vmem:[%s274 + $0x9c] sm:$0x1]
        %v1433 = vld [vmem:[%s274 + $0xac] sm:$0x1]
        %v1434 = vld [vmem:[%s274 + $0xbc] sm:$0x1]
        %v1435 = vld [vmem:[%s274 + $0xcc] sm:$0x1]
        %v1436 = vld [vmem:[%s274 + $0xdc] sm:$0x1]
        %v1437 = vld [vmem:[%s274 + $0xec] sm:$0x1]
        %v1438 = vld [vmem:[%s274 + $0xfc] sm:$0x1]
        %v1439 = vld [vmem:[%s274 + $0xd] sm:$0x1]
        %v1440 = vld [vmem:[%s274 + $0x1d] sm:$0x1]
        %v1441 = vld [vmem:[%s274 + $0x2d] sm:$0x1]
        %v1442 = vld [vmem:[%s274 + $0x3d] sm:$0x1]
        %v1443 = vld [vmem:[%s274 + $0x4d] sm:$0x1]
        %v1444 = vld [vmem:[%s274 + $0x5d] sm:$0x1]
        %v1445 = vld [vmem:[%s274 + $0x6d] sm:$0x1]
        %v1446 = vld [vmem:[%s274 + $0x7d] sm:$0x1]
        %v1447 = vld [vmem:[%s274 + $0x8d] sm:$0x1]
        %v1448 = vld [vmem:[%s274 + $0x9d] sm:$0x1]
        %v1449 = vld [vmem:[%s274 + $0xad] sm:$0x1]
        %v1450 = vld [vmem:[%s274 + $0xbd] sm:$0x1]
        %v1451 = vld [vmem:[%s274 + $0xcd] sm:$0x1]
        %v1452 = vld [vmem:[%s274 + $0xdd] sm:$0x1]
        %v1453 = vld [vmem:[%s274 + $0xed] sm:$0x1]
        %v1454 = vld [vmem:[%s274 + $0xfd] sm:$0x1]
        %v1455 = vld [vmem:[%s274 + $0xe] sm:$0x1]
        %v1456 = vld [vmem:[%s274 + $0x1e] sm:$0x1]
        %v1457 = vld [vmem:[%s274 + $0x2e] sm:$0x1]
        %v1458 = vld [vmem:[%s274 + $0x3e] sm:$0x1]
        %v1459 = vld [vmem:[%s274 + $0x4e] sm:$0x1]
        %v1460 = vld [vmem:[%s274 + $0x5e] sm:$0x1]
        %v1461 = vld [vmem:[%s274 + $0x6e] sm:$0x1]
        %v1462 = vld [vmem:[%s274 + $0x7e] sm:$0x1]
        %v1463 = vld [vmem:[%s274 + $0x8e] sm:$0x1]
        %v1464 = vld [vmem:[%s274 + $0x9e] sm:$0x1]
        %v1465 = vld [vmem:[%s274 + $0xae] sm:$0x1]
        %v1466 = vld [vmem:[%s274 + $0xbe] sm:$0x1]
        %v1467 = vld [vmem:[%s274 + $0xce] sm:$0x1]
        %v1468 = vld [vmem:[%s274 + $0xde] sm:$0x1]
        %v1469 = vld [vmem:[%s274 + $0xee] sm:$0x1]
        %v1470 = vld [vmem:[%s274 + $0xfe] sm:$0x1]
        %v1471 = vld [vmem:[%s274 + $0xf] sm:$0x1]
        %v1472 = vld [vmem:[%s274 + $0x1f] sm:$0x1]
        %v1473 = vld [vmem:[%s274 + $0x2f] sm:$0x1]
        %v1474 = vld [vmem:[%s274 + $0x3f] sm:$0x1]
        %v1475 = vld [vmem:[%s274 + $0x4f] sm:$0x1]
        %v1476 = vld [vmem:[%s274 + $0x5f] sm:$0x1]
        %v1477 = vld [vmem:[%s274 + $0x6f] sm:$0x1]
        %v1478 = vld [vmem:[%s274 + $0x7f] sm:$0x1]
        %v1479 = vld [vmem:[%s274 + $0x8f] sm:$0x1]
        %v1480 = vld [vmem:[%s274 + $0x9f] sm:$0x1]
        %v1481 = vld [vmem:[%s274 + $0xaf] sm:$0x1]
        %v1482 = vld [vmem:[%s274 + $0xbf] sm:$0x1]
        %v1483 = vld [vmem:[%s274 + $0xcf] sm:$0x1]
        %v1484 = vld [vmem:[%s274 + $0xdf] sm:$0x1]
        %v1485 = vld [vmem:[%s274 + $0xef] sm:$0x1]
        %v1486 = vld [vmem:[%s274 + $0xff] sm:$0x1]
        %v1503 = vrot.slane %v1424, 7
        %v1504 = vsel %vm407, %v1503, %v1423
        %v1505 = vrot.slane %v1425, 6
        %v1506 = vsel %vm410, %v1505, %v1504
        %v1507 = vrot.slane %v1426, 5
        %v1508 = vsel %vm413, %v1507, %v1506
        %v1509 = vrot.slane %v1427, 4
        %v1510 = vsel %vm416, %v1509, %v1508
        %v1511 = vrot.slane %v1428, 3
        %v1512 = vsel %vm419, %v1511, %v1510
        %v1513 = vrot.slane %v1429, 2
        %v1514 = vsel %vm422, %v1513, %v1512
        %v1515 = vrot.slane %v1430, 1
        %v1516 = vsel %vm425, %v1515, %v1514
        %v1517 = vrot.slane %v1432, 7
        %v1518 = vsel %vm407, %v1517, %v1431
        %v1519 = vrot.slane %v1433, 6
        %v1520 = vsel %vm410, %v1519, %v1518
        %v1521 = vrot.slane %v1434, 5
        %v1522 = vsel %vm413, %v1521, %v1520
        %v1523 = vrot.slane %v1435, 4
        %v1524 = vsel %vm416, %v1523, %v1522
        %v1525 = vrot.slane %v1436, 3
        %v1526 = vsel %vm419, %v1525, %v1524
        %v1527 = vrot.slane %v1437, 2
        %v1528 = vsel %vm422, %v1527, %v1526
        %v1529 = vrot.slane %v1438, 1
        %v1530 = vsel %vm425, %v1529, %v1528
        %v1547 = vrot.slane %v1440, 7
        %v1548 = vsel %vm407, %v1547, %v1439
        %v1549 = vrot.slane %v1441, 6
        %v1550 = vsel %vm410, %v1549, %v1548
        %v1551 = vrot.slane %v1442, 5
        %v1552 = vsel %vm413, %v1551, %v1550
        %v1553 = vrot.slane %v1443, 4
        %v1554 = vsel %vm416, %v1553, %v1552
        %v1555 = vrot.slane %v1444, 3
        %v1556 = vsel %vm419, %v1555, %v1554
        %v1557 = vrot.slane %v1445, 2
        %v1558 = vsel %vm422, %v1557, %v1556
        %v1559 = vrot.slane %v1446, 1
        %v1560 = vsel %vm425, %v1559, %v1558
        %v1561 = vrot.slane %v1448, 7
        %v1562 = vsel %vm407, %v1561, %v1447
        %v1563 = vrot.slane %v1449, 6
        %v1564 = vsel %vm410, %v1563, %v1562
        %v1565 = vrot.slane %v1450, 5
        %v1566 = vsel %vm413, %v1565, %v1564
        %v1567 = vrot.slane %v1451, 4
        %v1568 = vsel %vm416, %v1567, %v1566
        %v1569 = vrot.slane %v1452, 3
        %v1570 = vsel %vm419, %v1569, %v1568
        %v1571 = vrot.slane %v1453, 2
        %v1572 = vsel %vm422, %v1571, %v1570
        %v1573 = vrot.slane %v1454, 1
        %v1574 = vsel %vm425, %v1573, %v1572
        %v1591 = vrot.slane %v1456, 7
        %v1592 = vsel %vm407, %v1591, %v1455
        %v1593 = vrot.slane %v1457, 6
        %v1594 = vsel %vm410, %v1593, %v1592
        %v1595 = vrot.slane %v1458, 5
        %v1596 = vsel %vm413, %v1595, %v1594
        %v1597 = vrot.slane %v1459, 4
        %v1598 = vsel %vm416, %v1597, %v1596
        %v1599 = vrot.slane %v1460, 3
        %v1600 = vsel %vm419, %v1599, %v1598
        %v1601 = vrot.slane %v1461, 2
        %v1602 = vsel %vm422, %v1601, %v1600
        %v1603 = vrot.slane %v1462, 1
        %v1604 = vsel %vm425, %v1603, %v1602
        %v1605 = vrot.slane %v1464, 7
        %v1606 = vsel %vm407, %v1605, %v1463
        %v1607 = vrot.slane %v1465, 6
        %v1608 = vsel %vm410, %v1607, %v1606
        %v1609 = vrot.slane %v1466, 5
        %v1610 = vsel %vm413, %v1609, %v1608
        %v1611 = vrot.slane %v1467, 4
        %v1612 = vsel %vm416, %v1611, %v1610
        %v1613 = vrot.slane %v1468, 3
        %v1614 = vsel %vm419, %v1613, %v1612
        %v1615 = vrot.slane %v1469, 2
        %v1616 = vsel %vm422, %v1615, %v1614
        %v1617 = vrot.slane %v1470, 1
        %v1618 = vsel %vm425, %v1617, %v1616
        %v1635 = vrot.slane %v1472, 7
        %v1636 = vsel %vm407, %v1635, %v1471
        %v1637 = vrot.slane %v1473, 6
        %v1638 = vsel %vm410, %v1637, %v1636
        %v1639 = vrot.slane %v1474, 5
        %v1640 = vsel %vm413, %v1639, %v1638
        %v1641 = vrot.slane %v1475, 4
        %v1642 = vsel %vm416, %v1641, %v1640
        %v1643 = vrot.slane %v1476, 3
        %v1644 = vsel %vm419, %v1643, %v1642
        %v1645 = vrot.slane %v1477, 2
        %v1646 = vsel %vm422, %v1645, %v1644
        %v1647 = vrot.slane %v1478, 1
        %v1648 = vsel %vm425, %v1647, %v1646
        %v1649 = vrot.slane %v1480, 7
        %v1650 = vsel %vm407, %v1649, %v1479
        %v1651 = vrot.slane %v1481, 6
        %v1652 = vsel %vm410, %v1651, %v1650
        %v1653 = vrot.slane %v1482, 5
        %v1654 = vsel %vm413, %v1653, %v1652
        %v1655 = vrot.slane %v1483, 4
        %v1656 = vsel %vm416, %v1655, %v1654
        %v1657 = vrot.slane %v1484, 3
        %v1658 = vsel %vm419, %v1657, %v1656
        %v1659 = vrot.slane %v1485, 2
        %v1660 = vsel %vm422, %v1659, %v1658
        %v1661 = vrot.slane %v1486, 1
        %v1662 = vsel %vm425, %v1661, %v1660
        %v1663 = vsel %vm579, %v1516, 0
        %v1665 = vsel %vm579, %v1530, 0
        %v1667 = vsel %vm579, %v1560, 0
        %v1669 = vsel %vm579, %v1574, 0
        %v1671 = vsel %vm579, %v1604, 0
        %v1673 = vsel %vm579, %v1618, 0
        %v1675 = vsel %vm579, %v1648, 0
        %v1677 = vsel %vm579, %v1662, 0
        %1679 = vmatprep.subr.mxu0 0.0
        %1680 = vmatpush1.msra.mxu0 %v317
        %1681 = vmatprep.subr.mxu0 0.0
        %1682 = vmatpush1.msra.mxu0 %v318
        %1683 = vmatprep.subr.mxu0 0.0
        %1684 = vmatpush1.msra.mxu0 %v319
        %1685 = vmatprep.subr.mxu0 0.0
        %1686 = vmatpush1.msra.mxu0 %v320
        %1687 = vmatprep.subr.mxu0 0.0
        %1688 = vmatpush1.msra.mxu0 0.0
        %1689 = vmatprep.subr.mxu0 0.0
        %1690 = vmatpush1.msra.mxu0 0.0
        %1691 = vmatprep.subr.mxu0 0.0
        %1692 = vmatpush1.msra.mxu0 0.0
        %1693 = vmatprep.subr.mxu0 0.0
        %1694 = vmatpush1.msra.mxu0 0.0
        %1695 = vmatprep.subr.mxu0 0.0
        %1696 = vmatpush1.msra.mxu0 0.0
        %1697 = vmatprep.subr.mxu0 0.0
        %1698 = vmatpush1.msra.mxu0 0.0
        %1699 = vmatprep.subr.mxu0 0.0
        %1700 = vmatpush1.msra.mxu0 0.0
        %1701 = vmatprep.subr.mxu0 0.0
        %1702 = vmatpush1.msra.mxu0 0.0
        %1703 = vmatprep.subr.mxu0 0.0
        %1704 = vmatpush1.msra.mxu0 0.0
        %1705 = vmatprep.subr.mxu0 0.0
        %1706 = vmatpush1.msra.mxu0 0.0
        %1707 = vmatprep.subr.mxu0 0.0
        %1708 = vmatpush1.msra.mxu0 0.0
        %1709 = vmatprep.subr.mxu0 0.0
        %1710 = vmatpush1.msra.mxu0 0.0
        %1711 = vmatprep.subr.mxu0 0.0
        %1712 = vmatpush1.msra.mxu0 0.0
        %1713 = vmatprep.subr.mxu0 0.0
        %1714 = vmatpush1.msra.mxu0 0.0
        %1715 = vmatprep.subr.mxu0 0.0
        %1716 = vmatpush1.msra.mxu0 0.0
        %1717 = vmatprep.subr.mxu0 0.0
        %1718 = vmatpush1.msra.mxu0 0.0
        %1719 = vmatprep.subr.mxu0 0.0
        %1720 = vmatpush1.msra.mxu0 0.0
        %1721 = vmatprep.subr.mxu0 0.0
        %1722 = vmatpush1.msra.mxu0 0.0
        %1723 = vmatprep.subr.mxu0 0.0
        %1724 = vmatpush1.msra.mxu0 0.0
        %1725 = vmatprep.subr.mxu0 0.0
        %1726 = vmatpush1.msra.mxu0 0.0
        %1727 = vmatprep.subr.mxu0 0.0
        %1728 = vmatpush1.msra.mxu0 0.0
        %1729 = vmatprep.subr.mxu0 0.0
        %1730 = vmatpush1.msra.mxu0 0.0
        %1731 = vmatprep.subr.mxu0 0.0
        %1732 = vmatpush1.msra.mxu0 0.0
        %1733 = vmatprep.subr.mxu0 0.0
        %1734 = vmatpush1.msra.mxu0 0.0
        %1735 = vmatprep.subr.mxu0 0.0
        %1736 = vmatpush1.msra.mxu0 0.0
        %1737 = vmatprep.subr.mxu0 0.0
        %1738 = vmatpush1.msra.mxu0 0.0
        %1739 = vmatprep.subr.mxu0 0.0
        %1740 = vmatpush1.msra.mxu0 0.0
        %1741 = vmatprep.subr.mxu0 0.0
        %1742 = vmatpush1.msra.mxu0 0.0
        %1743 = vmatprep.mubr.f32.mxu0 0.0
        %1744 = vmatmul.mubr.f32.gmra.mrb[0].mxu0 %v1663
        %v1745 = vpop.f32.mrb[0].mxu0
        %v1746 = vadd.f32 %v577, %v1745
        %v1747 = vpop.f32.mrb[0].mxu0
        %1748 = vmatprep.mubr.f32.mxu0 0.0
        %1749 = vmatmul.mubr.f32.gmra.mrb[0].mxu0 %v1665
        %v1750 = vpop.f32.mrb[0].mxu0
        %v1751 = vadd.f32 %v577, %v1750
        %v1752 = vpop.f32.mrb[0].mxu0
        %1753 = vmatprep.mubr.f32.mxu0 0.0
        %1754 = vmatmul.mubr.f32.gmra.mrb[0].mxu0 %v1667
        %v1755 = vpop.f32.mrb[0].mxu0
        %v1756 = vadd.f32 %v577, %v1755
        %v1757 = vpop.f32.mrb[0].mxu0
        %1758 = vmatprep.mubr.f32.mxu0 0.0
        %1759 = vmatmul.mubr.f32.gmra.mrb[0].mxu0 %v1669
        %v1760 = vpop.f32.mrb[0].mxu0
        %v1761 = vadd.f32 %v577, %v1760
        %v1762 = vpop.f32.mrb[0].mxu0
        %1763 = vmatprep.mubr.f32.mxu0 0.0
        %1764 = vmatmul.mubr.f32.gmra.mrb[0].mxu0 %v1671
        %v1765 = vpop.f32.mrb[0].mxu0
        %v1766 = vadd.f32 %v577, %v1765
        %v1767 = vpop.f32.mrb[0].mxu0
        %1768 = vmatprep.mubr.f32.mxu0 0.0
        %1769 = vmatmul.mubr.f32.gmra.mrb[0].mxu0 %v1673
        %v1770 = vpop.f32.mrb[0].mxu0
        %v1771 = vadd.f32 %v577, %v1770
        %v1772 = vpop.f32.mrb[0].mxu0
        %1773 = vmatprep.mubr.f32.mxu0 0.0
        %1774 = vmatmul.mubr.f32.gmra.mrb[0].mxu0 %v1675
        %v1775 = vpop.f32.mrb[0].mxu0
        %v1776 = vadd.f32 %v577, %v1775
        %v1777 = vpop.f32.mrb[0].mxu0
        %1778 = vmatprep.mubr.f32.mxu0 0.0
        %1779 = vmatmul.mubr.f32.gmra.mrb[0].mxu0 %v1677
        %v1780 = vpop.f32.mrb[0].mxu0
        %v1781 = vadd.f32 %v577, %v1780
        %v1782 = vpop.f32.mrb[0].mxu0
        %1783 = vdwg.mxu0
        %v1785 = vsel %vm579, 0.0, 0
        %1787 = vmatprep.subr.mxu0 0.0
        %1788 = vmatpush1.msra.mxu0 %v321
        %1789 = vmatprep.subr.mxu0 0.0
        %1790 = vmatpush1.msra.mxu0 %v322
        %1791 = vmatprep.subr.mxu0 0.0
        %1792 = vmatpush1.msra.mxu0 %v323
        %1793 = vmatprep.subr.mxu0 0.0
        %1794 = vmatpush1.msra.mxu0 %v324
        %1795 = vmatprep.subr.mxu0 0.0
        %1796 = vmatpush1.msra.mxu0 0.0
        %1797 = vmatprep.subr.mxu0 0.0
        %1798 = vmatpush1.msra.mxu0 0.0
        %1799 = vmatprep.subr.mxu0 0.0
        %1800 = vmatpush1.msra.mxu0 0.0
        %1801 = vmatprep.subr.mxu0 0.0
        %1802 = vmatpush1.msra.mxu0 0.0
        %1803 = vmatprep.subr.mxu0 0.0
        %1804 = vmatpush1.msra.mxu0 0.0
        %1805 = vmatprep.subr.mxu0 0.0
        %1806 = vmatpush1.msra.mxu0 0.0
        %1807 = vmatprep.subr.mxu0 0.0
        %1808 = vmatpush1.msra.mxu0 0.0
        %1809 = vmatprep.subr.mxu0 0.0
        %1810 = vmatpush1.msra.mxu0 0.0
        %1811 = vmatprep.subr.mxu0 0.0
        %1812 = vmatpush1.msra.mxu0 0.0
        %1813 = vmatprep.subr.mxu0 0.0
        %1814 = vmatpush1.msra.mxu0 0.0
        %1815 = vmatprep.subr.mxu0 0.0
        %1816 = vmatpush1.msra.mxu0 0.0
        %1817 = vmatprep.subr.mxu0 0.0
        %1818 = vmatpush1.msra.mxu0 0.0
        %1819 = vmatprep.subr.mxu0 0.0
        %1820 = vmatpush1.msra.mxu0 0.0
        %1821 = vmatprep.subr.mxu0 0.0
        %1822 = vmatpush1.msra.mxu0 0.0
        %1823 = vmatprep.subr.mxu0 0.0
        %1824 = vmatpush1.msra.mxu0 0.0
        %1825 = vmatprep.subr.mxu0 0.0
        %1826 = vmatpush1.msra.mxu0 0.0
        %1827 = vmatprep.subr.mxu0 0.0
        %1828 = vmatpush1.msra.mxu0 0.0
        %1829 = vmatprep.subr.mxu0 0.0
        %1830 = vmatpush1.msra.mxu0 0.0
        %1831 = vmatprep.subr.mxu0 0.0
        %1832 = vmatpush1.msra.mxu0 0.0
        %1833 = vmatprep.subr.mxu0 0.0
        %1834 = vmatpush1.msra.mxu0 0.0
        %1835 = vmatprep.subr.mxu0 0.0
        %1836 = vmatpush1.msra.mxu0 0.0
        %1837 = vmatprep.subr.mxu0 0.0
        %1838 = vmatpush1.msra.mxu0 0.0
        %1839 = vmatprep.subr.mxu0 0.0
        %1840 = vmatpush1.msra.mxu0 0.0
        %1841 = vmatprep.subr.mxu0 0.0
        %1842 = vmatpush1.msra.mxu0 0.0
        %1843 = vmatprep.subr.mxu0 0.0
        %1844 = vmatpush1.msra.mxu0 0.0
        %1845 = vmatprep.subr.mxu0 0.0
        %1846 = vmatpush1.msra.mxu0 0.0
        %1847 = vmatprep.subr.mxu0 0.0
        %1848 = vmatpush1.msra.mxu0 0.0
        %1849 = vmatprep.subr.mxu0 0.0
        %1850 = vmatpush1.msra.mxu0 0.0
        %1851 = vmatprep.mubr.f32.mxu0 0.0
        %1852 = vmatmul.mubr.f32.gmra.mrb[0].mxu0 %v1785
        %v1853 = vpop.f32.mrb[0].mxu0
        %v1854 = vadd.f32 0.0, %v1853
        %v1855 = vpop.f32.mrb[0].mxu0
        %1856 = vdwg.mxu0
        %v1857 = vadd.f32 %v663, %v1854
        %v1858 = vtanh.pop %v1857
        %v1859 = vadd.f32 %v668, %v1854
        %v1860 = vtanh.pop %v1859
        %v1862 = vsel %vm579, %v1858, 0
        %1864 = vmatprep.subr.mxu0 0.0
        %1865 = vmatpush1.msra.mxu0 %v321
        %1866 = vmatprep.subr.mxu0 0.0
        %1867 = vmatpush1.msra.mxu0 %v322
        %1868 = vmatprep.subr.mxu0 0.0
        %1869 = vmatpush1.msra.mxu0 %v323
        %1870 = vmatprep.subr.mxu0 0.0
        %1871 = vmatpush1.msra.mxu0 %v324
        %1872 = vmatprep.subr.mxu0 0.0
        %1873 = vmatpush1.msra.mxu0 0.0
        %1874 = vmatprep.subr.mxu0 0.0
        %1875 = vmatpush1.msra.mxu0 0.0
        %1876 = vmatprep.subr.mxu0 0.0
        %1877 = vmatpush1.msra.mxu0 0.0
        %1878 = vmatprep.subr.mxu0 0.0
        %1879 = vmatpush1.msra.mxu0 0.0
        %1880 = vmatprep.subr.mxu0 0.0
        %1881 = vmatpush1.msra.mxu0 0.0
        %1882 = vmatprep.subr.mxu0 0.0
        %1883 = vmatpush1.msra.mxu0 0.0
        %1884 = vmatprep.subr.mxu0 0.0
        %1885 = vmatpush1.msra.mxu0 0.0
        %1886 = vmatprep.subr.mxu0 0.0
        %1887 = vmatpush1.msra.mxu0 0.0
        %1888 = vmatprep.subr.mxu0 0.0
        %1889 = vmatpush1.msra.mxu0 0.0
        %1890 = vmatprep.subr.mxu0 0.0
        %1891 = vmatpush1.msra.mxu0 0.0
        %1892 = vmatprep.subr.mxu0 0.0
        %1893 = vmatpush1.msra.mxu0 0.0
        %1894 = vmatprep.subr.mxu0 0.0
        %1895 = vmatpush1.msra.mxu0 0.0
        %1896 = vmatprep.subr.mxu0 0.0
        %1897 = vmatpush1.msra.mxu0 0.0
        %1898 = vmatprep.subr.mxu0 0.0
        %1899 = vmatpush1.msra.mxu0 0.0
        %1900 = vmatprep.subr.mxu0 0.0
        %1901 = vmatpush1.msra.mxu0 0.0
        %1902 = vmatprep.subr.mxu0 0.0
        %1903 = vmatpush1.msra.mxu0 0.0
        %1904 = vmatprep.subr.mxu0 0.0
        %1905 = vmatpush1.msra.mxu0 0.0
        %1906 = vmatprep.subr.mxu0 0.0
        %1907 = vmatpush1.msra.mxu0 0.0
        %1908 = vmatprep.subr.mxu0 0.0
        %1909 = vmatpush1.msra.mxu0 0.0
        %1910 = vmatprep.subr.mxu0 0.0
        %1911 = vmatpush1.msra.mxu0 0.0
        %1912 = vmatprep.subr.mxu0 0.0
        %1913 = vmatpush1.msra.mxu0 0.0
        %1914 = vmatprep.subr.mxu0 0.0
        %1915 = vmatpush1.msra.mxu0 0.0
        %1916 = vmatprep.subr.mxu0 0.0
        %1917 = vmatpush1.msra.mxu0 0.0
        %1918 = vmatprep.subr.mxu0 0.0
        %1919 = vmatpush1.msra.mxu0 0.0
        %1920 = vmatprep.subr.mxu0 0.0
        %1921 = vmatpush1.msra.mxu0 0.0
        %1922 = vmatprep.subr.mxu0 0.0
        %1923 = vmatpush1.msra.mxu0 0.0
        %1924 = vmatprep.subr.mxu0 0.0
        %1925 = vmatpush1.msra.mxu0 0.0
        %1926 = vmatprep.subr.mxu0 0.0
        %1927 = vmatpush1.msra.mxu0 0.0
        %1928 = vmatprep.mubr.f32.mxu0 0.0
        %1929 = vmatmul.mubr.f32.gmra.mrb[0].mxu0 %v1862
        %v1930 = vpop.f32.mrb[0].mxu0
        %v1931 = vadd.f32 0.0, %v1930
        %v1932 = vpop.f32.mrb[0].mxu0
        %1933 = vdwg.mxu0
        %v1934 = vadd.f32 %v673, %v1931
        %v1935 = vtanh.pop %v1934
        %v1937 = vsel %vm579, %v1860, 0
        %1939 = vmatprep.subr.mxu0 0.0
        %1940 = vmatpush1.msra.mxu0 %v321
        %1941 = vmatprep.subr.mxu0 0.0
        %1942 = vmatpush1.msra.mxu0 %v322
        %1943 = vmatprep.subr.mxu0 0.0
        %1944 = vmatpush1.msra.mxu0 %v323
        %1945 = vmatprep.subr.mxu0 0.0
        %1946 = vmatpush1.msra.mxu0 %v324
        %1947 = vmatprep.subr.mxu0 0.0
        %1948 = vmatpush1.msra.mxu0 0.0
        %1949 = vmatprep.subr.mxu0 0.0
        %1950 = vmatpush1.msra.mxu0 0.0
        %1951 = vmatprep.subr.mxu0 0.0
        %1952 = vmatpush1.msra.mxu0 0.0
        %1953 = vmatprep.subr.mxu0 0.0
        %1954 = vmatpush1.msra.mxu0 0.0
        %1955 = vmatprep.subr.mxu0 0.0
        %1956 = vmatpush1.msra.mxu0 0.0
        %1957 = vmatprep.subr.mxu0 0.0
        %1958 = vmatpush1.msra.mxu0 0.0
        %1959 = vmatprep.subr.mxu0 0.0
        %1960 = vmatpush1.msra.mxu0 0.0
        %1961 = vmatprep.subr.mxu0 0.0
        %1962 = vmatpush1.msra.mxu0 0.0
        %1963 = vmatprep.subr.mxu0 0.0
        %1964 = vmatpush1.msra.mxu0 0.0
        %1965 = vmatprep.subr.mxu0 0.0
        %1966 = vmatpush1.msra.mxu0 0.0
        %1967 = vmatprep.subr.mxu0 0.0
        %1968 = vmatpush1.msra.mxu0 0.0
        %1969 = vmatprep.subr.mxu0 0.0
        %1970 = vmatpush1.msra.mxu0 0.0
        %1971 = vmatprep.subr.mxu0 0.0
        %1972 = vmatpush1.msra.mxu0 0.0
        %1973 = vmatprep.subr.mxu0 0.0
        %1974 = vmatpush1.msra.mxu0 0.0
        %1975 = vmatprep.subr.mxu0 0.0
        %1976 = vmatpush1.msra.mxu0 0.0
        %1977 = vmatprep.subr.mxu0 0.0
        %1978 = vmatpush1.msra.mxu0 0.0
        %1979 = vmatprep.subr.mxu0 0.0
        %1980 = vmatpush1.msra.mxu0 0.0
        %1981 = vmatprep.subr.mxu0 0.0
        %1982 = vmatpush1.msra.mxu0 0.0
        %1983 = vmatprep.subr.mxu0 0.0
        %1984 = vmatpush1.msra.mxu0 0.0
        %1985 = vmatprep.subr.mxu0 0.0
        %1986 = vmatpush1.msra.mxu0 0.0
        %1987 = vmatprep.subr.mxu0 0.0
        %1988 = vmatpush1.msra.mxu0 0.0
        %1989 = vmatprep.subr.mxu0 0.0
        %1990 = vmatpush1.msra.mxu0 0.0
        %1991 = vmatprep.subr.mxu0 0.0
        %1992 = vmatpush1.msra.mxu0 0.0
        %1993 = vmatprep.subr.mxu0 0.0
        %1994 = vmatpush1.msra.mxu0 0.0
        %1995 = vmatprep.subr.mxu0 0.0
        %1996 = vmatpush1.msra.mxu0 0.0
        %1997 = vmatprep.subr.mxu0 0.0
        %1998 = vmatpush1.msra.mxu0 0.0
        %1999 = vmatprep.subr.mxu0 0.0
        %2000 = vmatpush1.msra.mxu0 0.0
        %2001 = vmatprep.subr.mxu0 0.0
        %2002 = vmatpush1.msra.mxu0 0.0
        %2003 = vmatprep.mubr.f32.mxu0 0.0
        %2004 = vmatmul.mubr.f32.gmra.mrb[0].mxu0 %v1937
        %v2005 = vpop.f32.mrb[0].mxu0
        %v2006 = vadd.f32 0.0, %v2005
        %v2007 = vpop.f32.mrb[0].mxu0
        %2008 = vdwg.mxu0
        %v2009 = vadd.f32 %v678, %v2006
        %v2010 = vtanh.pop %v2009
        %v2012 = vsel %vm579, %v1935, 0
        %2014 = vmatprep.subr.mxu0 0.0
        %2015 = vmatpush1.msra.mxu0 %v321
        %2016 = vmatprep.subr.mxu0 0.0
        %2017 = vmatpush1.msra.mxu0 %v322
        %2018 = vmatprep.subr.mxu0 0.0
        %2019 = vmatpush1.msra.mxu0 %v323
        %2020 = vmatprep.subr.mxu0 0.0
        %2021 = vmatpush1.msra.mxu0 %v324
        %2022 = vmatprep.subr.mxu0 0.0
        %2023 = vmatpush1.msra.mxu0 0.0
        %2024 = vmatprep.subr.mxu0 0.0
        %2025 = vmatpush1.msra.mxu0 0.0
        %2026 = vmatprep.subr.mxu0 0.0
        %2027 = vmatpush1.msra.mxu0 0.0
        %2028 = vmatprep.subr.mxu0 0.0
        %2029 = vmatpush1.msra.mxu0 0.0
        %2030 = vmatprep.subr.mxu0 0.0
        %2031 = vmatpush1.msra.mxu0 0.0
        %2032 = vmatprep.subr.mxu0 0.0
        %2033 = vmatpush1.msra.mxu0 0.0
        %2034 = vmatprep.subr.mxu0 0.0
        %2035 = vmatpush1.msra.mxu0 0.0
        %2036 = vmatprep.subr.mxu0 0.0
        %2037 = vmatpush1.msra.mxu0 0.0
        %2038 = vmatprep.subr.mxu0 0.0
        %2039 = vmatpush1.msra.mxu0 0.0
        %2040 = vmatprep.subr.mxu0 0.0
        %2041 = vmatpush1.msra.mxu0 0.0
        %2042 = vmatprep.subr.mxu0 0.0
        %2043 = vmatpush1.msra.mxu0 0.0
        %2044 = vmatprep.subr.mxu0 0.0
        %2045 = vmatpush1.msra.mxu0 0.0
        %2046 = vmatprep.subr.mxu0 0.0
        %2047 = vmatpush1.msra.mxu0 0.0
        %2048 = vmatprep.subr.mxu0 0.0
        %2049 = vmatpush1.msra.mxu0 0.0
        %2050 = vmatprep.subr.mxu0 0.0
        %2051 = vmatpush1.msra.mxu0 0.0
        %2052 = vmatprep.subr.mxu0 0.0
        %2053 = vmatpush1.msra.mxu0 0.0
        %2054 = vmatprep.subr.mxu0 0.0
        %2055 = vmatpush1.msra.mxu0 0.0
        %2056 = vmatprep.subr.mxu0 0.0
        %2057 = vmatpush1.msra.mxu0 0.0
        %2058 = vmatprep.subr.mxu0 0.0
        %2059 = vmatpush1.msra.mxu0 0.0
        %2060 = vmatprep.subr.mxu0 0.0
        %2061 = vmatpush1.msra.mxu0 0.0
        %2062 = vmatprep.subr.mxu0 0.0
        %2063 = vmatpush1.msra.mxu0 0.0
        %2064 = vmatprep.subr.mxu0 0.0
        %2065 = vmatpush1.msra.mxu0 0.0
        %2066 = vmatprep.subr.mxu0 0.0
        %2067 = vmatpush1.msra.mxu0 0.0
        %2068 = vmatprep.subr.mxu0 0.0
        %2069 = vmatpush1.msra.mxu0 0.0
        %2070 = vmatprep.subr.mxu0 0.0
        %2071 = vmatpush1.msra.mxu0 0.0
        %2072 = vmatprep.subr.mxu0 0.0
        %2073 = vmatpush1.msra.mxu0 0.0
        %2074 = vmatprep.subr.mxu0 0.0
        %2075 = vmatpush1.msra.mxu0 0.0
        %2076 = vmatprep.subr.mxu0 0.0
        %2077 = vmatpush1.msra.mxu0 0.0
        %2078 = vmatprep.mubr.f32.mxu0 0.0
        %2079 = vmatmul.mubr.f32.gmra.mrb[0].mxu0 %v2012
        %v2080 = vpop.f32.mrb[0].mxu0
        %v2081 = vadd.f32 0.0, %v2080
        %v2082 = vpop.f32.mrb[0].mxu0
        %2083 = vdwg.mxu0
        %v2084 = vadd.f32 %v683, %v2081
        %v2085 = vtanh.pop %v2084
        %v2087 = vsel %vm579, %v2010, 0
        %2089 = vmatprep.subr.mxu0 0.0
        %2090 = vmatpush1.msra.mxu0 %v321
        %2091 = vmatprep.subr.mxu0 0.0
        %2092 = vmatpush1.msra.mxu0 %v322
        %2093 = vmatprep.subr.mxu0 0.0
        %2094 = vmatpush1.msra.mxu0 %v323
        %2095 = vmatprep.subr.mxu0 0.0
        %2096 = vmatpush1.msra.mxu0 %v324
        %2097 = vmatprep.subr.mxu0 0.0
        %2098 = vmatpush1.msra.mxu0 0.0
        %2099 = vmatprep.subr.mxu0 0.0
        %2100 = vmatpush1.msra.mxu0 0.0
        %2101 = vmatprep.subr.mxu0 0.0
        %2102 = vmatpush1.msra.mxu0 0.0
        %2103 = vmatprep.subr.mxu0 0.0
        %2104 = vmatpush1.msra.mxu0 0.0
        %2105 = vmatprep.subr.mxu0 0.0
        %2106 = vmatpush1.msra.mxu0 0.0
        %2107 = vmatprep.subr.mxu0 0.0
        %2108 = vmatpush1.msra.mxu0 0.0
        %2109 = vmatprep.subr.mxu0 0.0
        %2110 = vmatpush1.msra.mxu0 0.0
        %2111 = vmatprep.subr.mxu0 0.0
        %2112 = vmatpush1.msra.mxu0 0.0
        %2113 = vmatprep.subr.mxu0 0.0
        %2114 = vmatpush1.msra.mxu0 0.0
        %2115 = vmatprep.subr.mxu0 0.0
        %2116 = vmatpush1.msra.mxu0 0.0
        %2117 = vmatprep.subr.mxu0 0.0
        %2118 = vmatpush1.msra.mxu0 0.0
        %2119 = vmatprep.subr.mxu0 0.0
        %2120 = vmatpush1.msra.mxu0 0.0
        %2121 = vmatprep.subr.mxu0 0.0
        %2122 = vmatpush1.msra.mxu0 0.0
        %2123 = vmatprep.subr.mxu0 0.0
        %2124 = vmatpush1.msra.mxu0 0.0
        %2125 = vmatprep.subr.mxu0 0.0
        %2126 = vmatpush1.msra.mxu0 0.0
        %2127 = vmatprep.subr.mxu0 0.0
        %2128 = vmatpush1.msra.mxu0 0.0
        %2129 = vmatprep.subr.mxu0 0.0
        %2130 = vmatpush1.msra.mxu0 0.0
        %2131 = vmatprep.subr.mxu0 0.0
        %2132 = vmatpush1.msra.mxu0 0.0
        %2133 = vmatprep.subr.mxu0 0.0
        %2134 = vmatpush1.msra.mxu0 0.0
        %2135 = vmatprep.subr.mxu0 0.0
        %2136 = vmatpush1.msra.mxu0 0.0
        %2137 = vmatprep.subr.mxu0 0.0
        %2138 = vmatpush1.msra.mxu0 0.0
        %2139 = vmatprep.subr.mxu0 0.0
        %2140 = vmatpush1.msra.mxu0 0.0
        %2141 = vmatprep.subr.mxu0 0.0
        %2142 = vmatpush1.msra.mxu0 0.0
        %2143 = vmatprep.subr.mxu0 0.0
        %2144 = vmatpush1.msra.mxu0 0.0
        %2145 = vmatprep.subr.mxu0 0.0
        %2146 = vmatpush1.msra.mxu0 0.0
        %2147 = vmatprep.subr.mxu0 0.0
        %2148 = vmatpush1.msra.mxu0 0.0
        %2149 = vmatprep.subr.mxu0 0.0
        %2150 = vmatpush1.msra.mxu0 0.0
        %2151 = vmatprep.subr.mxu0 0.0
        %2152 = vmatpush1.msra.mxu0 0.0
        %2153 = vmatprep.mubr.f32.mxu0 0.0
        %2154 = vmatmul.mubr.f32.gmra.mrb[0].mxu0 %v2087
        %v2155 = vpop.f32.mrb[0].mxu0
        %v2156 = vadd.f32 0.0, %v2155
        %v2157 = vpop.f32.mrb[0].mxu0
        %2158 = vdwg.mxu0
        %v2159 = vadd.f32 %v688, %v2156
        %v2160 = vtanh.pop %v2159
        %v2162 = vsel %vm579, %v2085, 0
        %2164 = vmatprep.subr.mxu0 0.0
        %2165 = vmatpush1.msra.mxu0 %v321
        %2166 = vmatprep.subr.mxu0 0.0
        %2167 = vmatpush1.msra.mxu0 %v322
        %2168 = vmatprep.subr.mxu0 0.0
        %2169 = vmatpush1.msra.mxu0 %v323
        %2170 = vmatprep.subr.mxu0 0.0
        %2171 = vmatpush1.msra.mxu0 %v324
        %2172 = vmatprep.subr.mxu0 0.0
        %2173 = vmatpush1.msra.mxu0 0.0
        %2174 = vmatprep.subr.mxu0 0.0
        %2175 = vmatpush1.msra.mxu0 0.0
        %2176 = vmatprep.subr.mxu0 0.0
        %2177 = vmatpush1.msra.mxu0 0.0
        %2178 = vmatprep.subr.mxu0 0.0
        %2179 = vmatpush1.msra.mxu0 0.0
        %2180 = vmatprep.subr.mxu0 0.0
        %2181 = vmatpush1.msra.mxu0 0.0
        %2182 = vmatprep.subr.mxu0 0.0
        %2183 = vmatpush1.msra.mxu0 0.0
        %2184 = vmatprep.subr.mxu0 0.0
        %2185 = vmatpush1.msra.mxu0 0.0
        %2186 = vmatprep.subr.mxu0 0.0
        %2187 = vmatpush1.msra.mxu0 0.0
        %2188 = vmatprep.subr.mxu0 0.0
        %2189 = vmatpush1.msra.mxu0 0.0
        %2190 = vmatprep.subr.mxu0 0.0
        %2191 = vmatpush1.msra.mxu0 0.0
        %2192 = vmatprep.subr.mxu0 0.0
        %2193 = vmatpush1.msra.mxu0 0.0
        %2194 = vmatprep.subr.mxu0 0.0
        %2195 = vmatpush1.msra.mxu0 0.0
        %2196 = vmatprep.subr.mxu0 0.0
        %2197 = vmatpush1.msra.mxu0 0.0
        %2198 = vmatprep.subr.mxu0 0.0
        %2199 = vmatpush1.msra.mxu0 0.0
        %2200 = vmatprep.subr.mxu0 0.0
        %2201 = vmatpush1.msra.mxu0 0.0
        %2202 = vmatprep.subr.mxu0 0.0
        %2203 = vmatpush1.msra.mxu0 0.0
        %2204 = vmatprep.subr.mxu0 0.0
        %2205 = vmatpush1.msra.mxu0 0.0
        %2206 = vmatprep.subr.mxu0 0.0
        %2207 = vmatpush1.msra.mxu0 0.0
        %2208 = vmatprep.subr.mxu0 0.0
        %2209 = vmatpush1.msra.mxu0 0.0
        %2210 = vmatprep.subr.mxu0 0.0
        %2211 = vmatpush1.msra.mxu0 0.0
        %2212 = vmatprep.subr.mxu0 0.0
        %2213 = vmatpush1.msra.mxu0 0.0
        %2214 = vmatprep.subr.mxu0 0.0
        %2215 = vmatpush1.msra.mxu0 0.0
        %2216 = vmatprep.subr.mxu0 0.0
        %2217 = vmatpush1.msra.mxu0 0.0
        %2218 = vmatprep.subr.mxu0 0.0
        %2219 = vmatpush1.msra.mxu0 0.0
        %2220 = vmatprep.subr.mxu0 0.0
        %2221 = vmatpush1.msra.mxu0 0.0
        %2222 = vmatprep.subr.mxu0 0.0
        %2223 = vmatpush1.msra.mxu0 0.0
        %2224 = vmatprep.subr.mxu0 0.0
        %2225 = vmatpush1.msra.mxu0 0.0
        %2226 = vmatprep.subr.mxu0 0.0
        %2227 = vmatpush1.msra.mxu0 0.0
        %2228 = vmatprep.mubr.f32.mxu0 0.0
        %2229 = vmatmul.mubr.f32.gmra.mrb[0].mxu0 %v2162
        %v2230 = vpop.f32.mrb[0].mxu0
        %v2231 = vadd.f32 0.0, %v2230
        %v2232 = vpop.f32.mrb[0].mxu0
        %2233 = vdwg.mxu0
        %v2234 = vadd.f32 %v693, %v2231
        %v2235 = vtanh.pop %v2234
        %v2237 = vsel %vm579, %v2160, 0
        %2239 = vmatprep.subr.mxu0 0.0
        %2240 = vmatpush1.msra.mxu0 %v321
        %2241 = vmatprep.subr.mxu0 0.0
        %2242 = vmatpush1.msra.mxu0 %v322
        %2243 = vmatprep.subr.mxu0 0.0
        %2244 = vmatpush1.msra.mxu0 %v323
        %2245 = vmatprep.subr.mxu0 0.0
        %2246 = vmatpush1.msra.mxu0 %v324
        %2247 = vmatprep.subr.mxu0 0.0
        %2248 = vmatpush1.msra.mxu0 0.0
        %2249 = vmatprep.subr.mxu0 0.0
        %2250 = vmatpush1.msra.mxu0 0.0
        %2251 = vmatprep.subr.mxu0 0.0
        %2252 = vmatpush1.msra.mxu0 0.0
        %2253 = vmatprep.subr.mxu0 0.0
        %2254 = vmatpush1.msra.mxu0 0.0
        %2255 = vmatprep.subr.mxu0 0.0
        %2256 = vmatpush1.msra.mxu0 0.0
        %2257 = vmatprep.subr.mxu0 0.0
        %2258 = vmatpush1.msra.mxu0 0.0
        %2259 = vmatprep.subr.mxu0 0.0
        %2260 = vmatpush1.msra.mxu0 0.0
        %2261 = vmatprep.subr.mxu0 0.0
        %2262 = vmatpush1.msra.mxu0 0.0
        %2263 = vmatprep.subr.mxu0 0.0
        %2264 = vmatpush1.msra.mxu0 0.0
        %2265 = vmatprep.subr.mxu0 0.0
        %2266 = vmatpush1.msra.mxu0 0.0
        %2267 = vmatprep.subr.mxu0 0.0
        %2268 = vmatpush1.msra.mxu0 0.0
        %2269 = vmatprep.subr.mxu0 0.0
        %2270 = vmatpush1.msra.mxu0 0.0
        %2271 = vmatprep.subr.mxu0 0.0
        %2272 = vmatpush1.msra.mxu0 0.0
        %2273 = vmatprep.subr.mxu0 0.0
        %2274 = vmatpush1.msra.mxu0 0.0
        %2275 = vmatprep.subr.mxu0 0.0
        %2276 = vmatpush1.msra.mxu0 0.0
        %2277 = vmatprep.subr.mxu0 0.0
        %2278 = vmatpush1.msra.mxu0 0.0
        %2279 = vmatprep.subr.mxu0 0.0
        %2280 = vmatpush1.msra.mxu0 0.0
        %2281 = vmatprep.subr.mxu0 0.0
        %2282 = vmatpush1.msra.mxu0 0.0
        %2283 = vmatprep.subr.mxu0 0.0
        %2284 = vmatpush1.msra.mxu0 0.0
        %2285 = vmatprep.subr.mxu0 0.0
        %2286 = vmatpush1.msra.mxu0 0.0
        %2287 = vmatprep.subr.mxu0 0.0
        %2288 = vmatpush1.msra.mxu0 0.0
        %2289 = vmatprep.subr.mxu0 0.0
        %2290 = vmatpush1.msra.mxu0 0.0
        %2291 = vmatprep.subr.mxu0 0.0
        %2292 = vmatpush1.msra.mxu0 0.0
        %2293 = vmatprep.subr.mxu0 0.0
        %2294 = vmatpush1.msra.mxu0 0.0
        %2295 = vmatprep.subr.mxu0 0.0
        %2296 = vmatpush1.msra.mxu0 0.0
        %2297 = vmatprep.subr.mxu0 0.0
        %2298 = vmatpush1.msra.mxu0 0.0
        %2299 = vmatprep.subr.mxu0 0.0
        %2300 = vmatpush1.msra.mxu0 0.0
        %2301 = vmatprep.subr.mxu0 0.0
        %2302 = vmatpush1.msra.mxu0 0.0
        %2303 = vmatprep.mubr.f32.mxu0 0.0
        %2304 = vmatmul.mubr.f32.gmra.mrb[0].mxu0 %v2237
        %v2305 = vpop.f32.mrb[0].mxu0
        %v2306 = vadd.f32 0.0, %v2305
        %v2307 = vpop.f32.mrb[0].mxu0
        %2308 = vdwg.mxu0
        %v2309 = vadd.f32 %v698, %v2306
        %v2310 = vtanh.pop %v2309
        %v2312 = vsel %vm579, %v2235, 0
        %2314 = vmatprep.subr.mxu0 0.0
        %2315 = vmatpush1.msra.mxu0 %v321
        %2316 = vmatprep.subr.mxu0 0.0
        %2317 = vmatpush1.msra.mxu0 %v322
        %2318 = vmatprep.subr.mxu0 0.0
        %2319 = vmatpush1.msra.mxu0 %v323
        %2320 = vmatprep.subr.mxu0 0.0
        %2321 = vmatpush1.msra.mxu0 %v324
        %2322 = vmatprep.subr.mxu0 0.0
        %2323 = vmatpush1.msra.mxu0 0.0
        %2324 = vmatprep.subr.mxu0 0.0
        %2325 = vmatpush1.msra.mxu0 0.0
        %2326 = vmatprep.subr.mxu0 0.0
        %2327 = vmatpush1.msra.mxu0 0.0
        %2328 = vmatprep.subr.mxu0 0.0
        %2329 = vmatpush1.msra.mxu0 0.0
        %2330 = vmatprep.subr.mxu0 0.0
        %2331 = vmatpush1.msra.mxu0 0.0
        %2332 = vmatprep.subr.mxu0 0.0
        %2333 = vmatpush1.msra.mxu0 0.0
        %2334 = vmatprep.subr.mxu0 0.0
        %2335 = vmatpush1.msra.mxu0 0.0
        %2336 = vmatprep.subr.mxu0 0.0
        %2337 = vmatpush1.msra.mxu0 0.0
        %2338 = vmatprep.subr.mxu0 0.0
        %2339 = vmatpush1.msra.mxu0 0.0
        %2340 = vmatprep.subr.mxu0 0.0
        %2341 = vmatpush1.msra.mxu0 0.0
        %2342 = vmatprep.subr.mxu0 0.0
        %2343 = vmatpush1.msra.mxu0 0.0
        %2344 = vmatprep.subr.mxu0 0.0
        %2345 = vmatpush1.msra.mxu0 0.0
        %2346 = vmatprep.subr.mxu0 0.0
        %2347 = vmatpush1.msra.mxu0 0.0
        %2348 = vmatprep.subr.mxu0 0.0
        %2349 = vmatpush1.msra.mxu0 0.0
        %2350 = vmatprep.subr.mxu0 0.0
        %2351 = vmatpush1.msra.mxu0 0.0
        %2352 = vmatprep.subr.mxu0 0.0
        %2353 = vmatpush1.msra.mxu0 0.0
        %2354 = vmatprep.subr.mxu0 0.0
        %2355 = vmatpush1.msra.mxu0 0.0
        %2356 = vmatprep.subr.mxu0 0.0
        %2357 = vmatpush1.msra.mxu0 0.0
        %2358 = vmatprep.subr.mxu0 0.0
        %2359 = vmatpush1.msra.mxu0 0.0
        %2360 = vmatprep.subr.mxu0 0.0
        %2361 = vmatpush1.msra.mxu0 0.0
        %2362 = vmatprep.subr.mxu0 0.0
        %2363 = vmatpush1.msra.mxu0 0.0
        %2364 = vmatprep.subr.mxu0 0.0
        %2365 = vmatpush1.msra.mxu0 0.0
        %2366 = vmatprep.subr.mxu0 0.0
        %2367 = vmatpush1.msra.mxu0 0.0
        %2368 = vmatprep.subr.mxu0 0.0
        %2369 = vmatpush1.msra.mxu0 0.0
        %2370 = vmatprep.subr.mxu0 0.0
        %2371 = vmatpush1.msra.mxu0 0.0
        %2372 = vmatprep.subr.mxu0 0.0
        %2373 = vmatpush1.msra.mxu0 0.0
        %2374 = vmatprep.subr.mxu0 0.0
        %2375 = vmatpush1.msra.mxu0 0.0
        %2376 = vmatprep.subr.mxu0 0.0
        %2377 = vmatpush1.msra.mxu0 0.0
        %2378 = vmatprep.mubr.f32.mxu0 0.0
        %2379 = vmatmul.mubr.f32.gmra.mrb[0].mxu0 %v2312
        %v2380 = vpop.f32.mrb[0].mxu0
        %v2381 = vadd.f32 0.0, %v2380
        %v2382 = vpop.f32.mrb[0].mxu0
        %2383 = vdwg.mxu0
        %v2384 = vadd.f32 %v1024, %v2381
        %v2385 = vtanh.pop %v2384
        %v2387 = vsel %vm579, %v2310, 0
        %2389 = vmatprep.subr.mxu0 0.0
        %2390 = vmatpush1.msra.mxu0 %v321
        %2391 = vmatprep.subr.mxu0 0.0
        %2392 = vmatpush1.msra.mxu0 %v322
        %2393 = vmatprep.subr.mxu0 0.0
        %2394 = vmatpush1.msra.mxu0 %v323
        %2395 = vmatprep.subr.mxu0 0.0
        %2396 = vmatpush1.msra.mxu0 %v324
        %2397 = vmatprep.subr.mxu0 0.0
        %2398 = vmatpush1.msra.mxu0 0.0
        %2399 = vmatprep.subr.mxu0 0.0
        %2400 = vmatpush1.msra.mxu0 0.0
        %2401 = vmatprep.subr.mxu0 0.0
        %2402 = vmatpush1.msra.mxu0 0.0
        %2403 = vmatprep.subr.mxu0 0.0
        %2404 = vmatpush1.msra.mxu0 0.0
        %2405 = vmatprep.subr.mxu0 0.0
        %2406 = vmatpush1.msra.mxu0 0.0
        %2407 = vmatprep.subr.mxu0 0.0
        %2408 = vmatpush1.msra.mxu0 0.0
        %2409 = vmatprep.subr.mxu0 0.0
        %2410 = vmatpush1.msra.mxu0 0.0
        %2411 = vmatprep.subr.mxu0 0.0
        %2412 = vmatpush1.msra.mxu0 0.0
        %2413 = vmatprep.subr.mxu0 0.0
        %2414 = vmatpush1.msra.mxu0 0.0
        %2415 = vmatprep.subr.mxu0 0.0
        %2416 = vmatpush1.msra.mxu0 0.0
        %2417 = vmatprep.subr.mxu0 0.0
        %2418 = vmatpush1.msra.mxu0 0.0
        %2419 = vmatprep.subr.mxu0 0.0
        %2420 = vmatpush1.msra.mxu0 0.0
        %2421 = vmatprep.subr.mxu0 0.0
        %2422 = vmatpush1.msra.mxu0 0.0
        %2423 = vmatprep.subr.mxu0 0.0
        %2424 = vmatpush1.msra.mxu0 0.0
        %2425 = vmatprep.subr.mxu0 0.0
        %2426 = vmatpush1.msra.mxu0 0.0
        %2427 = vmatprep.subr.mxu0 0.0
        %2428 = vmatpush1.msra.mxu0 0.0
        %2429 = vmatprep.subr.mxu0 0.0
        %2430 = vmatpush1.msra.mxu0 0.0
        %2431 = vmatprep.subr.mxu0 0.0
        %2432 = vmatpush1.msra.mxu0 0.0
        %2433 = vmatprep.subr.mxu0 0.0
        %2434 = vmatpush1.msra.mxu0 0.0
        %2435 = vmatprep.subr.mxu0 0.0
        %2436 = vmatpush1.msra.mxu0 0.0
        %2437 = vmatprep.subr.mxu0 0.0
        %2438 = vmatpush1.msra.mxu0 0.0
        %2439 = vmatprep.subr.mxu0 0.0
        %2440 = vmatpush1.msra.mxu0 0.0
        %2441 = vmatprep.subr.mxu0 0.0
        %2442 = vmatpush1.msra.mxu0 0.0
        %2443 = vmatprep.subr.mxu0 0.0
        %2444 = vmatpush1.msra.mxu0 0.0
        %2445 = vmatprep.subr.mxu0 0.0
        %2446 = vmatpush1.msra.mxu0 0.0
        %2447 = vmatprep.subr.mxu0 0.0
        %2448 = vmatpush1.msra.mxu0 0.0
        %2449 = vmatprep.subr.mxu0 0.0
        %2450 = vmatpush1.msra.mxu0 0.0
        %2451 = vmatprep.subr.mxu0 0.0
        %2452 = vmatpush1.msra.mxu0 0.0
        %2453 = vmatprep.mubr.f32.mxu0 0.0
        %2454 = vmatmul.mubr.f32.gmra.mrb[0].mxu0 %v2387
        %v2455 = vpop.f32.mrb[0].mxu0
        %v2456 = vadd.f32 0.0, %v2455
        %v2457 = vpop.f32.mrb[0].mxu0
        %2458 = vdwg.mxu0
        %v2459 = vadd.f32 %v1029, %v2456
        %v2460 = vtanh.pop %v2459
        %v2462 = vsel %vm579, %v2385, 0
        %2464 = vmatprep.subr.mxu0 0.0
        %2465 = vmatpush1.msra.mxu0 %v321
        %2466 = vmatprep.subr.mxu0 0.0
        %2467 = vmatpush1.msra.mxu0 %v322
        %2468 = vmatprep.subr.mxu0 0.0
        %2469 = vmatpush1.msra.mxu0 %v323
        %2470 = vmatprep.subr.mxu0 0.0
        %2471 = vmatpush1.msra.mxu0 %v324
        %2472 = vmatprep.subr.mxu0 0.0
        %2473 = vmatpush1.msra.mxu0 0.0
        %2474 = vmatprep.subr.mxu0 0.0
        %2475 = vmatpush1.msra.mxu0 0.0
        %2476 = vmatprep.subr.mxu0 0.0
        %2477 = vmatpush1.msra.mxu0 0.0
        %2478 = vmatprep.subr.mxu0 0.0
        %2479 = vmatpush1.msra.mxu0 0.0
        %2480 = vmatprep.subr.mxu0 0.0
        %2481 = vmatpush1.msra.mxu0 0.0
        %2482 = vmatprep.subr.mxu0 0.0
        %2483 = vmatpush1.msra.mxu0 0.0
        %2484 = vmatprep.subr.mxu0 0.0
        %2485 = vmatpush1.msra.mxu0 0.0
        %2486 = vmatprep.subr.mxu0 0.0
        %2487 = vmatpush1.msra.mxu0 0.0
        %2488 = vmatprep.subr.mxu0 0.0
        %2489 = vmatpush1.msra.mxu0 0.0
        %2490 = vmatprep.subr.mxu0 0.0
        %2491 = vmatpush1.msra.mxu0 0.0
        %2492 = vmatprep.subr.mxu0 0.0
        %2493 = vmatpush1.msra.mxu0 0.0
        %2494 = vmatprep.subr.mxu0 0.0
        %2495 = vmatpush1.msra.mxu0 0.0
        %2496 = vmatprep.subr.mxu0 0.0
        %2497 = vmatpush1.msra.mxu0 0.0
        %2498 = vmatprep.subr.mxu0 0.0
        %2499 = vmatpush1.msra.mxu0 0.0
        %2500 = vmatprep.subr.mxu0 0.0
        %2501 = vmatpush1.msra.mxu0 0.0
        %2502 = vmatprep.subr.mxu0 0.0
        %2503 = vmatpush1.msra.mxu0 0.0
        %2504 = vmatprep.subr.mxu0 0.0
        %2505 = vmatpush1.msra.mxu0 0.0
        %2506 = vmatprep.subr.mxu0 0.0
        %2507 = vmatpush1.msra.mxu0 0.0
        %2508 = vmatprep.subr.mxu0 0.0
        %2509 = vmatpush1.msra.mxu0 0.0
        %2510 = vmatprep.subr.mxu0 0.0
        %2511 = vmatpush1.msra.mxu0 0.0
        %2512 = vmatprep.subr.mxu0 0.0
        %2513 = vmatpush1.msra.mxu0 0.0
        %2514 = vmatprep.subr.mxu0 0.0
        %2515 = vmatpush1.msra.mxu0 0.0
        %2516 = vmatprep.subr.mxu0 0.0
        %2517 = vmatpush1.msra.mxu0 0.0
        %2518 = vmatprep.subr.mxu0 0.0
        %2519 = vmatpush1.msra.mxu0 0.0
        %2520 = vmatprep.subr.mxu0 0.0
        %2521 = vmatpush1.msra.mxu0 0.0
        %2522 = vmatprep.subr.mxu0 0.0
        %2523 = vmatpush1.msra.mxu0 0.0
        %2524 = vmatprep.subr.mxu0 0.0
        %2525 = vmatpush1.msra.mxu0 0.0
        %2526 = vmatprep.subr.mxu0 0.0
        %2527 = vmatpush1.msra.mxu0 0.0
        %2528 = vmatprep.mubr.f32.mxu0 0.0
        %2529 = vmatmul.mubr.f32.gmra.mrb[0].mxu0 %v2462
        %v2530 = vpop.f32.mrb[0].mxu0
        %v2531 = vadd.f32 0.0, %v2530
        %v2532 = vpop.f32.mrb[0].mxu0
        %2533 = vdwg.mxu0
        %v2534 = vadd.f32 %v1034, %v2531
        %v2535 = vtanh.pop %v2534
        %v2537 = vsel %vm579, %v2460, 0
        %2539 = vmatprep.subr.mxu0 0.0
        %2540 = vmatpush1.msra.mxu0 %v321
        %2541 = vmatprep.subr.mxu0 0.0
        %2542 = vmatpush1.msra.mxu0 %v322
        %2543 = vmatprep.subr.mxu0 0.0
        %2544 = vmatpush1.msra.mxu0 %v323
        %2545 = vmatprep.subr.mxu0 0.0
        %2546 = vmatpush1.msra.mxu0 %v324
        %2547 = vmatprep.subr.mxu0 0.0
        %2548 = vmatpush1.msra.mxu0 0.0
        %2549 = vmatprep.subr.mxu0 0.0
        %2550 = vmatpush1.msra.mxu0 0.0
        %2551 = vmatprep.subr.mxu0 0.0
        %2552 = vmatpush1.msra.mxu0 0.0
        %2553 = vmatprep.subr.mxu0 0.0
        %2554 = vmatpush1.msra.mxu0 0.0
        %2555 = vmatprep.subr.mxu0 0.0
        %2556 = vmatpush1.msra.mxu0 0.0
        %2557 = vmatprep.subr.mxu0 0.0
        %2558 = vmatpush1.msra.mxu0 0.0
        %2559 = vmatprep.subr.mxu0 0.0
        %2560 = vmatpush1.msra.mxu0 0.0
        %2561 = vmatprep.subr.mxu0 0.0
        %2562 = vmatpush1.msra.mxu0 0.0
        %2563 = vmatprep.subr.mxu0 0.0
        %2564 = vmatpush1.msra.mxu0 0.0
        %2565 = vmatprep.subr.mxu0 0.0
        %2566 = vmatpush1.msra.mxu0 0.0
        %2567 = vmatprep.subr.mxu0 0.0
        %2568 = vmatpush1.msra.mxu0 0.0
        %2569 = vmatprep.subr.mxu0 0.0
        %2570 = vmatpush1.msra.mxu0 0.0
        %2571 = vmatprep.subr.mxu0 0.0
        %2572 = vmatpush1.msra.mxu0 0.0
        %2573 = vmatprep.subr.mxu0 0.0
        %2574 = vmatpush1.msra.mxu0 0.0
        %2575 = vmatprep.subr.mxu0 0.0
        %2576 = vmatpush1.msra.mxu0 0.0
        %2577 = vmatprep.subr.mxu0 0.0
        %2578 = vmatpush1.msra.mxu0 0.0
        %2579 = vmatprep.subr.mxu0 0.0
        %2580 = vmatpush1.msra.mxu0 0.0
        %2581 = vmatprep.subr.mxu0 0.0
        %2582 = vmatpush1.msra.mxu0 0.0
        %2583 = vmatprep.subr.mxu0 0.0
        %2584 = vmatpush1.msra.mxu0 0.0
        %2585 = vmatprep.subr.mxu0 0.0
        %2586 = vmatpush1.msra.mxu0 0.0
        %2587 = vmatprep.subr.mxu0 0.0
        %2588 = vmatpush1.msra.mxu0 0.0
        %2589 = vmatprep.subr.mxu0 0.0
        %2590 = vmatpush1.msra.mxu0 0.0
        %2591 = vmatprep.subr.mxu0 0.0
        %2592 = vmatpush1.msra.mxu0 0.0
        %2593 = vmatprep.subr.mxu0 0.0
        %2594 = vmatpush1.msra.mxu0 0.0
        %2595 = vmatprep.subr.mxu0 0.0
        %2596 = vmatpush1.msra.mxu0 0.0
        %2597 = vmatprep.subr.mxu0 0.0
        %2598 = vmatpush1.msra.mxu0 0.0
        %2599 = vmatprep.subr.mxu0 0.0
        %2600 = vmatpush1.msra.mxu0 0.0
        %2601 = vmatprep.subr.mxu0 0.0
        %2602 = vmatpush1.msra.mxu0 0.0
        %2603 = vmatprep.mubr.f32.mxu0 0.0
        %2604 = vmatmul.mubr.f32.gmra.mrb[0].mxu0 %v2537
        %v2605 = vpop.f32.mrb[0].mxu0
        %v2606 = vadd.f32 0.0, %v2605
        %v2607 = vpop.f32.mrb[0].mxu0
        %2608 = vdwg.mxu0
        %v2609 = vadd.f32 %v1039, %v2606
        %v2610 = vtanh.pop %v2609
        %v2612 = vsel %vm579, %v2535, 0
        %2614 = vmatprep.subr.mxu0 0.0
        %2615 = vmatpush1.msra.mxu0 %v321
        %2616 = vmatprep.subr.mxu0 0.0
        %2617 = vmatpush1.msra.mxu0 %v322
        %2618 = vmatprep.subr.mxu0 0.0
        %2619 = vmatpush1.msra.mxu0 %v323
        %2620 = vmatprep.subr.mxu0 0.0
        %2621 = vmatpush1.msra.mxu0 %v324
        %2622 = vmatprep.subr.mxu0 0.0
        %2623 = vmatpush1.msra.mxu0 0.0
        %2624 = vmatprep.subr.mxu0 0.0
        %2625 = vmatpush1.msra.mxu0 0.0
        %2626 = vmatprep.subr.mxu0 0.0
        %2627 = vmatpush1.msra.mxu0 0.0
        %2628 = vmatprep.subr.mxu0 0.0
        %2629 = vmatpush1.msra.mxu0 0.0
        %2630 = vmatprep.subr.mxu0 0.0
        %2631 = vmatpush1.msra.mxu0 0.0
        %2632 = vmatprep.subr.mxu0 0.0
        %2633 = vmatpush1.msra.mxu0 0.0
        %2634 = vmatprep.subr.mxu0 0.0
        %2635 = vmatpush1.msra.mxu0 0.0
        %2636 = vmatprep.subr.mxu0 0.0
        %2637 = vmatpush1.msra.mxu0 0.0
        %2638 = vmatprep.subr.mxu0 0.0
        %2639 = vmatpush1.msra.mxu0 0.0
        %2640 = vmatprep.subr.mxu0 0.0
        %2641 = vmatpush1.msra.mxu0 0.0
        %2642 = vmatprep.subr.mxu0 0.0
        %2643 = vmatpush1.msra.mxu0 0.0
        %2644 = vmatprep.subr.mxu0 0.0
        %2645 = vmatpush1.msra.mxu0 0.0
        %2646 = vmatprep.subr.mxu0 0.0
        %2647 = vmatpush1.msra.mxu0 0.0
        %2648 = vmatprep.subr.mxu0 0.0
        %2649 = vmatpush1.msra.mxu0 0.0
        %2650 = vmatprep.subr.mxu0 0.0
        %2651 = vmatpush1.msra.mxu0 0.0
        %2652 = vmatprep.subr.mxu0 0.0
        %2653 = vmatpush1.msra.mxu0 0.0
        %2654 = vmatprep.subr.mxu0 0.0
        %2655 = vmatpush1.msra.mxu0 0.0
        %2656 = vmatprep.subr.mxu0 0.0
        %2657 = vmatpush1.msra.mxu0 0.0
        %2658 = vmatprep.subr.mxu0 0.0
        %2659 = vmatpush1.msra.mxu0 0.0
        %2660 = vmatprep.subr.mxu0 0.0
        %2661 = vmatpush1.msra.mxu0 0.0
        %2662 = vmatprep.subr.mxu0 0.0
        %2663 = vmatpush1.msra.mxu0 0.0
        %2664 = vmatprep.subr.mxu0 0.0
        %2665 = vmatpush1.msra.mxu0 0.0
        %2666 = vmatprep.subr.mxu0 0.0
        %2667 = vmatpush1.msra.mxu0 0.0
        %2668 = vmatprep.subr.mxu0 0.0
        %2669 = vmatpush1.msra.mxu0 0.0
        %2670 = vmatprep.subr.mxu0 0.0
        %2671 = vmatpush1.msra.mxu0 0.0
        %2672 = vmatprep.subr.mxu0 0.0
        %2673 = vmatpush1.msra.mxu0 0.0
        %2674 = vmatprep.subr.mxu0 0.0
        %2675 = vmatpush1.msra.mxu0 0.0
        %2676 = vmatprep.subr.mxu0 0.0
        %2677 = vmatpush1.msra.mxu0 0.0
        %2678 = vmatprep.mubr.f32.mxu0 0.0
        %2679 = vmatmul.mubr.f32.gmra.mrb[0].mxu0 %v2612
        %v2680 = vpop.f32.mrb[0].mxu0
        %v2681 = vadd.f32 0.0, %v2680
        %v2682 = vpop.f32.mrb[0].mxu0
        %2683 = vdwg.mxu0
        %v2684 = vadd.f32 %v1044, %v2681
        %v2685 = vtanh.pop %v2684
        %v2687 = vsel %vm579, %v2610, 0
        %2689 = vmatprep.subr.mxu0 0.0
        %2690 = vmatpush1.msra.mxu0 %v321
        %2691 = vmatprep.subr.mxu0 0.0
        %2692 = vmatpush1.msra.mxu0 %v322
        %2693 = vmatprep.subr.mxu0 0.0
        %2694 = vmatpush1.msra.mxu0 %v323
        %2695 = vmatprep.subr.mxu0 0.0
        %2696 = vmatpush1.msra.mxu0 %v324
        %2697 = vmatprep.subr.mxu0 0.0
        %2698 = vmatpush1.msra.mxu0 0.0
        %2699 = vmatprep.subr.mxu0 0.0
        %2700 = vmatpush1.msra.mxu0 0.0
        %2701 = vmatprep.subr.mxu0 0.0
        %2702 = vmatpush1.msra.mxu0 0.0
        %2703 = vmatprep.subr.mxu0 0.0
        %2704 = vmatpush1.msra.mxu0 0.0
        %2705 = vmatprep.subr.mxu0 0.0
        %2706 = vmatpush1.msra.mxu0 0.0
        %2707 = vmatprep.subr.mxu0 0.0
        %2708 = vmatpush1.msra.mxu0 0.0
        %2709 = vmatprep.subr.mxu0 0.0
        %2710 = vmatpush1.msra.mxu0 0.0
        %2711 = vmatprep.subr.mxu0 0.0
        %2712 = vmatpush1.msra.mxu0 0.0
        %2713 = vmatprep.subr.mxu0 0.0
        %2714 = vmatpush1.msra.mxu0 0.0
        %2715 = vmatprep.subr.mxu0 0.0
        %2716 = vmatpush1.msra.mxu0 0.0
        %2717 = vmatprep.subr.mxu0 0.0
        %2718 = vmatpush1.msra.mxu0 0.0
        %2719 = vmatprep.subr.mxu0 0.0
        %2720 = vmatpush1.msra.mxu0 0.0
        %2721 = vmatprep.subr.mxu0 0.0
        %2722 = vmatpush1.msra.mxu0 0.0
        %2723 = vmatprep.subr.mxu0 0.0
        %2724 = vmatpush1.msra.mxu0 0.0
        %2725 = vmatprep.subr.mxu0 0.0
        %2726 = vmatpush1.msra.mxu0 0.0
        %2727 = vmatprep.subr.mxu0 0.0
        %2728 = vmatpush1.msra.mxu0 0.0
        %2729 = vmatprep.subr.mxu0 0.0
        %2730 = vmatpush1.msra.mxu0 0.0
        %2731 = vmatprep.subr.mxu0 0.0
        %2732 = vmatpush1.msra.mxu0 0.0
        %2733 = vmatprep.subr.mxu0 0.0
        %2734 = vmatpush1.msra.mxu0 0.0
        %2735 = vmatprep.subr.mxu0 0.0
        %2736 = vmatpush1.msra.mxu0 0.0
        %2737 = vmatprep.subr.mxu0 0.0
        %2738 = vmatpush1.msra.mxu0 0.0
        %2739 = vmatprep.subr.mxu0 0.0
        %2740 = vmatpush1.msra.mxu0 0.0
        %2741 = vmatprep.subr.mxu0 0.0
        %2742 = vmatpush1.msra.mxu0 0.0
        %2743 = vmatprep.subr.mxu0 0.0
        %2744 = vmatpush1.msra.mxu0 0.0
        %2745 = vmatprep.subr.mxu0 0.0
        %2746 = vmatpush1.msra.mxu0 0.0
        %2747 = vmatprep.subr.mxu0 0.0
        %2748 = vmatpush1.msra.mxu0 0.0
        %2749 = vmatprep.subr.mxu0 0.0
        %2750 = vmatpush1.msra.mxu0 0.0
        %2751 = vmatprep.subr.mxu0 0.0
        %2752 = vmatpush1.msra.mxu0 0.0
        %2753 = vmatprep.mubr.f32.mxu0 0.0
        %2754 = vmatmul.mubr.f32.gmra.mrb[0].mxu0 %v2687
        %v2755 = vpop.f32.mrb[0].mxu0
        %v2756 = vadd.f32 0.0, %v2755
        %v2757 = vpop.f32.mrb[0].mxu0
        %2758 = vdwg.mxu0
        %v2759 = vadd.f32 %v1049, %v2756
        %v2760 = vtanh.pop %v2759
        %v2762 = vsel %vm579, %v2685, 0
        %2764 = vmatprep.subr.mxu0 0.0
        %2765 = vmatpush1.msra.mxu0 %v321
        %2766 = vmatprep.subr.mxu0 0.0
        %2767 = vmatpush1.msra.mxu0 %v322
        %2768 = vmatprep.subr.mxu0 0.0
        %2769 = vmatpush1.msra.mxu0 %v323
        %2770 = vmatprep.subr.mxu0 0.0
        %2771 = vmatpush1.msra.mxu0 %v324
        %2772 = vmatprep.subr.mxu0 0.0
        %2773 = vmatpush1.msra.mxu0 0.0
        %2774 = vmatprep.subr.mxu0 0.0
        %2775 = vmatpush1.msra.mxu0 0.0
        %2776 = vmatprep.subr.mxu0 0.0
        %2777 = vmatpush1.msra.mxu0 0.0
        %2778 = vmatprep.subr.mxu0 0.0
        %2779 = vmatpush1.msra.mxu0 0.0
        %2780 = vmatprep.subr.mxu0 0.0
        %2781 = vmatpush1.msra.mxu0 0.0
        %2782 = vmatprep.subr.mxu0 0.0
        %2783 = vmatpush1.msra.mxu0 0.0
        %2784 = vmatprep.subr.mxu0 0.0
        %2785 = vmatpush1.msra.mxu0 0.0
        %2786 = vmatprep.subr.mxu0 0.0
        %2787 = vmatpush1.msra.mxu0 0.0
        %2788 = vmatprep.subr.mxu0 0.0
        %2789 = vmatpush1.msra.mxu0 0.0
        %2790 = vmatprep.subr.mxu0 0.0
        %2791 = vmatpush1.msra.mxu0 0.0
        %2792 = vmatprep.subr.mxu0 0.0
        %2793 = vmatpush1.msra.mxu0 0.0
        %2794 = vmatprep.subr.mxu0 0.0
        %2795 = vmatpush1.msra.mxu0 0.0
        %2796 = vmatprep.subr.mxu0 0.0
        %2797 = vmatpush1.msra.mxu0 0.0
        %2798 = vmatprep.subr.mxu0 0.0
        %2799 = vmatpush1.msra.mxu0 0.0
        %2800 = vmatprep.subr.mxu0 0.0
        %2801 = vmatpush1.msra.mxu0 0.0
        %2802 = vmatprep.subr.mxu0 0.0
        %2803 = vmatpush1.msra.mxu0 0.0
        %2804 = vmatprep.subr.mxu0 0.0
        %2805 = vmatpush1.msra.mxu0 0.0
        %2806 = vmatprep.subr.mxu0 0.0
        %2807 = vmatpush1.msra.mxu0 0.0
        %2808 = vmatprep.subr.mxu0 0.0
        %2809 = vmatpush1.msra.mxu0 0.0
        %2810 = vmatprep.subr.mxu0 0.0
        %2811 = vmatpush1.msra.mxu0 0.0
        %2812 = vmatprep.subr.mxu0 0.0
        %2813 = vmatpush1.msra.mxu0 0.0
        %2814 = vmatprep.subr.mxu0 0.0
        %2815 = vmatpush1.msra.mxu0 0.0
        %2816 = vmatprep.subr.mxu0 0.0
        %2817 = vmatpush1.msra.mxu0 0.0
        %2818 = vmatprep.subr.mxu0 0.0
        %2819 = vmatpush1.msra.mxu0 0.0
        %2820 = vmatprep.subr.mxu0 0.0
        %2821 = vmatpush1.msra.mxu0 0.0
        %2822 = vmatprep.subr.mxu0 0.0
        %2823 = vmatpush1.msra.mxu0 0.0
        %2824 = vmatprep.subr.mxu0 0.0
        %2825 = vmatpush1.msra.mxu0 0.0
        %2826 = vmatprep.subr.mxu0 0.0
        %2827 = vmatpush1.msra.mxu0 0.0
        %2828 = vmatprep.mubr.f32.mxu0 0.0
        %2829 = vmatmul.mubr.f32.gmra.mrb[0].mxu0 %v2762
        %v2830 = vpop.f32.mrb[0].mxu0
        %v2831 = vadd.f32 0.0, %v2830
        %v2832 = vpop.f32.mrb[0].mxu0
        %2833 = vdwg.mxu0
        %v2834 = vadd.f32 %v1054, %v2831
        %v2835 = vtanh.pop %v2834
        %v2837 = vsel %vm579, %v2760, 0
        %2839 = vmatprep.subr.mxu0 0.0
        %2840 = vmatpush1.msra.mxu0 %v321
        %2841 = vmatprep.subr.mxu0 0.0
        %2842 = vmatpush1.msra.mxu0 %v322
        %2843 = vmatprep.subr.mxu0 0.0
        %2844 = vmatpush1.msra.mxu0 %v323
        %2845 = vmatprep.subr.mxu0 0.0
        %2846 = vmatpush1.msra.mxu0 %v324
        %2847 = vmatprep.subr.mxu0 0.0
        %2848 = vmatpush1.msra.mxu0 0.0
        %2849 = vmatprep.subr.mxu0 0.0
        %2850 = vmatpush1.msra.mxu0 0.0
        %2851 = vmatprep.subr.mxu0 0.0
        %2852 = vmatpush1.msra.mxu0 0.0
        %2853 = vmatprep.subr.mxu0 0.0
        %2854 = vmatpush1.msra.mxu0 0.0
        %2855 = vmatprep.subr.mxu0 0.0
        %2856 = vmatpush1.msra.mxu0 0.0
        %2857 = vmatprep.subr.mxu0 0.0
        %2858 = vmatpush1.msra.mxu0 0.0
        %2859 = vmatprep.subr.mxu0 0.0
        %2860 = vmatpush1.msra.mxu0 0.0
        %2861 = vmatprep.subr.mxu0 0.0
        %2862 = vmatpush1.msra.mxu0 0.0
        %2863 = vmatprep.subr.mxu0 0.0
        %2864 = vmatpush1.msra.mxu0 0.0
        %2865 = vmatprep.subr.mxu0 0.0
        %2866 = vmatpush1.msra.mxu0 0.0
        %2867 = vmatprep.subr.mxu0 0.0
        %2868 = vmatpush1.msra.mxu0 0.0
        %2869 = vmatprep.subr.mxu0 0.0
        %2870 = vmatpush1.msra.mxu0 0.0
        %2871 = vmatprep.subr.mxu0 0.0
        %2872 = vmatpush1.msra.mxu0 0.0
        %2873 = vmatprep.subr.mxu0 0.0
        %2874 = vmatpush1.msra.mxu0 0.0
        %2875 = vmatprep.subr.mxu0 0.0
        %2876 = vmatpush1.msra.mxu0 0.0
        %2877 = vmatprep.subr.mxu0 0.0
        %2878 = vmatpush1.msra.mxu0 0.0
        %2879 = vmatprep.subr.mxu0 0.0
        %2880 = vmatpush1.msra.mxu0 0.0
        %2881 = vmatprep.subr.mxu0 0.0
        %2882 = vmatpush1.msra.mxu0 0.0
        %2883 = vmatprep.subr.mxu0 0.0
        %2884 = vmatpush1.msra.mxu0 0.0
        %2885 = vmatprep.subr.mxu0 0.0
        %2886 = vmatpush1.msra.mxu0 0.0
        %2887 = vmatprep.subr.mxu0 0.0
        %2888 = vmatpush1.msra.mxu0 0.0
        %2889 = vmatprep.subr.mxu0 0.0
        %2890 = vmatpush1.msra.mxu0 0.0
        %2891 = vmatprep.subr.mxu0 0.0
        %2892 = vmatpush1.msra.mxu0 0.0
        %2893 = vmatprep.subr.mxu0 0.0
        %2894 = vmatpush1.msra.mxu0 0.0
        %2895 = vmatprep.subr.mxu0 0.0
        %2896 = vmatpush1.msra.mxu0 0.0
        %2897 = vmatprep.subr.mxu0 0.0
        %2898 = vmatpush1.msra.mxu0 0.0
        %2899 = vmatprep.subr.mxu0 0.0
        %2900 = vmatpush1.msra.mxu0 0.0
        %2901 = vmatprep.subr.mxu0 0.0
        %2902 = vmatpush1.msra.mxu0 0.0
        %2903 = vmatprep.mubr.f32.mxu0 0.0
        %2904 = vmatmul.mubr.f32.gmra.mrb[0].mxu0 %v2837
        %v2905 = vpop.f32.mrb[0].mxu0
        %v2906 = vadd.f32 0.0, %v2905
        %v2907 = vpop.f32.mrb[0].mxu0
        %2908 = vdwg.mxu0
        %v2909 = vadd.f32 %v1059, %v2906
        %v2910 = vtanh.pop %v2909
        %v2912 = vsel %vm579, %v2835, 0
        %2914 = vmatprep.subr.mxu0 0.0
        %2915 = vmatpush1.msra.mxu0 %v321
        %2916 = vmatprep.subr.mxu0 0.0
        %2917 = vmatpush1.msra.mxu0 %v322
        %2918 = vmatprep.subr.mxu0 0.0
        %2919 = vmatpush1.msra.mxu0 %v323
        %2920 = vmatprep.subr.mxu0 0.0
        %2921 = vmatpush1.msra.mxu0 %v324
        %2922 = vmatprep.subr.mxu0 0.0
        %2923 = vmatpush1.msra.mxu0 0.0
        %2924 = vmatprep.subr.mxu0 0.0
        %2925 = vmatpush1.msra.mxu0 0.0
        %2926 = vmatprep.subr.mxu0 0.0
        %2927 = vmatpush1.msra.mxu0 0.0
        %2928 = vmatprep.subr.mxu0 0.0
        %2929 = vmatpush1.msra.mxu0 0.0
        %2930 = vmatprep.subr.mxu0 0.0
        %2931 = vmatpush1.msra.mxu0 0.0
        %2932 = vmatprep.subr.mxu0 0.0
        %2933 = vmatpush1.msra.mxu0 0.0
        %2934 = vmatprep.subr.mxu0 0.0
        %2935 = vmatpush1.msra.mxu0 0.0
        %2936 = vmatprep.subr.mxu0 0.0
        %2937 = vmatpush1.msra.mxu0 0.0
        %2938 = vmatprep.subr.mxu0 0.0
        %2939 = vmatpush1.msra.mxu0 0.0
        %2940 = vmatprep.subr.mxu0 0.0
        %2941 = vmatpush1.msra.mxu0 0.0
        %2942 = vmatprep.subr.mxu0 0.0
        %2943 = vmatpush1.msra.mxu0 0.0
        %2944 = vmatprep.subr.mxu0 0.0
        %2945 = vmatpush1.msra.mxu0 0.0
        %2946 = vmatprep.subr.mxu0 0.0
        %2947 = vmatpush1.msra.mxu0 0.0
        %2948 = vmatprep.subr.mxu0 0.0
        %2949 = vmatpush1.msra.mxu0 0.0
        %2950 = vmatprep.subr.mxu0 0.0
        %2951 = vmatpush1.msra.mxu0 0.0
        %2952 = vmatprep.subr.mxu0 0.0
        %2953 = vmatpush1.msra.mxu0 0.0
        %2954 = vmatprep.subr.mxu0 0.0
        %2955 = vmatpush1.msra.mxu0 0.0
        %2956 = vmatprep.subr.mxu0 0.0
        %2957 = vmatpush1.msra.mxu0 0.0
        %2958 = vmatprep.subr.mxu0 0.0
        %2959 = vmatpush1.msra.mxu0 0.0
        %2960 = vmatprep.subr.mxu0 0.0
        %2961 = vmatpush1.msra.mxu0 0.0
        %2962 = vmatprep.subr.mxu0 0.0
        %2963 = vmatpush1.msra.mxu0 0.0
        %2964 = vmatprep.subr.mxu0 0.0
        %2965 = vmatpush1.msra.mxu0 0.0
        %2966 = vmatprep.subr.mxu0 0.0
        %2967 = vmatpush1.msra.mxu0 0.0
        %2968 = vmatprep.subr.mxu0 0.0
        %2969 = vmatpush1.msra.mxu0 0.0
        %2970 = vmatprep.subr.mxu0 0.0
        %2971 = vmatpush1.msra.mxu0 0.0
        %2972 = vmatprep.subr.mxu0 0.0
        %2973 = vmatpush1.msra.mxu0 0.0
        %2974 = vmatprep.subr.mxu0 0.0
        %2975 = vmatpush1.msra.mxu0 0.0
        %2976 = vmatprep.subr.mxu0 0.0
        %2977 = vmatpush1.msra.mxu0 0.0
        %2978 = vmatprep.mubr.f32.mxu0 0.0
        %2979 = vmatmul.mubr.f32.gmra.mrb[0].mxu0 %v2912
        %v2980 = vpop.f32.mrb[0].mxu0
        %v2981 = vadd.f32 0.0, %v2980
        %v2982 = vpop.f32.mrb[0].mxu0
        %2983 = vdwg.mxu0
        %v2984 = vadd.f32 %v1385, %v2981
        %v2985 = vtanh.pop %v2984
        %v2987 = vsel %vm579, %v2910, 0
        %2989 = vmatprep.subr.mxu0 0.0
        %2990 = vmatpush1.msra.mxu0 %v321
        %2991 = vmatprep.subr.mxu0 0.0
        %2992 = vmatpush1.msra.mxu0 %v322
        %2993 = vmatprep.subr.mxu0 0.0
        %2994 = vmatpush1.msra.mxu0 %v323
        %2995 = vmatprep.subr.mxu0 0.0
        %2996 = vmatpush1.msra.mxu0 %v324
        %2997 = vmatprep.subr.mxu0 0.0
        %2998 = vmatpush1.msra.mxu0 0.0
        %2999 = vmatprep.subr.mxu0 0.0
        %3000 = vmatpush1.msra.mxu0 0.0
        %3001 = vmatprep.subr.mxu0 0.0
        %3002 = vmatpush1.msra.mxu0 0.0
        %3003 = vmatprep.subr.mxu0 0.0
        %3004 = vmatpush1.msra.mxu0 0.0
        %3005 = vmatprep.subr.mxu0 0.0
        %3006 = vmatpush1.msra.mxu0 0.0
        %3007 = vmatprep.subr.mxu0 0.0
        %3008 = vmatpush1.msra.mxu0 0.0
        %3009 = vmatprep.subr.mxu0 0.0
        %3010 = vmatpush1.msra.mxu0 0.0
        %3011 = vmatprep.subr.mxu0 0.0
        %3012 = vmatpush1.msra.mxu0 0.0
        %3013 = vmatprep.subr.mxu0 0.0
        %3014 = vmatpush1.msra.mxu0 0.0
        %3015 = vmatprep.subr.mxu0 0.0
        %3016 = vmatpush1.msra.mxu0 0.0
        %3017 = vmatprep.subr.mxu0 0.0
        %3018 = vmatpush1.msra.mxu0 0.0
        %3019 = vmatprep.subr.mxu0 0.0
        %3020 = vmatpush1.msra.mxu0 0.0
        %3021 = vmatprep.subr.mxu0 0.0
        %3022 = vmatpush1.msra.mxu0 0.0
        %3023 = vmatprep.subr.mxu0 0.0
        %3024 = vmatpush1.msra.mxu0 0.0
        %3025 = vmatprep.subr.mxu0 0.0
        %3026 = vmatpush1.msra.mxu0 0.0
        %3027 = vmatprep.subr.mxu0 0.0
        %3028 = vmatpush1.msra.mxu0 0.0
        %3029 = vmatprep.subr.mxu0 0.0
        %3030 = vmatpush1.msra.mxu0 0.0
        %3031 = vmatprep.subr.mxu0 0.0
        %3032 = vmatpush1.msra.mxu0 0.0
        %3033 = vmatprep.subr.mxu0 0.0
        %3034 = vmatpush1.msra.mxu0 0.0
        %3035 = vmatprep.subr.mxu0 0.0
        %3036 = vmatpush1.msra.mxu0 0.0
        %3037 = vmatprep.subr.mxu0 0.0
        %3038 = vmatpush1.msra.mxu0 0.0
        %3039 = vmatprep.subr.mxu0 0.0
        %3040 = vmatpush1.msra.mxu0 0.0
        %3041 = vmatprep.subr.mxu0 0.0
        %3042 = vmatpush1.msra.mxu0 0.0
        %3043 = vmatprep.subr.mxu0 0.0
        %3044 = vmatpush1.msra.mxu0 0.0
        %3045 = vmatprep.subr.mxu0 0.0
        %3046 = vmatpush1.msra.mxu0 0.0
        %3047 = vmatprep.subr.mxu0 0.0
        %3048 = vmatpush1.msra.mxu0 0.0
        %3049 = vmatprep.subr.mxu0 0.0
        %3050 = vmatpush1.msra.mxu0 0.0
        %3051 = vmatprep.subr.mxu0 0.0
        %3052 = vmatpush1.msra.mxu0 0.0
        %3053 = vmatprep.mubr.f32.mxu0 0.0
        %3054 = vmatmul.mubr.f32.gmra.mrb[0].mxu0 %v2987
        %v3055 = vpop.f32.mrb[0].mxu0
        %v3056 = vadd.f32 0.0, %v3055
        %v3057 = vpop.f32.mrb[0].mxu0
        %3058 = vdwg.mxu0
        %v3059 = vadd.f32 %v1390, %v3056
        %v3060 = vtanh.pop %v3059
        %v3062 = vsel %vm579, %v2985, 0
        %3064 = vmatprep.subr.mxu0 0.0
        %3065 = vmatpush1.msra.mxu0 %v321
        %3066 = vmatprep.subr.mxu0 0.0
        %3067 = vmatpush1.msra.mxu0 %v322
        %3068 = vmatprep.subr.mxu0 0.0
        %3069 = vmatpush1.msra.mxu0 %v323
        %3070 = vmatprep.subr.mxu0 0.0
        %3071 = vmatpush1.msra.mxu0 %v324
        %3072 = vmatprep.subr.mxu0 0.0
        %3073 = vmatpush1.msra.mxu0 0.0
        %3074 = vmatprep.subr.mxu0 0.0
        %3075 = vmatpush1.msra.mxu0 0.0
        %3076 = vmatprep.subr.mxu0 0.0
        %3077 = vmatpush1.msra.mxu0 0.0
        %3078 = vmatprep.subr.mxu0 0.0
        %3079 = vmatpush1.msra.mxu0 0.0
        %3080 = vmatprep.subr.mxu0 0.0
        %3081 = vmatpush1.msra.mxu0 0.0
        %3082 = vmatprep.subr.mxu0 0.0
        %3083 = vmatpush1.msra.mxu0 0.0
        %3084 = vmatprep.subr.mxu0 0.0
        %3085 = vmatpush1.msra.mxu0 0.0
        %3086 = vmatprep.subr.mxu0 0.0
        %3087 = vmatpush1.msra.mxu0 0.0
        %3088 = vmatprep.subr.mxu0 0.0
        %3089 = vmatpush1.msra.mxu0 0.0
        %3090 = vmatprep.subr.mxu0 0.0
        %3091 = vmatpush1.msra.mxu0 0.0
        %3092 = vmatprep.subr.mxu0 0.0
        %3093 = vmatpush1.msra.mxu0 0.0
        %3094 = vmatprep.subr.mxu0 0.0
        %3095 = vmatpush1.msra.mxu0 0.0
        %3096 = vmatprep.subr.mxu0 0.0
        %3097 = vmatpush1.msra.mxu0 0.0
        %3098 = vmatprep.subr.mxu0 0.0
        %3099 = vmatpush1.msra.mxu0 0.0
        %3100 = vmatprep.subr.mxu0 0.0
        %3101 = vmatpush1.msra.mxu0 0.0
        %3102 = vmatprep.subr.mxu0 0.0
        %3103 = vmatpush1.msra.mxu0 0.0
        %3104 = vmatprep.subr.mxu0 0.0
        %3105 = vmatpush1.msra.mxu0 0.0
        %3106 = vmatprep.subr.mxu0 0.0
        %3107 = vmatpush1.msra.mxu0 0.0
        %3108 = vmatprep.subr.mxu0 0.0
        %3109 = vmatpush1.msra.mxu0 0.0
        %3110 = vmatprep.subr.mxu0 0.0
        %3111 = vmatpush1.msra.mxu0 0.0
        %3112 = vmatprep.subr.mxu0 0.0
        %3113 = vmatpush1.msra.mxu0 0.0
        %3114 = vmatprep.subr.mxu0 0.0
        %3115 = vmatpush1.msra.mxu0 0.0
        %3116 = vmatprep.subr.mxu0 0.0
        %3117 = vmatpush1.msra.mxu0 0.0
        %3118 = vmatprep.subr.mxu0 0.0
        %3119 = vmatpush1.msra.mxu0 0.0
        %3120 = vmatprep.subr.mxu0 0.0
        %3121 = vmatpush1.msra.mxu0 0.0
        %3122 = vmatprep.subr.mxu0 0.0
        %3123 = vmatpush1.msra.mxu0 0.0
        %3124 = vmatprep.subr.mxu0 0.0
        %3125 = vmatpush1.msra.mxu0 0.0
        %3126 = vmatprep.subr.mxu0 0.0
        %3127 = vmatpush1.msra.mxu0 0.0
        %3128 = vmatprep.mubr.f32.mxu0 0.0
        %3129 = vmatmul.mubr.f32.gmra.mrb[0].mxu0 %v3062
        %v3130 = vpop.f32.mrb[0].mxu0
        %v3131 = vadd.f32 0.0, %v3130
        %v3132 = vpop.f32.mrb[0].mxu0
        %3133 = vdwg.mxu0
        %v3134 = vadd.f32 %v1395, %v3131
        %v3135 = vtanh.pop %v3134
        %v3137 = vsel %vm579, %v3060, 0
        %3139 = vmatprep.subr.mxu0 0.0
        %3140 = vmatpush1.msra.mxu0 %v321
        %3141 = vmatprep.subr.mxu0 0.0
        %3142 = vmatpush1.msra.mxu0 %v322
        %3143 = vmatprep.subr.mxu0 0.0
        %3144 = vmatpush1.msra.mxu0 %v323
        %3145 = vmatprep.subr.mxu0 0.0
        %3146 = vmatpush1.msra.mxu0 %v324
        %3147 = vmatprep.subr.mxu0 0.0
        %3148 = vmatpush1.msra.mxu0 0.0
        %3149 = vmatprep.subr.mxu0 0.0
        %3150 = vmatpush1.msra.mxu0 0.0
        %3151 = vmatprep.subr.mxu0 0.0
        %3152 = vmatpush1.msra.mxu0 0.0
        %3153 = vmatprep.subr.mxu0 0.0
        %3154 = vmatpush1.msra.mxu0 0.0
        %3155 = vmatprep.subr.mxu0 0.0
        %3156 = vmatpush1.msra.mxu0 0.0
        %3157 = vmatprep.subr.mxu0 0.0
        %3158 = vmatpush1.msra.mxu0 0.0
        %3159 = vmatprep.subr.mxu0 0.0
        %3160 = vmatpush1.msra.mxu0 0.0
        %3161 = vmatprep.subr.mxu0 0.0
        %3162 = vmatpush1.msra.mxu0 0.0
        %3163 = vmatprep.subr.mxu0 0.0
        %3164 = vmatpush1.msra.mxu0 0.0
        %3165 = vmatprep.subr.mxu0 0.0
        %3166 = vmatpush1.msra.mxu0 0.0
        %3167 = vmatprep.subr.mxu0 0.0
        %3168 = vmatpush1.msra.mxu0 0.0
        %3169 = vmatprep.subr.mxu0 0.0
        %3170 = vmatpush1.msra.mxu0 0.0
        %3171 = vmatprep.subr.mxu0 0.0
        %3172 = vmatpush1.msra.mxu0 0.0
        %3173 = vmatprep.subr.mxu0 0.0
        %3174 = vmatpush1.msra.mxu0 0.0
        %3175 = vmatprep.subr.mxu0 0.0
        %3176 = vmatpush1.msra.mxu0 0.0
        %3177 = vmatprep.subr.mxu0 0.0
        %3178 = vmatpush1.msra.mxu0 0.0
        %3179 = vmatprep.subr.mxu0 0.0
        %3180 = vmatpush1.msra.mxu0 0.0
        %3181 = vmatprep.subr.mxu0 0.0
        %3182 = vmatpush1.msra.mxu0 0.0
        %3183 = vmatprep.subr.mxu0 0.0
        %3184 = vmatpush1.msra.mxu0 0.0
        %3185 = vmatprep.subr.mxu0 0.0
        %3186 = vmatpush1.msra.mxu0 0.0
        %3187 = vmatprep.subr.mxu0 0.0
        %3188 = vmatpush1.msra.mxu0 0.0
        %3189 = vmatprep.subr.mxu0 0.0
        %3190 = vmatpush1.msra.mxu0 0.0
        %3191 = vmatprep.subr.mxu0 0.0
        %3192 = vmatpush1.msra.mxu0 0.0
        %3193 = vmatprep.subr.mxu0 0.0
        %3194 = vmatpush1.msra.mxu0 0.0
        %3195 = vmatprep.subr.mxu0 0.0
        %3196 = vmatpush1.msra.mxu0 0.0
        %3197 = vmatprep.subr.mxu0 0.0
        %3198 = vmatpush1.msra.mxu0 0.0
        %3199 = vmatprep.subr.mxu0 0.0
        %3200 = vmatpush1.msra.mxu0 0.0
        %3201 = vmatprep.subr.mxu0 0.0
        %3202 = vmatpush1.msra.mxu0 0.0
        %3203 = vmatprep.mubr.f32.mxu0 0.0
        %3204 = vmatmul.mubr.f32.gmra.mrb[0].mxu0 %v3137
        %v3205 = vpop.f32.mrb[0].mxu0
        %v3206 = vadd.f32 0.0, %v3205
        %v3207 = vpop.f32.mrb[0].mxu0
        %3208 = vdwg.mxu0
        %v3209 = vadd.f32 %v1400, %v3206
        %v3210 = vtanh.pop %v3209
        %v3212 = vsel %vm579, %v3135, 0
        %3214 = vmatprep.subr.mxu0 0.0
        %3215 = vmatpush1.msra.mxu0 %v321
        %3216 = vmatprep.subr.mxu0 0.0
        %3217 = vmatpush1.msra.mxu0 %v322
        %3218 = vmatprep.subr.mxu0 0.0
        %3219 = vmatpush1.msra.mxu0 %v323
        %3220 = vmatprep.subr.mxu0 0.0
        %3221 = vmatpush1.msra.mxu0 %v324
        %3222 = vmatprep.subr.mxu0 0.0
        %3223 = vmatpush1.msra.mxu0 0.0
        %3224 = vmatprep.subr.mxu0 0.0
        %3225 = vmatpush1.msra.mxu0 0.0
        %3226 = vmatprep.subr.mxu0 0.0
        %3227 = vmatpush1.msra.mxu0 0.0
        %3228 = vmatprep.subr.mxu0 0.0
        %3229 = vmatpush1.msra.mxu0 0.0
        %3230 = vmatprep.subr.mxu0 0.0
        %3231 = vmatpush1.msra.mxu0 0.0
        %3232 = vmatprep.subr.mxu0 0.0
        %3233 = vmatpush1.msra.mxu0 0.0
        %3234 = vmatprep.subr.mxu0 0.0
        %3235 = vmatpush1.msra.mxu0 0.0
        %3236 = vmatprep.subr.mxu0 0.0
        %3237 = vmatpush1.msra.mxu0 0.0
        %3238 = vmatprep.subr.mxu0 0.0
        %3239 = vmatpush1.msra.mxu0 0.0
        %3240 = vmatprep.subr.mxu0 0.0
        %3241 = vmatpush1.msra.mxu0 0.0
        %3242 = vmatprep.subr.mxu0 0.0
        %3243 = vmatpush1.msra.mxu0 0.0
        %3244 = vmatprep.subr.mxu0 0.0
        %3245 = vmatpush1.msra.mxu0 0.0
        %3246 = vmatprep.subr.mxu0 0.0
        %3247 = vmatpush1.msra.mxu0 0.0
        %3248 = vmatprep.subr.mxu0 0.0
        %3249 = vmatpush1.msra.mxu0 0.0
        %3250 = vmatprep.subr.mxu0 0.0
        %3251 = vmatpush1.msra.mxu0 0.0
        %3252 = vmatprep.subr.mxu0 0.0
        %3253 = vmatpush1.msra.mxu0 0.0
        %3254 = vmatprep.subr.mxu0 0.0
        %3255 = vmatpush1.msra.mxu0 0.0
        %3256 = vmatprep.subr.mxu0 0.0
        %3257 = vmatpush1.msra.mxu0 0.0
        %3258 = vmatprep.subr.mxu0 0.0
        %3259 = vmatpush1.msra.mxu0 0.0
        %3260 = vmatprep.subr.mxu0 0.0
        %3261 = vmatpush1.msra.mxu0 0.0
        %3262 = vmatprep.subr.mxu0 0.0
        %3263 = vmatpush1.msra.mxu0 0.0
        %3264 = vmatprep.subr.mxu0 0.0
        %3265 = vmatpush1.msra.mxu0 0.0
        %3266 = vmatprep.subr.mxu0 0.0
        %3267 = vmatpush1.msra.mxu0 0.0
        %3268 = vmatprep.subr.mxu0 0.0
        %3269 = vmatpush1.msra.mxu0 0.0
        %3270 = vmatprep.subr.mxu0 0.0
        %3271 = vmatpush1.msra.mxu0 0.0
        %3272 = vmatprep.subr.mxu0 0.0
        %3273 = vmatpush1.msra.mxu0 0.0
        %3274 = vmatprep.subr.mxu0 0.0
        %3275 = vmatpush1.msra.mxu0 0.0
        %3276 = vmatprep.subr.mxu0 0.0
        %3277 = vmatpush1.msra.mxu0 0.0
        %3278 = vmatprep.mubr.f32.mxu0 0.0
        %3279 = vmatmul.mubr.f32.gmra.mrb[0].mxu0 %v3212
        %v3280 = vpop.f32.mrb[0].mxu0
        %v3281 = vadd.f32 0.0, %v3280
        %v3282 = vpop.f32.mrb[0].mxu0
        %3283 = vdwg.mxu0
        %v3284 = vadd.f32 %v1405, %v3281
        %v3285 = vtanh.pop %v3284
        %v3287 = vsel %vm579, %v3210, 0
        %3289 = vmatprep.subr.mxu0 0.0
        %3290 = vmatpush1.msra.mxu0 %v321
        %3291 = vmatprep.subr.mxu0 0.0
        %3292 = vmatpush1.msra.mxu0 %v322
        %3293 = vmatprep.subr.mxu0 0.0
        %3294 = vmatpush1.msra.mxu0 %v323
        %3295 = vmatprep.subr.mxu0 0.0
        %3296 = vmatpush1.msra.mxu0 %v324
        %3297 = vmatprep.subr.mxu0 0.0
        %3298 = vmatpush1.msra.mxu0 0.0
        %3299 = vmatprep.subr.mxu0 0.0
        %3300 = vmatpush1.msra.mxu0 0.0
        %3301 = vmatprep.subr.mxu0 0.0
        %3302 = vmatpush1.msra.mxu0 0.0
        %3303 = vmatprep.subr.mxu0 0.0
        %3304 = vmatpush1.msra.mxu0 0.0
        %3305 = vmatprep.subr.mxu0 0.0
        %3306 = vmatpush1.msra.mxu0 0.0
        %3307 = vmatprep.subr.mxu0 0.0
        %3308 = vmatpush1.msra.mxu0 0.0
        %3309 = vmatprep.subr.mxu0 0.0
        %3310 = vmatpush1.msra.mxu0 0.0
        %3311 = vmatprep.subr.mxu0 0.0
        %3312 = vmatpush1.msra.mxu0 0.0
        %3313 = vmatprep.subr.mxu0 0.0
        %3314 = vmatpush1.msra.mxu0 0.0
        %3315 = vmatprep.subr.mxu0 0.0
        %3316 = vmatpush1.msra.mxu0 0.0
        %3317 = vmatprep.subr.mxu0 0.0
        %3318 = vmatpush1.msra.mxu0 0.0
        %3319 = vmatprep.subr.mxu0 0.0
        %3320 = vmatpush1.msra.mxu0 0.0
        %3321 = vmatprep.subr.mxu0 0.0
        %3322 = vmatpush1.msra.mxu0 0.0
        %3323 = vmatprep.subr.mxu0 0.0
        %3324 = vmatpush1.msra.mxu0 0.0
        %3325 = vmatprep.subr.mxu0 0.0
        %3326 = vmatpush1.msra.mxu0 0.0
        %3327 = vmatprep.subr.mxu0 0.0
        %3328 = vmatpush1.msra.mxu0 0.0
        %3329 = vmatprep.subr.mxu0 0.0
        %3330 = vmatpush1.msra.mxu0 0.0
        %3331 = vmatprep.subr.mxu0 0.0
        %3332 = vmatpush1.msra.mxu0 0.0
        %3333 = vmatprep.subr.mxu0 0.0
        %3334 = vmatpush1.msra.mxu0 0.0
        %3335 = vmatprep.subr.mxu0 0.0
        %3336 = vmatpush1.msra.mxu0 0.0
        %3337 = vmatprep.subr.mxu0 0.0
        %3338 = vmatpush1.msra.mxu0 0.0
        %3339 = vmatprep.subr.mxu0 0.0
        %3340 = vmatpush1.msra.mxu0 0.0
        %3341 = vmatprep.subr.mxu0 0.0
        %3342 = vmatpush1.msra.mxu0 0.0
        %3343 = vmatprep.subr.mxu0 0.0
        %3344 = vmatpush1.msra.mxu0 0.0
        %3345 = vmatprep.subr.mxu0 0.0
        %3346 = vmatpush1.msra.mxu0 0.0
        %3347 = vmatprep.subr.mxu0 0.0
        %3348 = vmatpush1.msra.mxu0 0.0
        %3349 = vmatprep.subr.mxu0 0.0
        %3350 = vmatpush1.msra.mxu0 0.0
        %3351 = vmatprep.subr.mxu0 0.0
        %3352 = vmatpush1.msra.mxu0 0.0
        %3353 = vmatprep.mubr.f32.mxu0 0.0
        %3354 = vmatmul.mubr.f32.gmra.mrb[0].mxu0 %v3287
        %v3355 = vpop.f32.mrb[0].mxu0
        %v3356 = vadd.f32 0.0, %v3355
        %v3357 = vpop.f32.mrb[0].mxu0
        %3358 = vdwg.mxu0
        %v3359 = vadd.f32 %v1410, %v3356
        %v3360 = vtanh.pop %v3359
        %v3362 = vsel %vm579, %v3285, 0
        %3364 = vmatprep.subr.mxu0 0.0
        %3365 = vmatpush1.msra.mxu0 %v321
        %3366 = vmatprep.subr.mxu0 0.0
        %3367 = vmatpush1.msra.mxu0 %v322
        %3368 = vmatprep.subr.mxu0 0.0
        %3369 = vmatpush1.msra.mxu0 %v323
        %3370 = vmatprep.subr.mxu0 0.0
        %3371 = vmatpush1.msra.mxu0 %v324
        %3372 = vmatprep.subr.mxu0 0.0
        %3373 = vmatpush1.msra.mxu0 0.0
        %3374 = vmatprep.subr.mxu0 0.0
        %3375 = vmatpush1.msra.mxu0 0.0
        %3376 = vmatprep.subr.mxu0 0.0
        %3377 = vmatpush1.msra.mxu0 0.0
        %3378 = vmatprep.subr.mxu0 0.0
        %3379 = vmatpush1.msra.mxu0 0.0
        %3380 = vmatprep.subr.mxu0 0.0
        %3381 = vmatpush1.msra.mxu0 0.0
        %3382 = vmatprep.subr.mxu0 0.0
        %3383 = vmatpush1.msra.mxu0 0.0
        %3384 = vmatprep.subr.mxu0 0.0
        %3385 = vmatpush1.msra.mxu0 0.0
        %3386 = vmatprep.subr.mxu0 0.0
        %3387 = vmatpush1.msra.mxu0 0.0
        %3388 = vmatprep.subr.mxu0 0.0
        %3389 = vmatpush1.msra.mxu0 0.0
        %3390 = vmatprep.subr.mxu0 0.0
        %3391 = vmatpush1.msra.mxu0 0.0
        %3392 = vmatprep.subr.mxu0 0.0
        %3393 = vmatpush1.msra.mxu0 0.0
        %3394 = vmatprep.subr.mxu0 0.0
        %3395 = vmatpush1.msra.mxu0 0.0
        %3396 = vmatprep.subr.mxu0 0.0
        %3397 = vmatpush1.msra.mxu0 0.0
        %3398 = vmatprep.subr.mxu0 0.0
        %3399 = vmatpush1.msra.mxu0 0.0
        %3400 = vmatprep.subr.mxu0 0.0
        %3401 = vmatpush1.msra.mxu0 0.0
        %3402 = vmatprep.subr.mxu0 0.0
        %3403 = vmatpush1.msra.mxu0 0.0
        %3404 = vmatprep.subr.mxu0 0.0
        %3405 = vmatpush1.msra.mxu0 0.0
        %3406 = vmatprep.subr.mxu0 0.0
        %3407 = vmatpush1.msra.mxu0 0.0
        %3408 = vmatprep.subr.mxu0 0.0
        %3409 = vmatpush1.msra.mxu0 0.0
        %3410 = vmatprep.subr.mxu0 0.0
        %3411 = vmatpush1.msra.mxu0 0.0
        %3412 = vmatprep.subr.mxu0 0.0
        %3413 = vmatpush1.msra.mxu0 0.0
        %3414 = vmatprep.subr.mxu0 0.0
        %3415 = vmatpush1.msra.mxu0 0.0
        %3416 = vmatprep.subr.mxu0 0.0
        %3417 = vmatpush1.msra.mxu0 0.0
        %3418 = vmatprep.subr.mxu0 0.0
        %3419 = vmatpush1.msra.mxu0 0.0
        %3420 = vmatprep.subr.mxu0 0.0
        %3421 = vmatpush1.msra.mxu0 0.0
        %3422 = vmatprep.subr.mxu0 0.0
        %3423 = vmatpush1.msra.mxu0 0.0
        %3424 = vmatprep.subr.mxu0 0.0
        %3425 = vmatpush1.msra.mxu0 0.0
        %3426 = vmatprep.subr.mxu0 0.0
        %3427 = vmatpush1.msra.mxu0 0.0
        %3428 = vmatprep.mubr.f32.mxu0 0.0
        %3429 = vmatmul.mubr.f32.gmra.mrb[0].mxu0 %v3362
        %v3430 = vpop.f32.mrb[0].mxu0
        %v3431 = vadd.f32 0.0, %v3430
        %v3432 = vpop.f32.mrb[0].mxu0
        %3433 = vdwg.mxu0
        %v3434 = vadd.f32 %v1415, %v3431
        %v3435 = vtanh.pop %v3434
        %v3437 = vsel %vm579, %v3360, 0
        %3439 = vmatprep.subr.mxu0 0.0
        %3440 = vmatpush1.msra.mxu0 %v321
        %3441 = vmatprep.subr.mxu0 0.0
        %3442 = vmatpush1.msra.mxu0 %v322
        %3443 = vmatprep.subr.mxu0 0.0
        %3444 = vmatpush1.msra.mxu0 %v323
        %3445 = vmatprep.subr.mxu0 0.0
        %3446 = vmatpush1.msra.mxu0 %v324
        %3447 = vmatprep.subr.mxu0 0.0
        %3448 = vmatpush1.msra.mxu0 0.0
        %3449 = vmatprep.subr.mxu0 0.0
        %3450 = vmatpush1.msra.mxu0 0.0
        %3451 = vmatprep.subr.mxu0 0.0
        %3452 = vmatpush1.msra.mxu0 0.0
        %3453 = vmatprep.subr.mxu0 0.0
        %3454 = vmatpush1.msra.mxu0 0.0
        %3455 = vmatprep.subr.mxu0 0.0
        %3456 = vmatpush1.msra.mxu0 0.0
        %3457 = vmatprep.subr.mxu0 0.0
        %3458 = vmatpush1.msra.mxu0 0.0
        %3459 = vmatprep.subr.mxu0 0.0
        %3460 = vmatpush1.msra.mxu0 0.0
        %3461 = vmatprep.subr.mxu0 0.0
        %3462 = vmatpush1.msra.mxu0 0.0
        %3463 = vmatprep.subr.mxu0 0.0
        %3464 = vmatpush1.msra.mxu0 0.0
        %3465 = vmatprep.subr.mxu0 0.0
        %3466 = vmatpush1.msra.mxu0 0.0
        %3467 = vmatprep.subr.mxu0 0.0
        %3468 = vmatpush1.msra.mxu0 0.0
        %3469 = vmatprep.subr.mxu0 0.0
        %3470 = vmatpush1.msra.mxu0 0.0
        %3471 = vmatprep.subr.mxu0 0.0
        %3472 = vmatpush1.msra.mxu0 0.0
        %3473 = vmatprep.subr.mxu0 0.0
        %3474 = vmatpush1.msra.mxu0 0.0
        %3475 = vmatprep.subr.mxu0 0.0
        %3476 = vmatpush1.msra.mxu0 0.0
        %3477 = vmatprep.subr.mxu0 0.0
        %3478 = vmatpush1.msra.mxu0 0.0
        %3479 = vmatprep.subr.mxu0 0.0
        %3480 = vmatpush1.msra.mxu0 0.0
        %3481 = vmatprep.subr.mxu0 0.0
        %3482 = vmatpush1.msra.mxu0 0.0
        %3483 = vmatprep.subr.mxu0 0.0
        %3484 = vmatpush1.msra.mxu0 0.0
        %3485 = vmatprep.subr.mxu0 0.0
        %3486 = vmatpush1.msra.mxu0 0.0
        %3487 = vmatprep.subr.mxu0 0.0
        %3488 = vmatpush1.msra.mxu0 0.0
        %3489 = vmatprep.subr.mxu0 0.0
        %3490 = vmatpush1.msra.mxu0 0.0
        %3491 = vmatprep.subr.mxu0 0.0
        %3492 = vmatpush1.msra.mxu0 0.0
        %3493 = vmatprep.subr.mxu0 0.0
        %3494 = vmatpush1.msra.mxu0 0.0
        %3495 = vmatprep.subr.mxu0 0.0
        %3496 = vmatpush1.msra.mxu0 0.0
        %3497 = vmatprep.subr.mxu0 0.0
        %3498 = vmatpush1.msra.mxu0 0.0
        %3499 = vmatprep.subr.mxu0 0.0
        %3500 = vmatpush1.msra.mxu0 0.0
        %3501 = vmatprep.subr.mxu0 0.0
        %3502 = vmatpush1.msra.mxu0 0.0
        %3503 = vmatprep.mubr.f32.mxu0 0.0
        %3504 = vmatmul.mubr.f32.gmra.mrb[0].mxu0 %v3437
        %v3505 = vpop.f32.mrb[0].mxu0
        %v3506 = vadd.f32 0.0, %v3505
        %v3507 = vpop.f32.mrb[0].mxu0
        %3508 = vdwg.mxu0
        %v3509 = vadd.f32 %v1420, %v3506
        %v3510 = vtanh.pop %v3509
        %v3512 = vsel %vm579, %v3435, 0
        %3514 = vmatprep.subr.mxu0 0.0
        %3515 = vmatpush1.msra.mxu0 %v321
        %3516 = vmatprep.subr.mxu0 0.0
        %3517 = vmatpush1.msra.mxu0 %v322
        %3518 = vmatprep.subr.mxu0 0.0
        %3519 = vmatpush1.msra.mxu0 %v323
        %3520 = vmatprep.subr.mxu0 0.0
        %3521 = vmatpush1.msra.mxu0 %v324
        %3522 = vmatprep.subr.mxu0 0.0
        %3523 = vmatpush1.msra.mxu0 0.0
        %3524 = vmatprep.subr.mxu0 0.0
        %3525 = vmatpush1.msra.mxu0 0.0
        %3526 = vmatprep.subr.mxu0 0.0
        %3527 = vmatpush1.msra.mxu0 0.0
        %3528 = vmatprep.subr.mxu0 0.0
        %3529 = vmatpush1.msra.mxu0 0.0
        %3530 = vmatprep.subr.mxu0 0.0
        %3531 = vmatpush1.msra.mxu0 0.0
        %3532 = vmatprep.subr.mxu0 0.0
        %3533 = vmatpush1.msra.mxu0 0.0
        %3534 = vmatprep.subr.mxu0 0.0
        %3535 = vmatpush1.msra.mxu0 0.0
        %3536 = vmatprep.subr.mxu0 0.0
        %3537 = vmatpush1.msra.mxu0 0.0
        %3538 = vmatprep.subr.mxu0 0.0
        %3539 = vmatpush1.msra.mxu0 0.0
        %3540 = vmatprep.subr.mxu0 0.0
        %3541 = vmatpush1.msra.mxu0 0.0
        %3542 = vmatprep.subr.mxu0 0.0
        %3543 = vmatpush1.msra.mxu0 0.0
        %3544 = vmatprep.subr.mxu0 0.0
        %3545 = vmatpush1.msra.mxu0 0.0
        %3546 = vmatprep.subr.mxu0 0.0
        %3547 = vmatpush1.msra.mxu0 0.0
        %3548 = vmatprep.subr.mxu0 0.0
        %3549 = vmatpush1.msra.mxu0 0.0
        %3550 = vmatprep.subr.mxu0 0.0
        %3551 = vmatpush1.msra.mxu0 0.0
        %3552 = vmatprep.subr.mxu0 0.0
        %3553 = vmatpush1.msra.mxu0 0.0
        %3554 = vmatprep.subr.mxu0 0.0
        %3555 = vmatpush1.msra.mxu0 0.0
        %3556 = vmatprep.subr.mxu0 0.0
        %3557 = vmatpush1.msra.mxu0 0.0
        %3558 = vmatprep.subr.mxu0 0.0
        %3559 = vmatpush1.msra.mxu0 0.0
        %3560 = vmatprep.subr.mxu0 0.0
        %3561 = vmatpush1.msra.mxu0 0.0
        %3562 = vmatprep.subr.mxu0 0.0
        %3563 = vmatpush1.msra.mxu0 0.0
        %3564 = vmatprep.subr.mxu0 0.0
        %3565 = vmatpush1.msra.mxu0 0.0
        %3566 = vmatprep.subr.mxu0 0.0
        %3567 = vmatpush1.msra.mxu0 0.0
        %3568 = vmatprep.subr.mxu0 0.0
        %3569 = vmatpush1.msra.mxu0 0.0
        %3570 = vmatprep.subr.mxu0 0.0
        %3571 = vmatpush1.msra.mxu0 0.0
        %3572 = vmatprep.subr.mxu0 0.0
        %3573 = vmatpush1.msra.mxu0 0.0
        %3574 = vmatprep.subr.mxu0 0.0
        %3575 = vmatpush1.msra.mxu0 0.0
        %3576 = vmatprep.subr.mxu0 0.0
        %3577 = vmatpush1.msra.mxu0 0.0
        %3578 = vmatprep.mubr.f32.mxu0 0.0
        %3579 = vmatmul.mubr.f32.gmra.mrb[0].mxu0 %v3512
        %v3580 = vpop.f32.mrb[0].mxu0
        %v3581 = vadd.f32 0.0, %v3580
        %v3582 = vpop.f32.mrb[0].mxu0
        %3583 = vdwg.mxu0
        %v3584 = vadd.f32 %v1746, %v3581
        %v3585 = vtanh.pop %v3584
        %v3587 = vsel %vm579, %v3510, 0
        %3589 = vmatprep.subr.mxu0 0.0
        %3590 = vmatpush1.msra.mxu0 %v321
        %3591 = vmatprep.subr.mxu0 0.0
        %3592 = vmatpush1.msra.mxu0 %v322
        %3593 = vmatprep.subr.mxu0 0.0
        %3594 = vmatpush1.msra.mxu0 %v323
        %3595 = vmatprep.subr.mxu0 0.0
        %3596 = vmatpush1.msra.mxu0 %v324
        %3597 = vmatprep.subr.mxu0 0.0
        %3598 = vmatpush1.msra.mxu0 0.0
        %3599 = vmatprep.subr.mxu0 0.0
        %3600 = vmatpush1.msra.mxu0 0.0
        %3601 = vmatprep.subr.mxu0 0.0
        %3602 = vmatpush1.msra.mxu0 0.0
        %3603 = vmatprep.subr.mxu0 0.0
        %3604 = vmatpush1.msra.mxu0 0.0
        %3605 = vmatprep.subr.mxu0 0.0
        %3606 = vmatpush1.msra.mxu0 0.0
        %3607 = vmatprep.subr.mxu0 0.0
        %3608 = vmatpush1.msra.mxu0 0.0
        %3609 = vmatprep.subr.mxu0 0.0
        %3610 = vmatpush1.msra.mxu0 0.0
        %3611 = vmatprep.subr.mxu0 0.0
        %3612 = vmatpush1.msra.mxu0 0.0
        %3613 = vmatprep.subr.mxu0 0.0
        %3614 = vmatpush1.msra.mxu0 0.0
        %3615 = vmatprep.subr.mxu0 0.0
        %3616 = vmatpush1.msra.mxu0 0.0
        %3617 = vmatprep.subr.mxu0 0.0
        %3618 = vmatpush1.msra.mxu0 0.0
        %3619 = vmatprep.subr.mxu0 0.0
        %3620 = vmatpush1.msra.mxu0 0.0
        %3621 = vmatprep.subr.mxu0 0.0
        %3622 = vmatpush1.msra.mxu0 0.0
        %3623 = vmatprep.subr.mxu0 0.0
        %3624 = vmatpush1.msra.mxu0 0.0
        %3625 = vmatprep.subr.mxu0 0.0
        %3626 = vmatpush1.msra.mxu0 0.0
        %3627 = vmatprep.subr.mxu0 0.0
        %3628 = vmatpush1.msra.mxu0 0.0
        %3629 = vmatprep.subr.mxu0 0.0
        %3630 = vmatpush1.msra.mxu0 0.0
        %3631 = vmatprep.subr.mxu0 0.0
        %3632 = vmatpush1.msra.mxu0 0.0
        %3633 = vmatprep.subr.mxu0 0.0
        %3634 = vmatpush1.msra.mxu0 0.0
        %3635 = vmatprep.subr.mxu0 0.0
        %3636 = vmatpush1.msra.mxu0 0.0
        %3637 = vmatprep.subr.mxu0 0.0
        %3638 = vmatpush1.msra.mxu0 0.0
        %3639 = vmatprep.subr.mxu0 0.0
        %3640 = vmatpush1.msra.mxu0 0.0
        %3641 = vmatprep.subr.mxu0 0.0
        %3642 = vmatpush1.msra.mxu0 0.0
        %3643 = vmatprep.subr.mxu0 0.0
        %3644 = vmatpush1.msra.mxu0 0.0
        %3645 = vmatprep.subr.mxu0 0.0
        %3646 = vmatpush1.msra.mxu0 0.0
        %3647 = vmatprep.subr.mxu0 0.0
        %3648 = vmatpush1.msra.mxu0 0.0
        %3649 = vmatprep.subr.mxu0 0.0
        %3650 = vmatpush1.msra.mxu0 0.0
        %3651 = vmatprep.subr.mxu0 0.0
        %3652 = vmatpush1.msra.mxu0 0.0
        %3653 = vmatprep.mubr.f32.mxu0 0.0
        %3654 = vmatmul.mubr.f32.gmra.mrb[0].mxu0 %v3587
        %v3655 = vpop.f32.mrb[0].mxu0
        %v3656 = vadd.f32 0.0, %v3655
        %v3657 = vpop.f32.mrb[0].mxu0
        %3658 = vdwg.mxu0
        %v3659 = vadd.f32 %v1751, %v3656
        %v3660 = vtanh.pop %v3659
        %v3662 = vsel %vm579, %v3585, 0
        %3664 = vmatprep.subr.mxu0 0.0
        %3665 = vmatpush1.msra.mxu0 %v321
        %3666 = vmatprep.subr.mxu0 0.0
        %3667 = vmatpush1.msra.mxu0 %v322
        %3668 = vmatprep.subr.mxu0 0.0
        %3669 = vmatpush1.msra.mxu0 %v323
        %3670 = vmatprep.subr.mxu0 0.0
        %3671 = vmatpush1.msra.mxu0 %v324
        %3672 = vmatprep.subr.mxu0 0.0
        %3673 = vmatpush1.msra.mxu0 0.0
        %3674 = vmatprep.subr.mxu0 0.0
        %3675 = vmatpush1.msra.mxu0 0.0
        %3676 = vmatprep.subr.mxu0 0.0
        %3677 = vmatpush1.msra.mxu0 0.0
        %3678 = vmatprep.subr.mxu0 0.0
        %3679 = vmatpush1.msra.mxu0 0.0
        %3680 = vmatprep.subr.mxu0 0.0
        %3681 = vmatpush1.msra.mxu0 0.0
        %3682 = vmatprep.subr.mxu0 0.0
        %3683 = vmatpush1.msra.mxu0 0.0
        %3684 = vmatprep.subr.mxu0 0.0
        %3685 = vmatpush1.msra.mxu0 0.0
        %3686 = vmatprep.subr.mxu0 0.0
        %3687 = vmatpush1.msra.mxu0 0.0
        %3688 = vmatprep.subr.mxu0 0.0
        %3689 = vmatpush1.msra.mxu0 0.0
        %3690 = vmatprep.subr.mxu0 0.0
        %3691 = vmatpush1.msra.mxu0 0.0
        %3692 = vmatprep.subr.mxu0 0.0
        %3693 = vmatpush1.msra.mxu0 0.0
        %3694 = vmatprep.subr.mxu0 0.0
        %3695 = vmatpush1.msra.mxu0 0.0
        %3696 = vmatprep.subr.mxu0 0.0
        %3697 = vmatpush1.msra.mxu0 0.0
        %3698 = vmatprep.subr.mxu0 0.0
        %3699 = vmatpush1.msra.mxu0 0.0
        %3700 = vmatprep.subr.mxu0 0.0
        %3701 = vmatpush1.msra.mxu0 0.0
        %3702 = vmatprep.subr.mxu0 0.0
        %3703 = vmatpush1.msra.mxu0 0.0
        %3704 = vmatprep.subr.mxu0 0.0
        %3705 = vmatpush1.msra.mxu0 0.0
        %3706 = vmatprep.subr.mxu0 0.0
        %3707 = vmatpush1.msra.mxu0 0.0
        %3708 = vmatprep.subr.mxu0 0.0
        %3709 = vmatpush1.msra.mxu0 0.0
        %3710 = vmatprep.subr.mxu0 0.0
        %3711 = vmatpush1.msra.mxu0 0.0
        %3712 = vmatprep.subr.mxu0 0.0
        %3713 = vmatpush1.msra.mxu0 0.0
        %3714 = vmatprep.subr.mxu0 0.0
        %3715 = vmatpush1.msra.mxu0 0.0
        %3716 = vmatprep.subr.mxu0 0.0
        %3717 = vmatpush1.msra.mxu0 0.0
        %3718 = vmatprep.subr.mxu0 0.0
        %3719 = vmatpush1.msra.mxu0 0.0
        %3720 = vmatprep.subr.mxu0 0.0
        %3721 = vmatpush1.msra.mxu0 0.0
        %3722 = vmatprep.subr.mxu0 0.0
        %3723 = vmatpush1.msra.mxu0 0.0
        %3724 = vmatprep.subr.mxu0 0.0
        %3725 = vmatpush1.msra.mxu0 0.0
        %3726 = vmatprep.subr.mxu0 0.0
        %3727 = vmatpush1.msra.mxu0 0.0
        %3728 = vmatprep.mubr.f32.mxu0 0.0
        %3729 = vmatmul.mubr.f32.gmra.mrb[0].mxu0 %v3662
        %v3730 = vpop.f32.mrb[0].mxu0
        %v3731 = vadd.f32 0.0, %v3730
        %v3732 = vpop.f32.mrb[0].mxu0
        %3733 = vdwg.mxu0
        %v3734 = vadd.f32 %v1756, %v3731
        %v3735 = vtanh.pop %v3734
        %v3737 = vsel %vm579, %v3660, 0
        %3739 = vmatprep.subr.mxu0 0.0
        %3740 = vmatpush1.msra.mxu0 %v321
        %3741 = vmatprep.subr.mxu0 0.0
        %3742 = vmatpush1.msra.mxu0 %v322
        %3743 = vmatprep.subr.mxu0 0.0
        %3744 = vmatpush1.msra.mxu0 %v323
        %3745 = vmatprep.subr.mxu0 0.0
        %3746 = vmatpush1.msra.mxu0 %v324
        %3747 = vmatprep.subr.mxu0 0.0
        %3748 = vmatpush1.msra.mxu0 0.0
        %3749 = vmatprep.subr.mxu0 0.0
        %3750 = vmatpush1.msra.mxu0 0.0
        %3751 = vmatprep.subr.mxu0 0.0
        %3752 = vmatpush1.msra.mxu0 0.0
        %3753 = vmatprep.subr.mxu0 0.0
        %3754 = vmatpush1.msra.mxu0 0.0
        %3755 = vmatprep.subr.mxu0 0.0
        %3756 = vmatpush1.msra.mxu0 0.0
        %3757 = vmatprep.subr.mxu0 0.0
        %3758 = vmatpush1.msra.mxu0 0.0
        %3759 = vmatprep.subr.mxu0 0.0
        %3760 = vmatpush1.msra.mxu0 0.0
        %3761 = vmatprep.subr.mxu0 0.0
        %3762 = vmatpush1.msra.mxu0 0.0
        %3763 = vmatprep.subr.mxu0 0.0
        %3764 = vmatpush1.msra.mxu0 0.0
        %3765 = vmatprep.subr.mxu0 0.0
        %3766 = vmatpush1.msra.mxu0 0.0
        %3767 = vmatprep.subr.mxu0 0.0
        %3768 = vmatpush1.msra.mxu0 0.0
        %3769 = vmatprep.subr.mxu0 0.0
        %3770 = vmatpush1.msra.mxu0 0.0
        %3771 = vmatprep.subr.mxu0 0.0
        %3772 = vmatpush1.msra.mxu0 0.0
        %3773 = vmatprep.subr.mxu0 0.0
        %3774 = vmatpush1.msra.mxu0 0.0
        %3775 = vmatprep.subr.mxu0 0.0
        %3776 = vmatpush1.msra.mxu0 0.0
        %3777 = vmatprep.subr.mxu0 0.0
        %3778 = vmatpush1.msra.mxu0 0.0
        %3779 = vmatprep.subr.mxu0 0.0
        %3780 = vmatpush1.msra.mxu0 0.0
        %3781 = vmatprep.subr.mxu0 0.0
        %3782 = vmatpush1.msra.mxu0 0.0
        %3783 = vmatprep.subr.mxu0 0.0
        %3784 = vmatpush1.msra.mxu0 0.0
        %3785 = vmatprep.subr.mxu0 0.0
        %3786 = vmatpush1.msra.mxu0 0.0
        %3787 = vmatprep.subr.mxu0 0.0
        %3788 = vmatpush1.msra.mxu0 0.0
        %3789 = vmatprep.subr.mxu0 0.0
        %3790 = vmatpush1.msra.mxu0 0.0
        %3791 = vmatprep.subr.mxu0 0.0
        %3792 = vmatpush1.msra.mxu0 0.0
        %3793 = vmatprep.subr.mxu0 0.0
        %3794 = vmatpush1.msra.mxu0 0.0
        %3795 = vmatprep.subr.mxu0 0.0
        %3796 = vmatpush1.msra.mxu0 0.0
        %3797 = vmatprep.subr.mxu0 0.0
        %3798 = vmatpush1.msra.mxu0 0.0
        %3799 = vmatprep.subr.mxu0 0.0
        %3800 = vmatpush1.msra.mxu0 0.0
        %3801 = vmatprep.subr.mxu0 0.0
        %3802 = vmatpush1.msra.mxu0 0.0
        %3803 = vmatprep.mubr.f32.mxu0 0.0
        %3804 = vmatmul.mubr.f32.gmra.mrb[0].mxu0 %v3737
        %v3805 = vpop.f32.mrb[0].mxu0
        %v3806 = vadd.f32 0.0, %v3805
        %v3807 = vpop.f32.mrb[0].mxu0
        %3808 = vdwg.mxu0
        %v3809 = vadd.f32 %v1761, %v3806
        %v3810 = vtanh.pop %v3809
        %v3812 = vsel %vm579, %v3735, 0
        %3814 = vmatprep.subr.mxu0 0.0
        %3815 = vmatpush1.msra.mxu0 %v321
        %3816 = vmatprep.subr.mxu0 0.0
        %3817 = vmatpush1.msra.mxu0 %v322
        %3818 = vmatprep.subr.mxu0 0.0
        %3819 = vmatpush1.msra.mxu0 %v323
        %3820 = vmatprep.subr.mxu0 0.0
        %3821 = vmatpush1.msra.mxu0 %v324
        %3822 = vmatprep.subr.mxu0 0.0
        %3823 = vmatpush1.msra.mxu0 0.0
        %3824 = vmatprep.subr.mxu0 0.0
        %3825 = vmatpush1.msra.mxu0 0.0
        %3826 = vmatprep.subr.mxu0 0.0
        %3827 = vmatpush1.msra.mxu0 0.0
        %3828 = vmatprep.subr.mxu0 0.0
        %3829 = vmatpush1.msra.mxu0 0.0
        %3830 = vmatprep.subr.mxu0 0.0
        %3831 = vmatpush1.msra.mxu0 0.0
        %3832 = vmatprep.subr.mxu0 0.0
        %3833 = vmatpush1.msra.mxu0 0.0
        %3834 = vmatprep.subr.mxu0 0.0
        %3835 = vmatpush1.msra.mxu0 0.0
        %3836 = vmatprep.subr.mxu0 0.0
        %3837 = vmatpush1.msra.mxu0 0.0
        %3838 = vmatprep.subr.mxu0 0.0
        %3839 = vmatpush1.msra.mxu0 0.0
        %3840 = vmatprep.subr.mxu0 0.0
        %3841 = vmatpush1.msra.mxu0 0.0
        %3842 = vmatprep.subr.mxu0 0.0
        %3843 = vmatpush1.msra.mxu0 0.0
        %3844 = vmatprep.subr.mxu0 0.0
        %3845 = vmatpush1.msra.mxu0 0.0
        %3846 = vmatprep.subr.mxu0 0.0
        %3847 = vmatpush1.msra.mxu0 0.0
        %3848 = vmatprep.subr.mxu0 0.0
        %3849 = vmatpush1.msra.mxu0 0.0
        %3850 = vmatprep.subr.mxu0 0.0
        %3851 = vmatpush1.msra.mxu0 0.0
        %3852 = vmatprep.subr.mxu0 0.0
        %3853 = vmatpush1.msra.mxu0 0.0
        %3854 = vmatprep.subr.mxu0 0.0
        %3855 = vmatpush1.msra.mxu0 0.0
        %3856 = vmatprep.subr.mxu0 0.0
        %3857 = vmatpush1.msra.mxu0 0.0
        %3858 = vmatprep.subr.mxu0 0.0
        %3859 = vmatpush1.msra.mxu0 0.0
        %3860 = vmatprep.subr.mxu0 0.0
        %3861 = vmatpush1.msra.mxu0 0.0
        %3862 = vmatprep.subr.mxu0 0.0
        %3863 = vmatpush1.msra.mxu0 0.0
        %3864 = vmatprep.subr.mxu0 0.0
        %3865 = vmatpush1.msra.mxu0 0.0
        %3866 = vmatprep.subr.mxu0 0.0
        %3867 = vmatpush1.msra.mxu0 0.0
        %3868 = vmatprep.subr.mxu0 0.0
        %3869 = vmatpush1.msra.mxu0 0.0
        %3870 = vmatprep.subr.mxu0 0.0
        %3871 = vmatpush1.msra.mxu0 0.0
        %3872 = vmatprep.subr.mxu0 0.0
        %3873 = vmatpush1.msra.mxu0 0.0
        %3874 = vmatprep.subr.mxu0 0.0
        %3875 = vmatpush1.msra.mxu0 0.0
        %3876 = vmatprep.subr.mxu0 0.0
        %3877 = vmatpush1.msra.mxu0 0.0
        %3878 = vmatprep.mubr.f32.mxu0 0.0
        %3879 = vmatmul.mubr.f32.gmra.mrb[0].mxu0 %v3812
        %v3880 = vpop.f32.mrb[0].mxu0
        %v3881 = vadd.f32 0.0, %v3880
        %v3882 = vpop.f32.mrb[0].mxu0
        %3883 = vdwg.mxu0
        %v3884 = vadd.f32 %v1766, %v3881
        %v3885 = vtanh.pop %v3884
        %v3887 = vsel %vm579, %v3810, 0
        %3889 = vmatprep.subr.mxu0 0.0
        %3890 = vmatpush1.msra.mxu0 %v321
        %3891 = vmatprep.subr.mxu0 0.0
        %3892 = vmatpush1.msra.mxu0 %v322
        %3893 = vmatprep.subr.mxu0 0.0
        %3894 = vmatpush1.msra.mxu0 %v323
        %3895 = vmatprep.subr.mxu0 0.0
        %3896 = vmatpush1.msra.mxu0 %v324
        %3897 = vmatprep.subr.mxu0 0.0
        %3898 = vmatpush1.msra.mxu0 0.0
        %3899 = vmatprep.subr.mxu0 0.0
        %3900 = vmatpush1.msra.mxu0 0.0
        %3901 = vmatprep.subr.mxu0 0.0
        %3902 = vmatpush1.msra.mxu0 0.0
        %3903 = vmatprep.subr.mxu0 0.0
        %3904 = vmatpush1.msra.mxu0 0.0
        %3905 = vmatprep.subr.mxu0 0.0
        %3906 = vmatpush1.msra.mxu0 0.0
        %3907 = vmatprep.subr.mxu0 0.0
        %3908 = vmatpush1.msra.mxu0 0.0
        %3909 = vmatprep.subr.mxu0 0.0
        %3910 = vmatpush1.msra.mxu0 0.0
        %3911 = vmatprep.subr.mxu0 0.0
        %3912 = vmatpush1.msra.mxu0 0.0
        %3913 = vmatprep.subr.mxu0 0.0
        %3914 = vmatpush1.msra.mxu0 0.0
        %3915 = vmatprep.subr.mxu0 0.0
        %3916 = vmatpush1.msra.mxu0 0.0
        %3917 = vmatprep.subr.mxu0 0.0
        %3918 = vmatpush1.msra.mxu0 0.0
        %3919 = vmatprep.subr.mxu0 0.0
        %3920 = vmatpush1.msra.mxu0 0.0
        %3921 = vmatprep.subr.mxu0 0.0
        %3922 = vmatpush1.msra.mxu0 0.0
        %3923 = vmatprep.subr.mxu0 0.0
        %3924 = vmatpush1.msra.mxu0 0.0
        %3925 = vmatprep.subr.mxu0 0.0
        %3926 = vmatpush1.msra.mxu0 0.0
        %3927 = vmatprep.subr.mxu0 0.0
        %3928 = vmatpush1.msra.mxu0 0.0
        %3929 = vmatprep.subr.mxu0 0.0
        %3930 = vmatpush1.msra.mxu0 0.0
        %3931 = vmatprep.subr.mxu0 0.0
        %3932 = vmatpush1.msra.mxu0 0.0
        %3933 = vmatprep.subr.mxu0 0.0
        %3934 = vmatpush1.msra.mxu0 0.0
        %3935 = vmatprep.subr.mxu0 0.0
        %3936 = vmatpush1.msra.mxu0 0.0
        %3937 = vmatprep.subr.mxu0 0.0
        %3938 = vmatpush1.msra.mxu0 0.0
        %3939 = vmatprep.subr.mxu0 0.0
        %3940 = vmatpush1.msra.mxu0 0.0
        %3941 = vmatprep.subr.mxu0 0.0
        %3942 = vmatpush1.msra.mxu0 0.0
        %3943 = vmatprep.subr.mxu0 0.0
        %3944 = vmatpush1.msra.mxu0 0.0
        %3945 = vmatprep.subr.mxu0 0.0
        %3946 = vmatpush1.msra.mxu0 0.0
        %3947 = vmatprep.subr.mxu0 0.0
        %3948 = vmatpush1.msra.mxu0 0.0
        %3949 = vmatprep.subr.mxu0 0.0
        %3950 = vmatpush1.msra.mxu0 0.0
        %3951 = vmatprep.subr.mxu0 0.0
        %3952 = vmatpush1.msra.mxu0 0.0
        %3953 = vmatprep.mubr.f32.mxu0 0.0
        %3954 = vmatmul.mubr.f32.gmra.mrb[0].mxu0 %v3887
        %v3955 = vpop.f32.mrb[0].mxu0
        %v3956 = vadd.f32 0.0, %v3955
        %v3957 = vpop.f32.mrb[0].mxu0
        %3958 = vdwg.mxu0
        %v3959 = vadd.f32 %v1771, %v3956
        %v3960 = vtanh.pop %v3959
        %v3962 = vsel %vm579, %v3885, 0
        %3964 = vmatprep.subr.mxu0 0.0
        %3965 = vmatpush1.msra.mxu0 %v321
        %3966 = vmatprep.subr.mxu0 0.0
        %3967 = vmatpush1.msra.mxu0 %v322
        %3968 = vmatprep.subr.mxu0 0.0
        %3969 = vmatpush1.msra.mxu0 %v323
        %3970 = vmatprep.subr.mxu0 0.0
        %3971 = vmatpush1.msra.mxu0 %v324
        %3972 = vmatprep.subr.mxu0 0.0
        %3973 = vmatpush1.msra.mxu0 0.0
        %3974 = vmatprep.subr.mxu0 0.0
        %3975 = vmatpush1.msra.mxu0 0.0
        %3976 = vmatprep.subr.mxu0 0.0
        %3977 = vmatpush1.msra.mxu0 0.0
        %3978 = vmatprep.subr.mxu0 0.0
        %3979 = vmatpush1.msra.mxu0 0.0
        %3980 = vmatprep.subr.mxu0 0.0
        %3981 = vmatpush1.msra.mxu0 0.0
        %3982 = vmatprep.subr.mxu0 0.0
        %3983 = vmatpush1.msra.mxu0 0.0
        %3984 = vmatprep.subr.mxu0 0.0
        %3985 = vmatpush1.msra.mxu0 0.0
        %3986 = vmatprep.subr.mxu0 0.0
        %3987 = vmatpush1.msra.mxu0 0.0
        %3988 = vmatprep.subr.mxu0 0.0
        %3989 = vmatpush1.msra.mxu0 0.0
        %3990 = vmatprep.subr.mxu0 0.0
        %3991 = vmatpush1.msra.mxu0 0.0
        %3992 = vmatprep.subr.mxu0 0.0
        %3993 = vmatpush1.msra.mxu0 0.0
        %3994 = vmatprep.subr.mxu0 0.0
        %3995 = vmatpush1.msra.mxu0 0.0
        %3996 = vmatprep.subr.mxu0 0.0
        %3997 = vmatpush1.msra.mxu0 0.0
        %3998 = vmatprep.subr.mxu0 0.0
        %3999 = vmatpush1.msra.mxu0 0.0
        %4000 = vmatprep.subr.mxu0 0.0
        %4001 = vmatpush1.msra.mxu0 0.0
        %4002 = vmatprep.subr.mxu0 0.0
        %4003 = vmatpush1.msra.mxu0 0.0
        %4004 = vmatprep.subr.mxu0 0.0
        %4005 = vmatpush1.msra.mxu0 0.0
        %4006 = vmatprep.subr.mxu0 0.0
        %4007 = vmatpush1.msra.mxu0 0.0
        %4008 = vmatprep.subr.mxu0 0.0
        %4009 = vmatpush1.msra.mxu0 0.0
        %4010 = vmatprep.subr.mxu0 0.0
        %4011 = vmatpush1.msra.mxu0 0.0
        %4012 = vmatprep.subr.mxu0 0.0
        %4013 = vmatpush1.msra.mxu0 0.0
        %4014 = vmatprep.subr.mxu0 0.0
        %4015 = vmatpush1.msra.mxu0 0.0
        %4016 = vmatprep.subr.mxu0 0.0
        %4017 = vmatpush1.msra.mxu0 0.0
        %4018 = vmatprep.subr.mxu0 0.0
        %4019 = vmatpush1.msra.mxu0 0.0
        %4020 = vmatprep.subr.mxu0 0.0
        %4021 = vmatpush1.msra.mxu0 0.0
        %4022 = vmatprep.subr.mxu0 0.0
        %4023 = vmatpush1.msra.mxu0 0.0
        %4024 = vmatprep.subr.mxu0 0.0
        %4025 = vmatpush1.msra.mxu0 0.0
        %4026 = vmatprep.subr.mxu0 0.0
        %4027 = vmatpush1.msra.mxu0 0.0
        %4028 = vmatprep.mubr.f32.mxu0 0.0
        %4029 = vmatmul.mubr.f32.gmra.mrb[0].mxu0 %v3962
        %v4030 = vpop.f32.mrb[0].mxu0
        %v4031 = vadd.f32 0.0, %v4030
        %v4032 = vpop.f32.mrb[0].mxu0
        %4033 = vdwg.mxu0
        %v4034 = vadd.f32 %v1776, %v4031
        %v4035 = vtanh.pop %v4034
        %v4037 = vsel %vm579, %v3960, 0
        %4039 = vmatprep.subr.mxu0 0.0
        %4040 = vmatpush1.msra.mxu0 %v321
        %4041 = vmatprep.subr.mxu0 0.0
        %4042 = vmatpush1.msra.mxu0 %v322
        %4043 = vmatprep.subr.mxu0 0.0
        %4044 = vmatpush1.msra.mxu0 %v323
        %4045 = vmatprep.subr.mxu0 0.0
        %4046 = vmatpush1.msra.mxu0 %v324
        %4047 = vmatprep.subr.mxu0 0.0
        %4048 = vmatpush1.msra.mxu0 0.0
        %4049 = vmatprep.subr.mxu0 0.0
        %4050 = vmatpush1.msra.mxu0 0.0
        %4051 = vmatprep.subr.mxu0 0.0
        %4052 = vmatpush1.msra.mxu0 0.0
        %4053 = vmatprep.subr.mxu0 0.0
        %4054 = vmatpush1.msra.mxu0 0.0
        %4055 = vmatprep.subr.mxu0 0.0
        %4056 = vmatpush1.msra.mxu0 0.0
        %4057 = vmatprep.subr.mxu0 0.0
        %4058 = vmatpush1.msra.mxu0 0.0
        %4059 = vmatprep.subr.mxu0 0.0
        %4060 = vmatpush1.msra.mxu0 0.0
        %4061 = vmatprep.subr.mxu0 0.0
        %4062 = vmatpush1.msra.mxu0 0.0
        %4063 = vmatprep.subr.mxu0 0.0
        %4064 = vmatpush1.msra.mxu0 0.0
        %4065 = vmatprep.subr.mxu0 0.0
        %4066 = vmatpush1.msra.mxu0 0.0
        %4067 = vmatprep.subr.mxu0 0.0
        %4068 = vmatpush1.msra.mxu0 0.0
        %4069 = vmatprep.subr.mxu0 0.0
        %4070 = vmatpush1.msra.mxu0 0.0
        %4071 = vmatprep.subr.mxu0 0.0
        %4072 = vmatpush1.msra.mxu0 0.0
        %4073 = vmatprep.subr.mxu0 0.0
        %4074 = vmatpush1.msra.mxu0 0.0
        %4075 = vmatprep.subr.mxu0 0.0
        %4076 = vmatpush1.msra.mxu0 0.0
        %4077 = vmatprep.subr.mxu0 0.0
        %4078 = vmatpush1.msra.mxu0 0.0
        %4079 = vmatprep.subr.mxu0 0.0
        %4080 = vmatpush1.msra.mxu0 0.0
        %4081 = vmatprep.subr.mxu0 0.0
        %4082 = vmatpush1.msra.mxu0 0.0
        %4083 = vmatprep.subr.mxu0 0.0
        %4084 = vmatpush1.msra.mxu0 0.0
        %4085 = vmatprep.subr.mxu0 0.0
        %4086 = vmatpush1.msra.mxu0 0.0
        %4087 = vmatprep.subr.mxu0 0.0
        %4088 = vmatpush1.msra.mxu0 0.0
        %4089 = vmatprep.subr.mxu0 0.0
        %4090 = vmatpush1.msra.mxu0 0.0
        %4091 = vmatprep.subr.mxu0 0.0
        %4092 = vmatpush1.msra.mxu0 0.0
        %4093 = vmatprep.subr.mxu0 0.0
        %4094 = vmatpush1.msra.mxu0 0.0
        %4095 = vmatprep.subr.mxu0 0.0
        %4096 = vmatpush1.msra.mxu0 0.0
        %4097 = vmatprep.subr.mxu0 0.0
        %4098 = vmatpush1.msra.mxu0 0.0
        %4099 = vmatprep.subr.mxu0 0.0
        %4100 = vmatpush1.msra.mxu0 0.0
        %4101 = vmatprep.subr.mxu0 0.0
        %4102 = vmatpush1.msra.mxu0 0.0
        %4103 = vmatprep.mubr.f32.mxu0 0.0
        %4104 = vmatmul.mubr.f32.gmra.mrb[0].mxu0 %v4037
        %v4105 = vpop.f32.mrb[0].mxu0
        %v4106 = vadd.f32 0.0, %v4105
        %v4107 = vpop.f32.mrb[0].mxu0
        %4108 = vdwg.mxu0
        %v4109 = vadd.f32 %v1781, %v4106
        %v4110 = vtanh.pop %v4109
        %v4111 = vld [vmem:[#allocation8] sm:$0xff]
        %v4112 = vld [vmem:[#allocation8 + $0x8] sm:$0xff]
        %v4113 = vld [vmem:[#allocation8 + $0x10] sm:$0xff]
        %v4114 = vld [vmem:[#allocation8 + $0x18] sm:$0xff]
        %v4115 = vld [vmem:[%s5] sm:$0x1]
        %v4117 = vlaneseq
        %v4118 = vshrl.u32 %v4117, 7
        %v4119 = vsub.s32 0, %v4118
        %v4120 = vrot.slane %v4115, %v4119
        %v4123 = vsel %vm579, %v4035, 0
        %v4126 = vsel %vm579, %v4110, 0
        %4128 = vmatprep.subr.mxu0 0.0
        %4129 = vmatpush1.msra.mxu0 %v4111
        %4130 = vmatprep.subr.mxu0 0.0
        %4131 = vmatpush1.msra.mxu0 %v4112
        %4132 = vmatprep.subr.mxu0 0.0
        %4133 = vmatpush1.msra.mxu0 %v4113
        %4134 = vmatprep.subr.mxu0 0.0
        %4135 = vmatpush1.msra.mxu0 %v4114
        %4136 = vmatprep.subr.mxu0 0.0
        %4137 = vmatpush1.msra.mxu0 0.0
        %4138 = vmatprep.subr.mxu0 0.0
        %4139 = vmatpush1.msra.mxu0 0.0
        %4140 = vmatprep.subr.mxu0 0.0
        %4141 = vmatpush1.msra.mxu0 0.0
        %4142 = vmatprep.subr.mxu0 0.0
        %4143 = vmatpush1.msra.mxu0 0.0
        %4144 = vmatprep.subr.mxu0 0.0
        %4145 = vmatpush1.msra.mxu0 0.0
        %4146 = vmatprep.subr.mxu0 0.0
        %4147 = vmatpush1.msra.mxu0 0.0
        %4148 = vmatprep.subr.mxu0 0.0
        %4149 = vmatpush1.msra.mxu0 0.0
        %4150 = vmatprep.subr.mxu0 0.0
        %4151 = vmatpush1.msra.mxu0 0.0
        %4152 = vmatprep.subr.mxu0 0.0
        %4153 = vmatpush1.msra.mxu0 0.0
        %4154 = vmatprep.subr.mxu0 0.0
        %4155 = vmatpush1.msra.mxu0 0.0
        %4156 = vmatprep.subr.mxu0 0.0
        %4157 = vmatpush1.msra.mxu0 0.0
        %4158 = vmatprep.subr.mxu0 0.0
        %4159 = vmatpush1.msra.mxu0 0.0
        %4160 = vmatprep.subr.mxu0 0.0
        %4161 = vmatpush1.msra.mxu0 0.0
        %4162 = vmatprep.subr.mxu0 0.0
        %4163 = vmatpush1.msra.mxu0 0.0
        %4164 = vmatprep.subr.mxu0 0.0
        %4165 = vmatpush1.msra.mxu0 0.0
        %4166 = vmatprep.subr.mxu0 0.0
        %4167 = vmatpush1.msra.mxu0 0.0
        %4168 = vmatprep.subr.mxu0 0.0
        %4169 = vmatpush1.msra.mxu0 0.0
        %4170 = vmatprep.subr.mxu0 0.0
        %4171 = vmatpush1.msra.mxu0 0.0
        %4172 = vmatprep.subr.mxu0 0.0
        %4173 = vmatpush1.msra.mxu0 0.0
        %4174 = vmatprep.subr.mxu0 0.0
        %4175 = vmatpush1.msra.mxu0 0.0
        %4176 = vmatprep.subr.mxu0 0.0
        %4177 = vmatpush1.msra.mxu0 0.0
        %4178 = vmatprep.subr.mxu0 0.0
        %4179 = vmatpush1.msra.mxu0 0.0
        %4180 = vmatprep.subr.mxu0 0.0
        %4181 = vmatpush1.msra.mxu0 0.0
        %4182 = vmatprep.subr.mxu0 0.0
        %4183 = vmatpush1.msra.mxu0 0.0
        %4184 = vmatprep.subr.mxu0 0.0
        %4185 = vmatpush1.msra.mxu0 0.0
        %4186 = vmatprep.subr.mxu0 0.0
        %4187 = vmatpush1.msra.mxu0 0.0
        %4188 = vmatprep.subr.mxu0 0.0
        %4189 = vmatpush1.msra.mxu0 0.0
        %4190 = vmatprep.subr.mxu0 0.0
        %4191 = vmatpush1.msra.mxu0 0.0
        %4192 = vmatprep.mubr.f32.mxu0 0.0
        %4193 = vmatmul.mubr.f32.gmra.mrb[0].mxu0 %v4123
        %v4194 = vpop.f32.mrb[0].mxu0
        %v4195 = vadd.f32 %v4120, %v4194
        %v4196 = vpop.f32.mrb[0].mxu0
        %4197 = vmatprep.mubr.f32.mxu0 0.0
        %4198 = vmatmul.mubr.f32.gmra.mrb[0].mxu0 %v4126
        %v4199 = vpop.f32.mrb[0].mxu0
        %v4200 = vadd.f32 %v4120, %v4199
        %v4201 = vpop.f32.mrb[0].mxu0
        %4202 = vdwg.mxu0
        %4203 = vst [vmem:[%s314] sm:$0xff] %v4195
        %4204 = vst [vmem:[%s314 + $0x8] sm:$0xff] %v4200
        %s4205 = sand.u32 %s164, 1
        %s4206 = scalar_lea.sflag [#allocation4], %s4205
        %s4207 = sand.u32 %s164, 1
        %s4208 = smul.addr %s4207, 16
        %s4209 = scalar_lea.vmem [#allocation10], %s4208
        // Predicated region
        $region61: #{tpu_custom_call.1} parent=43 // pred_check
          %p4210 = pneg %p174
        $region62: #{tpu_custom_call.1} parent=43 // pred_check_branch
          %4212 = sbr.rel (%p4210) target = $region64
        $region63: #{tpu_custom_call.1} parent=43 // pred_region
          %s4213 = smul.u32 2, %s25
          %s4215 = ssub.s32 256, 256
          %4216 = vsyncadd %s4206, %s4215
          %s4217 = smul.addr %s4213, 128
          %s4218 = scalar_lea.hbm %s6, %s4217
          %s4219 = sshll.u32 %s4209, 4
          %s4220 = int_to_ptr.vmem [resolvable:$true] %s4219
          %4225 = dma.vmem_to_hbm [thread:$0]  %s4220, 256, %s4218, %s4206, 128, 128, 8
        $region64: #{tpu_custom_call.1} parent=43 // pred_fallthru
          _
      $region44: #{tpu_custom_call.1} parent=5 // pred_fallthru
        _
      %p4226 = scmp.le.s32.totalorder 2, %s20
      // Predicated region
      $region65: #{tpu_custom_call.1} parent=5 // pred_check
        %p4227 = pneg %p4226
      $region66: #{tpu_custom_call.1} parent=5 // pred_check_branch
        %4229 = sbr.rel (%p4227) target = $region68
      $region67: #{tpu_custom_call.1} parent=5 // pred_region
        %s4230 = ssub.s32 %s20, 2
        // Predicated region
        $region69: #{tpu_custom_call.1} parent=67 // pred_check
          %p4231 = pneg %p180
        $region70: #{tpu_custom_call.1} parent=67 // pred_check_branch
          %4233 = sbr.rel (%p4231) target = $region72
        $region71: #{tpu_custom_call.1} parent=67 // pred_region
          %s4234 = sand.u32 %s165, 1
          %s4235 = scalar_lea.sflag [#allocation4], %s4234
          %s4236 = sand.u32 %s165, 1
          %s4237 = smul.addr %s4236, 16
          %s4238 = scalar_lea.vmem [#allocation10], %s4237
          %4239 = dma.done %s4235, 256
        $region72: #{tpu_custom_call.1} parent=67 // pred_fallthru
          _
      $region68: #{tpu_custom_call.1} parent=5 // pred_fallthru
        _
    $region6: #{tpu_custom_call.1} parent=1 // loop_footer
      %s24 = sadd.s32 1, %s20
    $region7: #{tpu_custom_call.1} parent=1 // loop_footer_branch
      %19 = sbr.rel target = $region3
    $region8: #{tpu_custom_call.1} parent=1 // loop_exit
      _
    %4240 = vsyncpa [#allocation3], 1
    %s4241 = scalar_lea.sflag [#allocation3], 1
    %4242 = vsyncpa %s4241, 1
    %4243 = vsyncpa [#allocation6], 1
    %4244 = vsyncpa [#allocation9], 1
    %4245 = vsyncpa [#allocation4], 1
    %s4246 = scalar_lea.sflag [#allocation4], 1
    %4247 = vsyncpa %s4246, 1

</llo_original>
